<compile_context>
chip_gen: v5e
topology: v5e:2x2
jax: 0.10.0
libtpu: 0.0.40
codegen_flags: <defaults>
</compile_context>

<pallas_src>
import functools
import math

import jax
import jax.numpy as jnp
from jax import lax
from jax.experimental import pallas as pl
from jax.experimental.pallas import tpu as pltpu

EPS = 1e-6        # Annotated-Transformer LayerNorm eps
NEG_INF = -1e9    # masked_fill value used by the reference attention


# ----------------------------- in-kernel helpers -----------------------------

def _linear(x, w, b):
    """x @ w + b with bf16 MXU operands and f32 accumulation (w is bf16, b is f32)."""
    return jnp.dot(x.astype(jnp.bfloat16), w,
                   preferred_element_type=jnp.float32) + b


def _layernorm(x, a, b):
    """Annotated-Transformer LayerNorm: a*(x-mean)/(unbiased_std + eps) + b.

    Division replaced by a reciprocal-multiply (frees VALU slots)."""
    n = x.shape[-1]
    mean = jnp.mean(x, axis=-1, keepdims=True)
    xm = x - mean
    var = jnp.sum(xm * xm, axis=-1, keepdims=True) * (1.0 / (n - 1))
    inv = pl.reciprocal(jnp.sqrt(var) + EPS, approx=False)
    return a * (xm * inv) + b


def _mha(q, k, v, wo, bo, *, heads, causal):
    """Multi-head attention over a folded batch block.

    q: (Bb, Tq, D), k/v: (Bb, Tk, D) f32; wo: (D, D) bf16; bo: (1, D) f32.
    Per-head contexts are written into contiguous lane slices (concat) and the
    output projection is ONE (Bb*Tq, D) @ (D, D) matmul (full K=D contraction),
    instead of per-head K=dk accumulations.  Returns (Bb*Tq, D) f32 (no residual).
    """
    # TODO(synk): scores are materialized as (Tq, Tk) per head; long sequences would
    # need flash-style KV tiling, which is unnecessary at these sizes.
    bb, t_q, d = q.shape
    t_k = k.shape[1]
    dk = d // heads
    scale = 1.0 / math.sqrt(dk)

    if causal:
        row = lax.broadcasted_iota(jnp.int32, (t_q, t_k), 0)
        col = lax.broadcasted_iota(jnp.int32, (t_q, t_k), 1)
        allowed = (col <= row)[None, :, :]       # subsequent_mask semantics

    ctx_heads = []
    for h in range(heads):                       # static unroll; all heads in one step
        sl = slice(h * dk, (h + 1) * dk)
        qh = q[:, :, sl].astype(jnp.bfloat16)
        kh = k[:, :, sl].astype(jnp.bfloat16)
        vh = v[:, :, sl].astype(jnp.bfloat16)
        # scores = q_h @ k_h^T / sqrt(dk)   (batched over the folded batch dim)
        s = jnp.einsum('bqd,bkd->bqk', qh, kh,
                       preferred_element_type=jnp.float32) * scale
        if causal:
            s = jnp.where(allowed, s, NEG_INF)
        s = s - jnp.max(s, axis=-1, keepdims=True)
        p = jnp.exp(s)
        p = p * pl.reciprocal(jnp.sum(p, axis=-1, keepdims=True), approx=True)
        ctx_heads.append(jnp.einsum('bqk,bkd->bqd', p.astype(jnp.bfloat16), vh,
                                    preferred_element_type=jnp.float32))

    ctx = jnp.concatenate(ctx_heads, axis=-1).reshape(bb * t_q, d)   # (M, D)
    return jnp.dot(ctx.astype(jnp.bfloat16), wo,
                   preferred_element_type=jnp.float32) + bo


# ----------------------------- fused stack kernels -----------------------------

def _encoder_stack_kernel(src_ref, pe_ref, we_ref, be_ref,
                          wqkv_ref, bqkv_ref, wo_ref, bo_ref,
                          w1_ref, b1_ref, w2_ref, b2_ref,
                          ln_ref, norm_ref, o_ref, *, heads, seq_len):
    layer = pl.program_id(1)
    n_layers = pl.num_programs(1)

    # layer 0: src_embed (linear + positional encoding) into the resident activation.
    @pl.when(layer == 0)
    def _():
        o_ref[...] = _linear(src_ref[...], we_ref[...], be_ref[...]) + pe_ref[...]

    x = o_ref[...]                       # (M, D), M = Bb * seq_len (batch folded)
    m, d = x.shape
    bb = m // seq_len

    # --- sublayer 1: pre-norm self-attention + residual (src_mask is None) ---
    y = _layernorm(x, ln_ref[0:1, :], ln_ref[1:2, :])
    qkv = _linear(y, wqkv_ref[...], bqkv_ref[...])           # (M, 3D), one big matmul
    q = qkv[:, 0:d].reshape(bb, seq_len, d)
    k = qkv[:, d:2 * d].reshape(bb, seq_len, d)
    v = qkv[:, 2 * d:3 * d].reshape(bb, seq_len, d)
    x = x + _mha(q, k, v, wo_ref[...], bo_ref[...], heads=heads, causal=False)

    # --- sublayer 2: pre-norm position-wise FFN + residual ---
    y = _layernorm(x, ln_ref[2:3, :], ln_ref[3:4, :])
    h = jnp.maximum(_linear(y, w1_ref[...], b1_ref[...]), 0.0)
    x = x + _linear(h, w2_ref[...], b2_ref[...])

    # single store per step; final stack LayerNorm fused into the last grid step
    @pl.when(layer != n_layers - 1)
    def _():
        o_ref[...] = x

    @pl.when(layer == n_layers - 1)
    def _():
        o_ref[...] = _layernorm(x, norm_ref[0:1, :], norm_ref[1:2, :])


def _decoder_stack_kernel(tgt_ref, mem_ref, pe_ref, we_ref, be_ref,
                          wsq_ref, bsq_ref, wso_ref, bso_ref,
                          wcq_ref, bcq_ref, wckv_ref, bckv_ref, wco_ref, bco_ref,
                          w1_ref, b1_ref, w2_ref, b2_ref,
                          ln_ref, norm_ref, wg_ref, bg_ref,
                          o_ref, x_ref, *, heads, t_tgt, t_src):
    layer = pl.program_id(1)
    n_layers = pl.num_programs(1)

    # layer 0: tgt_embed (linear + positional encoding) into the VMEM-resident scratch.
    @pl.when(layer == 0)
    def _():
        x_ref[...] = _linear(tgt_ref[...], we_ref[...], be_ref[...]) + pe_ref[...]

    x = x_ref[...]                       # (M, D), M = Bb * t_tgt (batch folded)
    m, d = x.shape
    bb = m // t_tgt

    # --- sublayer 1: causal (subsequent-mask) self-attention + residual ---
    y = _layernorm(x, ln_ref[0:1, :], ln_ref[1:2, :])
    qkv = _linear(y, wsq_ref[...], bsq_ref[...])
    q = qkv[:, 0:d].reshape(bb, t_tgt, d)
    k = qkv[:, d:2 * d].reshape(bb, t_tgt, d)
    v = qkv[:, 2 * d:3 * d].reshape(bb, t_tgt, d)
    x = x + _mha(q, k, v, wso_ref[...], bso_ref[...], heads=heads, causal=True)

    # --- sublayer 2: cross-attention over encoder memory (src_mask is None) ---
    y = _layernorm(x, ln_ref[2:3, :], ln_ref[3:4, :])
    q = _linear(y, wcq_ref[...], bcq_ref[...]).reshape(bb, t_tgt, d)
    kv = _linear(mem_ref[...], wckv_ref[...], bckv_ref[...])     # (Bb*Ts, 2D)
    k = kv[:, 0:d].reshape(bb, t_src, d)
    v = kv[:, d:2 * d].reshape(bb, t_src, d)
    x = x + _mha(q, k, v, wco_ref[...], bco_ref[...], heads=heads, causal=False)

    # --- sublayer 3: pre-norm position-wise FFN + residual ---
    y = _layernorm(x, ln_ref[4:5, :], ln_ref[5:6, :])
    h = jnp.maximum(_linear(y, w1_ref[...], b1_ref[...]), 0.0)
    x = x + _linear(h, w2_ref[...], b2_ref[...])

    @pl.when(layer != n_layers - 1)
    def _():
        x_ref[...] = x

    # last step: final stack LayerNorm + fused generator head (lane-dense padded out).
    @pl.when(layer == n_layers - 1)
    def _():
        y = _layernorm(x, norm_ref[0:1, :], norm_ref[1:2, :])
        o_ref[...] = _linear(y, wg_ref[...], bg_ref[...])


# ----------------------------- pallas_call wrappers -----------------------------

def encode(src, pe, p, heads, *, batch_blocks=1):
    """Encoder stack in ONE pallas_call, grid = (batch_blocks, n_layers).

    Batch is folded into the block's M dimension; set batch_blocks=2 on v7x to
    split batch halves across the two TensorCores ("parallel" leading axis).
    """
    B, T, F = src.shape
    L, D, _ = p["w_qkv"].shape
    Dff = p["w1"].shape[-1]
    assert B % batch_blocks == 0
    Bb = B // batch_blocks
    MB = Bb * T

    src_flat = src.reshape(B * T, F)
    pe_blk = jnp.tile(pe, (Bb, 1))       # (MB, D), same PE for every batch element

    def aspec(rows, cols):               # activation-shaped, blocked over batch blocks
        return pl.BlockSpec((rows, cols), lambda b, l: (b, 0))

    def lspec(*tail):                    # per-layer weights (layer axis squeezed)
        return pl.BlockSpec((None,) + tail, lambda b, l: (l,) + (0,) * len(tail))

    def fspec(*shape):                   # small array, whole thing every step
        return pl.BlockSpec(shape, lambda b, l: (0,) * len(shape))

    return pl.pallas_call(
        functools.partial(_encoder_stack_kernel, heads=heads, seq_len=T),
        out_shape=jax.ShapeDtypeStruct((B * T, D), jnp.float32),
        grid=(batch_blocks, L),
        in_specs=[
            aspec(MB, F),                        # src (batch folded into rows)
            fspec(MB, D),                        # positional encoding (pre-tiled)
            fspec(F, D), fspec(1, D),            # src_embed
            lspec(D, 3 * D), lspec(1, 3 * D),    # packed Wq|Wk|Wv (+bias)
            lspec(D, D), lspec(1, D),            # attention output projection
            lspec(D, Dff), lspec(1, Dff),        # FFN w1
            lspec(Dff, D), lspec(1, D),          # FFN w2
            lspec(4, D),                         # ln1_a, ln1_b, ln2_a, ln2_b
            fspec(2, D),                         # final stack LayerNorm (a, b)
        ],
        out_specs=aspec(MB, D),
        compiler_params=pltpu.CompilerParams(
            dimension_semantics=("parallel", "arbitrary")),
    )(src_flat, pe_blk, p["w_emb"], p["b_emb"], p["w_qkv"], p["b_qkv"],
      p["w_o"], p["b_o"], p["w1"], p["b1"], p["w2"], p["b2"], p["ln"], p["norm"])


def decode_and_generate(tgt, memory_flat, pe, dec_p, gen_p, heads, *,
                        t_src, batch_blocks=1):
    """Decoder stack + generator head in ONE pallas_call, grid = (batch_blocks, L).

    The decoder activation lives in a VMEM scratch (never hits HBM); the only
    output is the lane-dense (128-padded) generator result from the last step.
    """
    B, T, F = tgt.shape
    L, D, _ = dec_p["w_self_qkv"].shape
    Dff = dec_p["w1"].shape[-1]
    Fg = gen_p["w_gen_pad"].shape[-1]    # lane-dense padded output width
    assert B % batch_blocks == 0
    Bb = B // batch_blocks
    MB = Bb * T
    MS = Bb * t_src

    tgt_flat = tgt.reshape(B * T, F)
    pe_blk = jnp.tile(pe, (Bb, 1))

    def aspec(rows, cols):
        return pl.BlockSpec((rows, cols), lambda b, l: (b, 0))

    def lspec(*tail):
        return pl.BlockSpec((None,) + tail, lambda b, l: (l,) + (0,) * len(tail))

    def fspec(*shape):
        return pl.BlockSpec(shape, lambda b, l: (0,) * len(shape))

    return pl.pallas_call(
        functools.partial(_decoder_stack_kernel, heads=heads, t_tgt=T, t_src=t_src),
        out_shape=jax.ShapeDtypeStruct((B * T, Fg), jnp.float32),
        grid=(batch_blocks, L),
        in_specs=[
            aspec(MB, F),                        # tgt (batch folded into rows)
            aspec(MS, D),                        # encoder memory (batch folded)
            fspec(MB, D),                        # positional encoding (pre-tiled)
            fspec(F, D), fspec(1, D),            # tgt_embed
            lspec(D, 3 * D), lspec(1, 3 * D),    # self-attn packed Wq|Wk|Wv
            lspec(D, D), lspec(1, D),            # self-attn output projection
            lspec(D, D), lspec(1, D),            # cross-attn Wq
            lspec(D, 2 * D), lspec(1, 2 * D),    # cross-attn packed Wk|Wv
            lspec(D, D), lspec(1, D),            # cross-attn output projection
            lspec(D, Dff), lspec(1, Dff),        # FFN w1
            lspec(Dff, D), lspec(1, D),          # FFN w2
            lspec(6, D),                         # ln1/ln2/ln3 (a, b) rows
            fspec(2, D),                         # final stack LayerNorm (a, b)
            fspec(D, Fg), fspec(1, Fg),          # generator head (lane-dense padded)
        ],
        out_specs=aspec(MB, Fg),
        scratch_shapes=[pltpu.VMEM((MB, D), jnp.float32)],   # resident decoder act
        compiler_params=pltpu.CompilerParams(
            dimension_semantics=("parallel", "arbitrary")),
    )(tgt_flat, memory_flat, pe_blk, dec_p["w_emb"], dec_p["b_emb"],
      dec_p["w_self_qkv"], dec_p["b_self_qkv"], dec_p["w_self_o"], dec_p["b_self_o"],
      dec_p["w_cross_q"], dec_p["b_cross_q"], dec_p["w_cross_kv"], dec_p["b_cross_kv"],
      dec_p["w_cross_o"], dec_p["b_cross_o"],
      dec_p["w1"], dec_p["b1"], dec_p["w2"], dec_p["b2"],
      dec_p["ln"], dec_p["norm"], gen_p["w_gen_pad"], gen_p["b_gen_pad"])


def encoder_decoder_forward(src, tgt, enc_p, dec_p, gen_p, heads, *, batch_blocks=1):
    """Mirrors EncoderDecoder.forward (src_mask=None, no_tgt=False, eval mode).

    tgt_mask = subsequent_mask(tgt.size(1)) is realized as an in-kernel causal mask
    inside the decoder self-attention — no mask tensor is materialized.
    """
    # TODO(synk): the no_tgt=True branch (tgt = src.repeat(...), tgt_mask=None) is
    # not implemented; the default no_tgt=False path is.
    # TODO(synk): the reference generator is constructor-injected and called as
    # generator(src, decoded); how it combines `src` with the decoded features is
    # model-specific, so only the linear head on the decoder output is implemented.
    B, T_src, _ = src.shape
    _, T_tgt, _ = tgt.shape
    D = enc_p["w_qkv"].shape[1]
    memory = encode(src, positional_encoding(T_src, D), enc_p, heads,
                    batch_blocks=batch_blocks)
    out_pad = decode_and_generate(tgt, memory, positional_encoding(T_tgt, D),
                                  dec_p, gen_p, heads, t_src=T_src,
                                  batch_blocks=batch_blocks)
    d_out = gen_p["d_out"]
    return out_pad[:, :d_out].reshape(B, T_tgt, d_out)


# -------------------- parameters / positional encoding --------------------

def positional_encoding(seq_len, d_model):
    pos = jnp.arange(seq_len, dtype=jnp.float32)[:, None]
    div = jnp.exp(jnp.arange(0, d_model, 2, dtype=jnp.float32)
                  * (-math.log(10000.0) / d_model))
    pe = jnp.zeros((seq_len, d_model), jnp.float32)
    pe = pe.at[:, 0::2].set(jnp.sin(pos * div))
    pe = pe.at[:, 1::2].set(jnp.cos(pos * div))
    return pe


def _init_linear(key, fan_in, w_shape, b_shape):
    bound = 1.0 / math.sqrt(fan_in)
    kw, kb = jax.random.split(key)
    w = jax.random.uniform(kw, w_shape, jnp.float32, -bound, bound)
    b = jax.random.uniform(kb, b_shape, jnp.float32, -bound, bound)
    return w.astype(jnp.bfloat16), b      # weights bf16 (MXU-native), bias f32


def init_encoder_params(key, n_layers, d_in, d_model, d_ff):
    ks = jax.random.split(key, 5)
    w_emb, b_emb = _init_linear(ks[0], d_in, (d_in, d_model), (1, d_model))
    w_qkv, b_qkv = _init_linear(ks[1], d_model,
                                (n_layers, d_model, 3 * d_model),
                                (n_layers, 1, 3 * d_model))
    w_o, b_o = _init_linear(ks[2], d_model,
                            (n_layers, d_model, d_model), (n_layers, 1, d_model))
    w1, b1 = _init_linear(ks[3], d_model,
                          (n_layers, d_model, d_ff), (n_layers, 1, d_ff))
    w2, b2 = _init_linear(ks[4], d_ff,
                          (n_layers, d_ff, d_model), (n_layers, 1, d_model))
    ln = jnp.tile(jnp.array([1.0, 0.0, 1.0, 0.0], jnp.float32)[None, :, None],
                  (n_layers, 1, d_model))
    norm = jnp.stack([jnp.ones((d_model,), jnp.float32),
                      jnp.zeros((d_model,), jnp.float32)], axis=0)
    return dict(w_emb=w_emb, b_emb=b_emb, w_qkv=w_qkv, b_qkv=b_qkv,
                w_o=w_o, b_o=b_o, w1=w1, b1=b1, w2=w2, b2=b2, ln=ln, norm=norm)


def init_decoder_params(key, n_layers, d_in, d_model, d_ff):
    ks = jax.random.split(key, 8)
    w_emb, b_emb = _init_linear(ks[0], d_in, (d_in, d_model), (1, d_model))
    w_self_qkv, b_self_qkv = _init_linear(ks[1], d_model,
                                          (n_layers, d_model, 3 * d_model),
                                          (n_layers, 1, 3 * d_model))
    w_self_o, b_self_o = _init_linear(ks[2], d_model,
                                      (n_layers, d_model, d_model),
                                      (n_layers, 1, d_model))
    w_cross_q, b_cross_q = _init_linear(ks[3], d_model,
                                        (n_layers, d_model, d_model),
                                        (n_layers, 1, d_model))
    w_cross_kv, b_cross_kv = _init_linear(ks[4], d_model,
                                          (n_layers, d_model, 2 * d_model),
                                          (n_layers, 1, 2 * d_model))
    w_cross_o, b_cross_o = _init_linear(ks[5], d_model,
                                        (n_layers, d_model, d_model),
                                        (n_layers, 1, d_model))
    w1, b1 = _init_linear(ks[6], d_model,
                          (n_layers, d_model, d_ff), (n_layers, 1, d_ff))
    w2, b2 = _init_linear(ks[7], d_ff,
                          (n_layers, d_ff, d_model), (n_layers, 1, d_model))
    ln = jnp.tile(jnp.array([1.0, 0.0, 1.0, 0.0, 1.0, 0.0], jnp.float32)[None, :, None],
                  (n_layers, 1, d_model))
    norm = jnp.stack([jnp.ones((d_model,), jnp.float32),
                      jnp.zeros((d_model,), jnp.float32)], axis=0)
    return dict(w_emb=w_emb, b_emb=b_emb,
                w_self_qkv=w_self_qkv, b_self_qkv=b_self_qkv,
                w_self_o=w_self_o, b_self_o=b_self_o,
                w_cross_q=w_cross_q, b_cross_q=b_cross_q,
                w_cross_kv=w_cross_kv, b_cross_kv=b_cross_kv,
                w_cross_o=w_cross_o, b_cross_o=b_cross_o,
                w1=w1, b1=b1, w2=w2, b2=b2, ln=ln, norm=norm)


def init_generator_params(key, d_model, d_out, lane_pad=128):
    """Generator linear head, zero-padded along lanes to a lane-dense width."""
    w, b = _init_linear(key, d_model, (d_model, d_out), (1, d_out))
    d_pad = ((d_out + lane_pad - 1) // lane_pad) * lane_pad
    w_pad = jnp.zeros((d_model, d_pad), w.dtype).at[:, :d_out].set(w)
    b_pad = jnp.zeros((1, d_pad), b.dtype).at[:, :d_out].set(b)
    return dict(w_gen_pad=w_pad, b_gen_pad=b_pad, d_out=d_out)


# ----------------------------- demo -----------------------------

if __name__ == "__main__":
    B = 2            # batch
    T = 16           # sequence length n (shared by src and tgt in the reference)
    M2 = 16          # src feature dim = 2 * m
    S = 2            # number of sources -> tgt feature dim = s * 2 * m
    F_SRC, F_TGT = M2, S * M2
    D_MODEL, HEADS, D_FF = 128, 4, 256   # lane-dense d_model (128-wide vregs / MXU)
    N_ENC = N_DEC = 2

    key = jax.random.PRNGKey(0)
    k_src, k_tgt, k_enc, k_dec, k_gen = jax.random.split(key, 5)
    src = jax.random.normal(k_src, (B, T, F_SRC), jnp.float32)
    tgt = jax.random.normal(k_tgt, (B, T, F_TGT), jnp.float32)

    enc_p = init_encoder_params(k_enc, N_ENC, F_SRC, D_MODEL, D_FF)
    dec_p = init_decoder_params(k_dec, N_DEC, F_TGT, D_MODEL, D_FF)
    gen_p = init_generator_params(k_gen, D_MODEL, F_TGT)

    # batch_blocks=1 folds the whole batch into one block (best for v5e/v6e);
    # set batch_blocks=2 on v7x to shard batch halves across the two TensorCores.
    out = encoder_decoder_forward(src, tgt, enc_p, dec_p, gen_p, HEADS,
                                  batch_blocks=1)
    out = jax.block_until_ready(out)
    assert out.shape == (B, T, F_TGT), out.shape
    assert bool(jnp.all(jnp.isfinite(out)))
    print("KERNEL_OK")
</pallas_src>

<mosaic_0001>
module attributes {stable_mosaic.version = 11 : i64} {
  func.func @_encoder_stack_kernel(%arg0: i32, %arg1: i32, %arg2: memref<32x16xf32, #tpu.memory_space<vmem>>, %arg3: memref<32x128xf32, #tpu.memory_space<vmem>>, %arg4: memref<16x128xbf16, #tpu.memory_space<vmem>>, %arg5: memref<1x128xf32, #tpu.memory_space<vmem>>, %arg6: memref<1x128x384xbf16, #tpu.memory_space<vmem>>, %arg7: memref<1x1x384xf32, #tpu.memory_space<vmem>>, %arg8: memref<1x128x128xbf16, #tpu.memory_space<vmem>>, %arg9: memref<1x1x128xf32, #tpu.memory_space<vmem>>, %arg10: memref<1x128x256xbf16, #tpu.memory_space<vmem>>, %arg11: memref<1x1x256xf32, #tpu.memory_space<vmem>>, %arg12: memref<1x256x128xbf16, #tpu.memory_space<vmem>>, %arg13: memref<1x1x128xf32, #tpu.memory_space<vmem>>, %arg14: memref<1x4x128xf32, #tpu.memory_space<vmem>>, %arg15: memref<2x128xf32, #tpu.memory_space<vmem>>, %arg16: memref<32x128xf32, #tpu.memory_space<vmem>>) attributes {dimension_semantics = [#tpu.dimension_semantics<parallel>, #tpu.dimension_semantics<arbitrary>], iteration_bounds = array<i64: 1, 2>, scalar_prefetch = 0 : i64, scratch_operands = 0 : i64, tpu.core_type = #tpu.core_type<tc>, window_params = [{transform_indices = @transform_0, window_bounds = array<i64: 32, 16>}, {pipeline_mode = #tpu.pipeline_mode<synchronous>, transform_indices = @transform_1, window_bounds = array<i64: 32, 128>}, {pipeline_mode = #tpu.pipeline_mode<synchronous>, transform_indices = @transform_2, window_bounds = array<i64: 16, 128>}, {pipeline_mode = #tpu.pipeline_mode<synchronous>, transform_indices = @transform_3, window_bounds = array<i64: 1, 128>}, {transform_indices = @transform_4, window_bounds = array<i64: 1, 128, 384>}, {transform_indices = @transform_5, window_bounds = array<i64: 1, 1, 384>}, {transform_indices = @transform_6, window_bounds = array<i64: 1, 128, 128>}, {transform_indices = @transform_7, window_bounds = array<i64: 1, 1, 128>}, {transform_indices = @transform_8, window_bounds = array<i64: 1, 128, 256>}, {transform_indices = @transform_9, window_bounds = array<i64: 1, 1, 256>}, {transform_indices = @transform_10, window_bounds = array<i64: 1, 256, 128>}, {transform_indices = @transform_11, window_bounds = array<i64: 1, 1, 128>}, {transform_indices = @transform_12, window_bounds = array<i64: 1, 4, 128>}, {pipeline_mode = #tpu.pipeline_mode<synchronous>, transform_indices = @transform_13, window_bounds = array<i64: 2, 128>}, {transform_indices = @transform_14, window_bounds = array<i64: 32, 128>}]} {
    %c0_i32 = arith.constant 0 : i32
    %0 = arith.cmpi eq, %arg1, %c0_i32 : i32
    %1 = arith.extui %0 : i1 to i32
    %c0_i32_0 = arith.constant 0 : i32
    %2 = arith.cmpi ne, %1, %c0_i32_0 : i32
    scf.if %2 {
      %c0_72 = arith.constant 0 : index
      %c0_73 = arith.constant 0 : index
      %188 = vector.load %arg2[%c0_72, %c0_73] : memref<32x16xf32, #tpu.memory_space<vmem>>, vector<32x16xf32>
      %c0_74 = arith.constant 0 : index
      %c0_75 = arith.constant 0 : index
      %189 = vector.load %arg4[%c0_74, %c0_75] : memref<16x128xbf16, #tpu.memory_space<vmem>>, vector<16x128xbf16>
      %c0_76 = arith.constant 0 : index
      %c0_77 = arith.constant 0 : index
      %190 = vector.load %arg5[%c0_76, %c0_77] : memref<1x128xf32, #tpu.memory_space<vmem>>, vector<1x128xf32>
      %191 = arith.truncf %188 : vector<32x16xf32> to vector<32x16xbf16>
      %cst_78 = arith.constant dense<0.000000e+00> : vector<32x128xf32>
      %192 = tpu.matmul %191, %189, %cst_78 {dimension_numbers = #tpu.dot_dimension_numbers<[1], [0], [0], [1], [0, 0, 1, 1], [], []>} : vector<32x16xbf16>, vector<16x128xbf16>, vector<32x128xf32> -> vector<32x128xf32>
      %193 = vector.broadcast %190 : vector<1x128xf32> to vector<32x128xf32>
      %194 = arith.addf %192, %193 : vector<32x128xf32>
      %c0_79 = arith.constant 0 : index
      %c0_80 = arith.constant 0 : index
      %195 = vector.load %arg3[%c0_79, %c0_80] : memref<32x128xf32, #tpu.memory_space<vmem>>, vector<32x128xf32>
      %196 = arith.addf %194, %195 : vector<32x128xf32>
      %c0_81 = arith.constant 0 : index
      %c0_82 = arith.constant 0 : index
      %197 = vector.load %arg16[%c0_81, %c0_82] : memref<32x128xf32, #tpu.memory_space<vmem>>, vector<32x128xf32>
      tpu.vector_store %arg16[%c0_81, %c0_82], %196 {strides = array<i32>} : memref<32x128xf32, #tpu.memory_space<vmem>>, vector<32x128xf32>,
    } else {
    }
    %c0 = arith.constant 0 : index
    %c0_1 = arith.constant 0 : index
    %3 = vector.load %arg16[%c0, %c0_1] : memref<32x128xf32, #tpu.memory_space<vmem>>, vector<32x128xf32>
    %c0_2 = arith.constant 0 : index
    %c0_3 = arith.constant 0 : index
    %c0_4 = arith.constant 0 : index
    %4 = vector.load %arg14[%c0_2, %c0_3, %c0_4] : memref<1x4x128xf32, #tpu.memory_space<vmem>>, vector<1x1x128xf32>
    %5 = vector.shape_cast %4 : vector<1x1x128xf32> to vector<1x128xf32>
    %c0_5 = arith.constant 0 : index
    %c1 = arith.constant 1 : index
    %c0_6 = arith.constant 0 : index
    %6 = vector.load %arg14[%c0_5, %c1, %c0_6] : memref<1x4x128xf32, #tpu.memory_space<vmem>>, vector<1x1x128xf32>
    %7 = vector.shape_cast %6 : vector<1x1x128xf32> to vector<1x128xf32>
    %cst = arith.constant dense<0.000000e+00> : vector<32xf32>
    %8 = vector.multi_reduction <add>, %3, %cst [1] : vector<32x128xf32> to vector<32xf32>
    %9 = vector.shape_cast %8 : vector<32xf32> to vector<32x1xf32>
    %cst_7 = arith.constant 1.280000e+02 : f32
    %10 = vector.broadcast %cst_7 : f32 to vector<32x1xf32>
    %11 = arith.divf %9, %10 : vector<32x1xf32>
    %12 = vector.broadcast %11 : vector<32x1xf32> to vector<32x128xf32>
    %13 = arith.subf %3, %12 : vector<32x128xf32>
    %14 = arith.mulf %13, %13 : vector<32x128xf32>
    %cst_8 = arith.constant dense<0.000000e+00> : vector<32xf32>
    %15 = vector.multi_reduction <add>, %14, %cst_8 [1] : vector<32x128xf32> to vector<32xf32>
    %16 = vector.shape_cast %15 : vector<32xf32> to vector<32x1xf32>
    %cst_9 = arith.constant 0.00787401571 : f32
    %17 = vector.broadcast %cst_9 : f32 to vector<32x1xf32>
    %18 = arith.mulf %16, %17 : vector<32x1xf32>
    %19 = math.sqrt %18 : vector<32x1xf32>
    %cst_10 = arith.constant 9.99999997E-7 : f32
    %20 = vector.broadcast %cst_10 : f32 to vector<32x1xf32>
    %21 = arith.addf %19, %20 : vector<32x1xf32>
    %22 = tpu.reciprocal %21 : vector<32x1xf32> -> vector<32x1xf32>
    %23 = vector.broadcast %22 : vector<32x1xf32> to vector<32x128xf32>
    %24 = arith.mulf %13, %23 : vector<32x128xf32>
    %25 = vector.broadcast %5 : vector<1x128xf32> to vector<32x128xf32>
    %26 = arith.mulf %25, %24 : vector<32x128xf32>
    %27 = vector.broadcast %7 : vector<1x128xf32> to vector<32x128xf32>
    %28 = arith.addf %26, %27 : vector<32x128xf32>
    %c0_11 = arith.constant 0 : index
    %c0_12 = arith.constant 0 : index
    %c0_13 = arith.constant 0 : index
    %29 = vector.load %arg6[%c0_11, %c0_12, %c0_13] : memref<1x128x384xbf16, #tpu.memory_space<vmem>>, vector<1x128x384xbf16>
    %30 = vector.shape_cast %29 : vector<1x128x384xbf16> to vector<128x384xbf16>
    %c0_14 = arith.constant 0 : index
    %c0_15 = arith.constant 0 : index
    %c0_16 = arith.constant 0 : index
    %31 = vector.load %arg7[%c0_14, %c0_15, %c0_16] : memref<1x1x384xf32, #tpu.memory_space<vmem>>, vector<1x1x384xf32>
    %32 = vector.shape_cast %31 : vector<1x1x384xf32> to vector<1x384xf32>
    %33 = arith.truncf %28 : vector<32x128xf32> to vector<32x128xbf16>
    %cst_17 = arith.constant dense<0.000000e+00> : vector<32x384xf32>
    %34 = tpu.matmul %33, %30, %cst_17 {dimension_numbers = #tpu.dot_dimension_numbers<[1], [0], [0], [1], [0, 0, 1, 1], [], []>} : vector<32x128xbf16>, vector<128x384xbf16>, vector<32x384xf32> -> vector<32x384xf32>
    %35 = vector.broadcast %32 : vector<1x384xf32> to vector<32x384xf32>
    %36 = arith.addf %34, %35 : vector<32x384xf32>
    %37 = vector.extract_strided_slice %36 {offsets = [0, 0], sizes = [32, 128], strides = [1, 1]} : vector<32x384xf32> to vector<32x128xf32>
    %38 = vector.shape_cast %37 : vector<32x128xf32> to vector<2x16x128xf32>
    %39 = vector.extract_strided_slice %36 {offsets = [0, 128], sizes = [32, 128], strides = [1, 1]} : vector<32x384xf32> to vector<32x128xf32>
    %40 = vector.shape_cast %39 : vector<32x128xf32> to vector<2x16x128xf32>
    %41 = vector.extract_strided_slice %36 {offsets = [0, 256], sizes = [32, 128], strides = [1, 1]} : vector<32x384xf32> to vector<32x128xf32>
    %42 = vector.shape_cast %41 : vector<32x128xf32> to vector<2x16x128xf32>
    %c0_18 = arith.constant 0 : index
    %c0_19 = arith.constant 0 : index
    %c0_20 = arith.constant 0 : index
    %43 = vector.load %arg8[%c0_18, %c0_19, %c0_20] : memref<1x128x128xbf16, #tpu.memory_space<vmem>>, vector<1x128x128xbf16>
    %44 = vector.shape_cast %43 : vector<1x128x128xbf16> to vector<128x128xbf16>
    %c0_21 = arith.constant 0 : index
    %c0_22 = arith.constant 0 : index
    %c0_23 = arith.constant 0 : index
    %45 = vector.load %arg9[%c0_21, %c0_22, %c0_23] : memref<1x1x128xf32, #tpu.memory_space<vmem>>, vector<1x1x128xf32>
    %46 = vector.shape_cast %45 : vector<1x1x128xf32> to vector<1x128xf32>
    %47 = vector.extract_strided_slice %38 {offsets = [0, 0, 0], sizes = [2, 16, 32], strides = [1, 1, 1]} : vector<2x16x128xf32> to vector<2x16x32xf32>
    %48 = arith.truncf %47 : vector<2x16x32xf32> to vector<2x16x32xbf16>
    %49 = vector.extract_strided_slice %40 {offsets = [0, 0, 0], sizes = [2, 16, 32], strides = [1, 1, 1]} : vector<2x16x128xf32> to vector<2x16x32xf32>
    %50 = arith.truncf %49 : vector<2x16x32xf32> to vector<2x16x32xbf16>
    %51 = vector.extract_strided_slice %42 {offsets = [0, 0, 0], sizes = [2, 16, 32], strides = [1, 1, 1]} : vector<2x16x128xf32> to vector<2x16x32xf32>
    %52 = arith.truncf %51 : vector<2x16x32xf32> to vector<2x16x32xbf16>
    "tpu.trace_start"() <{level = 10 : i32, message = "bqd,bkd->bqk"}> : () -> ()
    %cst_24 = arith.constant dense<0.000000e+00> : vector<2x16x16xf32>
    %53 = tpu.matmul %48, %50, %cst_24 {dimension_numbers = #tpu.dot_dimension_numbers<[2], [2], [1], [1], [0, 0, 0, 1, 1, 1], [0], [0]>} : vector<2x16x32xbf16>, vector<2x16x32xbf16>, vector<2x16x16xf32> -> vector<2x16x16xf32>
    "tpu.trace_stop"() : () -> ()
    %cst_25 = arith.constant 0.176776692 : f32
    %54 = vector.broadcast %cst_25 : f32 to vector<2x16x16xf32>
    %55 = arith.mulf %53, %54 : vector<2x16x16xf32>
    %cst_26 = arith.constant dense<0xFF800000> : vector<2x16xf32>
    %56 = vector.multi_reduction <maximumf>, %55, %cst_26 [2] : vector<2x16x16xf32> to vector<2x16xf32>
    %57 = vector.shape_cast %56 : vector<2x16xf32> to vector<2x16x1xf32>
    %58 = vector.broadcast %57 : vector<2x16x1xf32> to vector<2x16x16xf32>
    %59 = arith.subf %55, %58 : vector<2x16x16xf32>
    %60 = math.exp %59 : vector<2x16x16xf32>
    %cst_27 = arith.constant dense<0.000000e+00> : vector<2x16xf32>
    %61 = vector.multi_reduction <add>, %60, %cst_27 [2] : vector<2x16x16xf32> to vector<2x16xf32>
    %62 = vector.shape_cast %61 : vector<2x16xf32> to vector<2x16x1xf32>
    %63 = tpu.reciprocal %62 {approx = true} : vector<2x16x1xf32> -> vector<2x16x1xf32>
    %64 = vector.broadcast %63 : vector<2x16x1xf32> to vector<2x16x16xf32>
    %65 = arith.mulf %60, %64 : vector<2x16x16xf32>
    %66 = arith.truncf %65 : vector<2x16x16xf32> to vector<2x16x16xbf16>
    "tpu.trace_start"() <{level = 10 : i32, message = "bqk,bkd->bqd"}> : () -> ()
    %cst_28 = arith.constant dense<0.000000e+00> : vector<2x16x32xf32>
    %67 = tpu.matmul %66, %52, %cst_28 {dimension_numbers = #tpu.dot_dimension_numbers<[2], [1], [1], [2], [0, 0, 0, 1, 1, 2], [0], [0]>} : vector<2x16x16xbf16>, vector<2x16x32xbf16>, vector<2x16x32xf32> -> vector<2x16x32xf32>
    "tpu.trace_stop"() : () -> ()
    %68 = vector.extract_strided_slice %38 {offsets = [0, 0, 32], sizes = [2, 16, 32], strides = [1, 1, 1]} : vector<2x16x128xf32> to vector<2x16x32xf32>
    %69 = arith.truncf %68 : vector<2x16x32xf32> to vector<2x16x32xbf16>
    %70 = vector.extract_strided_slice %40 {offsets = [0, 0, 32], sizes = [2, 16, 32], strides = [1, 1, 1]} : vector<2x16x128xf32> to vector<2x16x32xf32>
    %71 = arith.truncf %70 : vector<2x16x32xf32> to vector<2x16x32xbf16>
    %72 = vector.extract_strided_slice %42 {offsets = [0, 0, 32], sizes = [2, 16, 32], strides = [1, 1, 1]} : vector<2x16x128xf32> to vector<2x16x32xf32>
    %73 = arith.truncf %72 : vector<2x16x32xf32> to vector<2x16x32xbf16>
    "tpu.trace_start"() <{level = 10 : i32, message = "bqd,bkd->bqk"}> : () -> ()
    %cst_29 = arith.constant dense<0.000000e+00> : vector<2x16x16xf32>
    %74 = tpu.matmul %69, %71, %cst_29 {dimension_numbers = #tpu.dot_dimension_numbers<[2], [2], [1], [1], [0, 0, 0, 1, 1, 1], [0], [0]>} : vector<2x16x32xbf16>, vector<2x16x32xbf16>, vector<2x16x16xf32> -> vector<2x16x16xf32>
    "tpu.trace_stop"() : () -> ()
    %cst_30 = arith.constant 0.176776692 : f32
    %75 = vector.broadcast %cst_30 : f32 to vector<2x16x16xf32>
    %76 = arith.mulf %74, %75 : vector<2x16x16xf32>
    %cst_31 = arith.constant dense<0xFF800000> : vector<2x16xf32>
    %77 = vector.multi_reduction <maximumf>, %76, %cst_31 [2] : vector<2x16x16xf32> to vector<2x16xf32>
    %78 = vector.shape_cast %77 : vector<2x16xf32> to vector<2x16x1xf32>
    %79 = vector.broadcast %78 : vector<2x16x1xf32> to vector<2x16x16xf32>
    %80 = arith.subf %76, %79 : vector<2x16x16xf32>
    %81 = math.exp %80 : vector<2x16x16xf32>
    %cst_32 = arith.constant dense<0.000000e+00> : vector<2x16xf32>
    %82 = vector.multi_reduction <add>, %81, %cst_32 [2] : vector<2x16x16xf32> to vector<2x16xf32>
    %83 = vector.shape_cast %82 : vector<2x16xf32> to vector<2x16x1xf32>
    %84 = tpu.reciprocal %83 {approx = true} : vector<2x16x1xf32> -> vector<2x16x1xf32>
    %85 = vector.broadcast %84 : vector<2x16x1xf32> to vector<2x16x16xf32>
    %86 = arith.mulf %81, %85 : vector<2x16x16xf32>
    %87 = arith.truncf %86 : vector<2x16x16xf32> to vector<2x16x16xbf16>
    "tpu.trace_start"() <{level = 10 : i32, message = "bqk,bkd->bqd"}> : () -> ()
    %cst_33 = arith.constant dense<0.000000e+00> : vector<2x16x32xf32>
    %88 = tpu.matmul %87, %73, %cst_33 {dimension_numbers = #tpu.dot_dimension_numbers<[2], [1], [1], [2], [0, 0, 0, 1, 1, 2], [0], [0]>} : vector<2x16x16xbf16>, vector<2x16x32xbf16>, vector<2x16x32xf32> -> vector<2x16x32xf32>
    "tpu.trace_stop"() : () -> ()
    %89 = vector.extract_strided_slice %38 {offsets = [0, 0, 64], sizes = [2, 16, 32], strides = [1, 1, 1]} : vector<2x16x128xf32> to vector<2x16x32xf32>
    %90 = arith.truncf %89 : vector<2x16x32xf32> to vector<2x16x32xbf16>
    %91 = vector.extract_strided_slice %40 {offsets = [0, 0, 64], sizes = [2, 16, 32], strides = [1, 1, 1]} : vector<2x16x128xf32> to vector<2x16x32xf32>
    %92 = arith.truncf %91 : vector<2x16x32xf32> to vector<2x16x32xbf16>
    %93 = vector.extract_strided_slice %42 {offsets = [0, 0, 64], sizes = [2, 16, 32], strides = [1, 1, 1]} : vector<2x16x128xf32> to vector<2x16x32xf32>
    %94 = arith.truncf %93 : vector<2x16x32xf32> to vector<2x16x32xbf16>
    "tpu.trace_start"() <{level = 10 : i32, message = "bqd,bkd->bqk"}> : () -> ()
    %cst_34 = arith.constant dense<0.000000e+00> : vector<2x16x16xf32>
    %95 = tpu.matmul %90, %92, %cst_34 {dimension_numbers = #tpu.dot_dimension_numbers<[2], [2], [1], [1], [0, 0, 0, 1, 1, 1], [0], [0]>} : vector<2x16x32xbf16>, vector<2x16x32xbf16>, vector<2x16x16xf32> -> vector<2x16x16xf32>
    "tpu.trace_stop"() : () -> ()
    %cst_35 = arith.constant 0.176776692 : f32
    %96 = vector.broadcast %cst_35 : f32 to vector<2x16x16xf32>
    %97 = arith.mulf %95, %96 : vector<2x16x16xf32>
    %cst_36 = arith.constant dense<0xFF800000> : vector<2x16xf32>
    %98 = vector.multi_reduction <maximumf>, %97, %cst_36 [2] : vector<2x16x16xf32> to vector<2x16xf32>
    %99 = vector.shape_cast %98 : vector<2x16xf32> to vector<2x16x1xf32>
    %100 = vector.broadcast %99 : vector<2x16x1xf32> to vector<2x16x16xf32>
    %101 = arith.subf %97, %100 : vector<2x16x16xf32>
    %102 = math.exp %101 : vector<2x16x16xf32>
    %cst_37 = arith.constant dense<0.000000e+00> : vector<2x16xf32>
    %103 = vector.multi_reduction <add>, %102, %cst_37 [2] : vector<2x16x16xf32> to vector<2x16xf32>
    %104 = vector.shape_cast %103 : vector<2x16xf32> to vector<2x16x1xf32>
    %105 = tpu.reciprocal %104 {approx = true} : vector<2x16x1xf32> -> vector<2x16x1xf32>
    %106 = vector.broadcast %105 : vector<2x16x1xf32> to vector<2x16x16xf32>
    %107 = arith.mulf %102, %106 : vector<2x16x16xf32>
    %108 = arith.truncf %107 : vector<2x16x16xf32> to vector<2x16x16xbf16>
    "tpu.trace_start"() <{level = 10 : i32, message = "bqk,bkd->bqd"}> : () -> ()
    %cst_38 = arith.constant dense<0.000000e+00> : vector<2x16x32xf32>
    %109 = tpu.matmul %108, %94, %cst_38 {dimension_numbers = #tpu.dot_dimension_numbers<[2], [1], [1], [2], [0, 0, 0, 1, 1, 2], [0], [0]>} : vector<2x16x16xbf16>, vector<2x16x32xbf16>, vector<2x16x32xf32> -> vector<2x16x32xf32>
    "tpu.trace_stop"() : () -> ()
    %110 = vector.extract_strided_slice %38 {offsets = [0, 0, 96], sizes = [2, 16, 32], strides = [1, 1, 1]} : vector<2x16x128xf32> to vector<2x16x32xf32>
    %111 = arith.truncf %110 : vector<2x16x32xf32> to vector<2x16x32xbf16>
    %112 = vector.extract_strided_slice %40 {offsets = [0, 0, 96], sizes = [2, 16, 32], strides = [1, 1, 1]} : vector<2x16x128xf32> to vector<2x16x32xf32>
    %113 = arith.truncf %112 : vector<2x16x32xf32> to vector<2x16x32xbf16>
    %114 = vector.extract_strided_slice %42 {offsets = [0, 0, 96], sizes = [2, 16, 32], strides = [1, 1, 1]} : vector<2x16x128xf32> to vector<2x16x32xf32>
    %115 = arith.truncf %114 : vector<2x16x32xf32> to vector<2x16x32xbf16>
    "tpu.trace_start"() <{level = 10 : i32, message = "bqd,bkd->bqk"}> : () -> ()
    %cst_39 = arith.constant dense<0.000000e+00> : vector<2x16x16xf32>
    %116 = tpu.matmul %111, %113, %cst_39 {dimension_numbers = #tpu.dot_dimension_numbers<[2], [2], [1], [1], [0, 0, 0, 1, 1, 1], [0], [0]>} : vector<2x16x32xbf16>, vector<2x16x32xbf16>, vector<2x16x16xf32> -> vector<2x16x16xf32>
    "tpu.trace_stop"() : () -> ()
    %cst_40 = arith.constant 0.176776692 : f32
    %117 = vector.broadcast %cst_40 : f32 to vector<2x16x16xf32>
    %118 = arith.mulf %116, %117 : vector<2x16x16xf32>
    %cst_41 = arith.constant dense<0xFF800000> : vector<2x16xf32>
    %119 = vector.multi_reduction <maximumf>, %118, %cst_41 [2] : vector<2x16x16xf32> to vector<2x16xf32>
    %120 = vector.shape_cast %119 : vector<2x16xf32> to vector<2x16x1xf32>
    %121 = vector.broadcast %120 : vector<2x16x1xf32> to vector<2x16x16xf32>
    %122 = arith.subf %118, %121 : vector<2x16x16xf32>
    %123 = math.exp %122 : vector<2x16x16xf32>
    %cst_42 = arith.constant dense<0.000000e+00> : vector<2x16xf32>
    %124 = vector.multi_reduction <add>, %123, %cst_42 [2] : vector<2x16x16xf32> to vector<2x16xf32>
    %125 = vector.shape_cast %124 : vector<2x16xf32> to vector<2x16x1xf32>
    %126 = tpu.reciprocal %125 {approx = true} : vector<2x16x1xf32> -> vector<2x16x1xf32>
    %127 = vector.broadcast %126 : vector<2x16x1xf32> to vector<2x16x16xf32>
    %128 = arith.mulf %123, %127 : vector<2x16x16xf32>
    %129 = arith.truncf %128 : vector<2x16x16xf32> to vector<2x16x16xbf16>
    "tpu.trace_start"() <{level = 10 : i32, message = "bqk,bkd->bqd"}> : () -> ()
    %cst_43 = arith.constant dense<0.000000e+00> : vector<2x16x32xf32>
    %130 = tpu.matmul %129, %115, %cst_43 {dimension_numbers = #tpu.dot_dimension_numbers<[2], [1], [1], [2], [0, 0, 0, 1, 1, 2], [0], [0]>} : vector<2x16x16xbf16>, vector<2x16x32xbf16>, vector<2x16x32xf32> -> vector<2x16x32xf32>
    "tpu.trace_stop"() : () -> ()
    %131 = tpu.concatenate %67, %88, %109, %130 in 2 : vector<2x16x32xf32>, vector<2x16x32xf32>, vector<2x16x32xf32>, vector<2x16x32xf32> -> vector<2x16x128xf32>
    %132 = vector.shape_cast %131 : vector<2x16x128xf32> to vector<32x128xf32>
    %133 = arith.truncf %132 : vector<32x128xf32> to vector<32x128xbf16>
    %cst_44 = arith.constant dense<0.000000e+00> : vector<32x128xf32>
    %134 = tpu.matmul %133, %44, %cst_44 {dimension_numbers = #tpu.dot_dimension_numbers<[1], [0], [0], [1], [0, 0, 1, 1], [], []>} : vector<32x128xbf16>, vector<128x128xbf16>, vector<32x128xf32> -> vector<32x128xf32>
    %135 = vector.broadcast %46 : vector<1x128xf32> to vector<32x128xf32>
    %136 = arith.addf %134, %135 : vector<32x128xf32>
    %137 = arith.addf %3, %136 : vector<32x128xf32>
    %c0_45 = arith.constant 0 : index
    %c2 = arith.constant 2 : index
    %c0_46 = arith.constant 0 : index
    %138 = vector.load %arg14[%c0_45, %c2, %c0_46] : memref<1x4x128xf32, #tpu.memory_space<vmem>>, vector<1x1x128xf32>
    %139 = vector.shape_cast %138 : vector<1x1x128xf32> to vector<1x128xf32>
    %c0_47 = arith.constant 0 : index
    %c3 = arith.constant 3 : index
    %c0_48 = arith.constant 0 : index
    %140 = vector.load %arg14[%c0_47, %c3, %c0_48] : memref<1x4x128xf32, #tpu.memory_space<vmem>>, vector<1x1x128xf32>
    %141 = vector.shape_cast %140 : vector<1x1x128xf32> to vector<1x128xf32>
    %cst_49 = arith.constant dense<0.000000e+00> : vector<32xf32>
    %142 = vector.multi_reduction <add>, %137, %cst_49 [1] : vector<32x128xf32> to vector<32xf32>
    %143 = vector.shape_cast %142 : vector<32xf32> to vector<32x1xf32>
    %cst_50 = arith.constant 1.280000e+02 : f32
    %144 = vector.broadcast %cst_50 : f32 to vector<32x1xf32>
    %145 = arith.divf %143, %144 : vector<32x1xf32>
    %146 = vector.broadcast %145 : vector<32x1xf32> to vector<32x128xf32>
    %147 = arith.subf %137, %146 : vector<32x128xf32>
    %148 = arith.mulf %147, %147 : vector<32x128xf32>
    %cst_51 = arith.constant dense<0.000000e+00> : vector<32xf32>
    %149 = vector.multi_reduction <add>, %148, %cst_51 [1] : vector<32x128xf32> to vector<32xf32>
    %150 = vector.shape_cast %149 : vector<32xf32> to vector<32x1xf32>
    %cst_52 = arith.constant 0.00787401571 : f32
    %151 = vector.broadcast %cst_52 : f32 to vector<32x1xf32>
    %152 = arith.mulf %150, %151 : vector<32x1xf32>
    %153 = math.sqrt %152 : vector<32x1xf32>
    %cst_53 = arith.constant 9.99999997E-7 : f32
    %154 = vector.broadcast %cst_53 : f32 to vector<32x1xf32>
    %155 = arith.addf %153, %154 : vector<32x1xf32>
    %156 = tpu.reciprocal %155 : vector<32x1xf32> -> vector<32x1xf32>
    %157 = vector.broadcast %156 : vector<32x1xf32> to vector<32x128xf32>
    %158 = arith.mulf %147, %157 : vector<32x128xf32>
    %159 = vector.broadcast %139 : vector<1x128xf32> to vector<32x128xf32>
    %160 = arith.mulf %159, %158 : vector<32x128xf32>
    %161 = vector.broadcast %141 : vector<1x128xf32> to vector<32x128xf32>
    %162 = arith.addf %160, %161 : vector<32x128xf32>
    %c0_54 = arith.constant 0 : index
    %c0_55 = arith.constant 0 : index
    %c0_56 = arith.constant 0 : index
    %163 = vector.load %arg10[%c0_54, %c0_55, %c0_56] : memref<1x128x256xbf16, #tpu.memory_space<vmem>>, vector<1x128x256xbf16>
    %164 = vector.shape_cast %163 : vector<1x128x256xbf16> to vector<128x256xbf16>
    %c0_57 = arith.constant 0 : index
    %c0_58 = arith.constant 0 : index
    %c0_59 = arith.constant 0 : index
    %165 = vector.load %arg11[%c0_57, %c0_58, %c0_59] : memref<1x1x256xf32, #tpu.memory_space<vmem>>, vector<1x1x256xf32>
    %166 = vector.shape_cast %165 : vector<1x1x256xf32> to vector<1x256xf32>
    %167 = arith.truncf %162 : vector<32x128xf32> to vector<32x128xbf16>
    %cst_60 = arith.constant dense<0.000000e+00> : vector<32x256xf32>
    %168 = tpu.matmul %167, %164, %cst_60 {dimension_numbers = #tpu.dot_dimension_numbers<[1], [0], [0], [1], [0, 0, 1, 1], [], []>} : vector<32x128xbf16>, vector<128x256xbf16>, vector<32x256xf32> -> vector<32x256xf32>
    %169 = vector.broadcast %166 : vector<1x256xf32> to vector<32x256xf32>
    %170 = arith.addf %168, %169 : vector<32x256xf32>
    %cst_61 = arith.constant 0.000000e+00 : f32
    %171 = vector.broadcast %cst_61 : f32 to vector<32x256xf32>
    %172 = arith.maximumf %170, %171 : vector<32x256xf32>
    %c0_62 = arith.constant 0 : index
    %c0_63 = arith.constant 0 : index
    %c0_64 = arith.constant 0 : index
    %173 = vector.load %arg12[%c0_62, %c0_63, %c0_64] : memref<1x256x128xbf16, #tpu.memory_space<vmem>>, vector<1x256x128xbf16>
    %174 = vector.shape_cast %173 : vector<1x256x128xbf16> to vector<256x128xbf16>
    %c0_65 = arith.constant 0 : index
    %c0_66 = arith.constant 0 : index
    %c0_67 = arith.constant 0 : index
    %175 = vector.load %arg13[%c0_65, %c0_66, %c0_67] : memref<1x1x128xf32, #tpu.memory_space<vmem>>, vector<1x1x128xf32>
    %176 = vector.shape_cast %175 : vector<1x1x128xf32> to vector<1x128xf32>
    %177 = arith.truncf %172 : vector<32x256xf32> to vector<32x256xbf16>
    %cst_68 = arith.constant dense<0.000000e+00> : vector<32x128xf32>
    %178 = tpu.matmul %177, %174, %cst_68 {dimension_numbers = #tpu.dot_dimension_numbers<[1], [0], [0], [1], [0, 0, 1, 1], [], []>} : vector<32x256xbf16>, vector<256x128xbf16>, vector<32x128xf32> -> vector<32x128xf32>
    %179 = vector.broadcast %176 : vector<1x128xf32> to vector<32x128xf32>
    %180 = arith.addf %178, %179 : vector<32x128xf32>
    %181 = arith.addf %137, %180 : vector<32x128xf32>
    %c1_i32 = arith.constant 1 : i32
    %182 = arith.cmpi ne, %arg1, %c1_i32 : i32
    %183 = arith.extui %182 : i1 to i32
    %c0_i32_69 = arith.constant 0 : i32
    %184 = arith.cmpi ne, %183, %c0_i32_69 : i32
    scf.if %184 {
      %c0_72 = arith.constant 0 : index
      %c0_73 = arith.constant 0 : index
      %188 = vector.load %arg16[%c0_72, %c0_73] : memref<32x128xf32, #tpu.memory_space<vmem>>, vector<32x128xf32>
      tpu.vector_store %arg16[%c0_72, %c0_73], %181 {strides = array<i32>} : memref<32x128xf32, #tpu.memory_space<vmem>>, vector<32x128xf32>,
    } else {
    }
    %c1_i32_70 = arith.constant 1 : i32
    %185 = arith.cmpi eq, %arg1, %c1_i32_70 : i32
    %186 = arith.extui %185 : i1 to i32
    %c0_i32_71 = arith.constant 0 : i32
    %187 = arith.cmpi ne, %186, %c0_i32_71 : i32
    scf.if %187 {
      %c0_72 = arith.constant 0 : index
      %c0_73 = arith.constant 0 : index
      %188 = vector.load %arg15[%c0_72, %c0_73] : memref<2x128xf32, #tpu.memory_space<vmem>>, vector<1x128xf32>
      %c1_74 = arith.constant 1 : index
      %c0_75 = arith.constant 0 : index
      %189 = vector.load %arg15[%c1_74, %c0_75] : memref<2x128xf32, #tpu.memory_space<vmem>>, vector<1x128xf32>
      %cst_76 = arith.constant dense<0.000000e+00> : vector<32xf32>
      %190 = vector.multi_reduction <add>, %181, %cst_76 [1] : vector<32x128xf32> to vector<32xf32>
      %191 = vector.shape_cast %190 : vector<32xf32> to vector<32x1xf32>
      %cst_77 = arith.constant 1.280000e+02 : f32
      %192 = vector.broadcast %cst_77 : f32 to vector<32x1xf32>
      %193 = arith.divf %191, %192 : vector<32x1xf32>
      %194 = vector.broadcast %193 : vector<32x1xf32> to vector<32x128xf32>
      %195 = arith.subf %181, %194 : vector<32x128xf32>
      %196 = arith.mulf %195, %195 : vector<32x128xf32>
      %cst_78 = arith.constant dense<0.000000e+00> : vector<32xf32>
      %197 = vector.multi_reduction <add>, %196, %cst_78 [1] : vector<32x128xf32> to vector<32xf32>
      %198 = vector.shape_cast %197 : vector<32xf32> to vector<32x1xf32>
      %cst_79 = arith.constant 0.00787401571 : f32
      %199 = vector.broadcast %cst_79 : f32 to vector<32x1xf32>
      %200 = arith.mulf %198, %199 : vector<32x1xf32>
      %201 = math.sqrt %200 : vector<32x1xf32>
      %cst_80 = arith.constant 9.99999997E-7 : f32
      %202 = vector.broadcast %cst_80 : f32 to vector<32x1xf32>
      %203 = arith.addf %201, %202 : vector<32x1xf32>
      %204 = tpu.reciprocal %203 : vector<32x1xf32> -> vector<32x1xf32>
      %205 = vector.broadcast %204 : vector<32x1xf32> to vector<32x128xf32>
      %206 = arith.mulf %195, %205 : vector<32x128xf32>
      %207 = vector.broadcast %188 : vector<1x128xf32> to vector<32x128xf32>
      %208 = arith.mulf %207, %206 : vector<32x128xf32>
      %209 = vector.broadcast %189 : vector<1x128xf32> to vector<32x128xf32>
      %210 = arith.addf %208, %209 : vector<32x128xf32>
      %c0_81 = arith.constant 0 : index
      %c0_82 = arith.constant 0 : index
      %211 = vector.load %arg16[%c0_81, %c0_82] : memref<32x128xf32, #tpu.memory_space<vmem>>, vector<32x128xf32>
      tpu.vector_store %arg16[%c0_81, %c0_82], %210 {strides = array<i32>} : memref<32x128xf32, #tpu.memory_space<vmem>>, vector<32x128xf32>,
    } else {
    }
    return
  }
  func.func @transform_0(%arg0: i32, %arg1: i32) -> (i32, i32) {
    %c0_i32 = arith.constant 0 : i32
    %c0_i32_0 = arith.constant 0 : i32
    return %arg0, %c0_i32 : i32, i32
  }
  func.func @transform_1(%arg0: i32, %arg1: i32) -> (i32, i32) {
    %c0_i32 = arith.constant 0 : i32
    %c0_i32_0 = arith.constant 0 : i32
    %c0_i32_1 = arith.constant 0 : i32
    return %c0_i32, %c0_i32_0 : i32, i32
  }
  func.func @transform_2(%arg0: i32, %arg1: i32) -> (i32, i32) {
    %c0_i32 = arith.constant 0 : i32
    %c0_i32_0 = arith.constant 0 : i32
    %c0_i32_1 = arith.constant 0 : i32
    return %c0_i32, %c0_i32_0 : i32, i32
  }
  func.func @transform_3(%arg0: i32, %arg1: i32) -> (i32, i32) {
    %c0_i32 = arith.constant 0 : i32
    %c0_i32_0 = arith.constant 0 : i32
    %c0_i32_1 = arith.constant 0 : i32
    return %c0_i32, %c0_i32_0 : i32, i32
  }
  func.func @transform_4(%arg0: i32, %arg1: i32) -> (i32, i32, i32) {
    %c0_i32 = arith.constant 0 : i32
    %c0_i32_0 = arith.constant 0 : i32
    %c0_i32_1 = arith.constant 0 : i32
    return %arg1, %c0_i32, %c0_i32_0 : i32, i32, i32
  }
  func.func @transform_5(%arg0: i32, %arg1: i32) -> (i32, i32, i32) {
    %c0_i32 = arith.constant 0 : i32
    %c0_i32_0 = arith.constant 0 : i32
    %c0_i32_1 = arith.constant 0 : i32
    return %arg1, %c0_i32, %c0_i32_0 : i32, i32, i32
  }
  func.func @transform_6(%arg0: i32, %arg1: i32) -> (i32, i32, i32) {
    %c0_i32 = arith.constant 0 : i32
    %c0_i32_0 = arith.constant 0 : i32
    %c0_i32_1 = arith.constant 0 : i32
    return %arg1, %c0_i32, %c0_i32_0 : i32, i32, i32
  }
  func.func @transform_7(%arg0: i32, %arg1: i32) -> (i32, i32, i32) {
    %c0_i32 = arith.constant 0 : i32
    %c0_i32_0 = arith.constant 0 : i32
    %c0_i32_1 = arith.constant 0 : i32
    return %arg1, %c0_i32, %c0_i32_0 : i32, i32, i32
  }
  func.func @transform_8(%arg0: i32, %arg1: i32) -> (i32, i32, i32) {
    %c0_i32 = arith.constant 0 : i32
    %c0_i32_0 = arith.constant 0 : i32
    %c0_i32_1 = arith.constant 0 : i32
    return %arg1, %c0_i32, %c0_i32_0 : i32, i32, i32
  }
  func.func @transform_9(%arg0: i32, %arg1: i32) -> (i32, i32, i32) {
    %c0_i32 = arith.constant 0 : i32
    %c0_i32_0 = arith.constant 0 : i32
    %c0_i32_1 = arith.constant 0 : i32
    return %arg1, %c0_i32, %c0_i32_0 : i32, i32, i32
  }
  func.func @transform_10(%arg0: i32, %arg1: i32) -> (i32, i32, i32) {
    %c0_i32 = arith.constant 0 : i32
    %c0_i32_0 = arith.constant 0 : i32
    %c0_i32_1 = arith.constant 0 : i32
    return %arg1, %c0_i32, %c0_i32_0 : i32, i32, i32
  }
  func.func @transform_11(%arg0: i32, %arg1: i32) -> (i32, i32, i32) {
    %c0_i32 = arith.constant 0 : i32
    %c0_i32_0 = arith.constant 0 : i32
    %c0_i32_1 = arith.constant 0 : i32
    return %arg1, %c0_i32, %c0_i32_0 : i32, i32, i32
  }
  func.func @transform_12(%arg0: i32, %arg1: i32) -> (i32, i32, i32) {
    %c0_i32 = arith.constant 0 : i32
    %c0_i32_0 = arith.constant 0 : i32
    %c0_i32_1 = arith.constant 0 : i32
    return %arg1, %c0_i32, %c0_i32_0 : i32, i32, i32
  }
  func.func @transform_13(%arg0: i32, %arg1: i32) -> (i32, i32) {
    %c0_i32 = arith.constant 0 : i32
    %c0_i32_0 = arith.constant 0 : i32
    %c0_i32_1 = arith.constant 0 : i32
    return %c0_i32, %c0_i32_0 : i32, i32
  }
  func.func @transform_14(%arg0: i32, %arg1: i32) -> (i32, i32) {
    %c0_i32 = arith.constant 0 : i32
    %c0_i32_0 = arith.constant 0 : i32
    return %arg0, %c0_i32 : i32, i32
  }
}

</mosaic_0001>

<llo_original>
// kernel: tpu_custom_call.1
$region0: #{tpu_custom_call.1}
  #allocation0 [shape = 'u32[]', space=smem, size = 0x4, offset = 0x4, fixed_abs, tag = 'smem constant byte address 0x4 - core index']
  #allocation1 [shape = 'u32[72,128]{1,0:T(1,128)}', space=vmem, size = 0x9000, scoped, tag = 'internal scratch']
  %s0 = inlined_call_operand.vmem [shape: f32[32,16], index: 0, kind: input, shape index: {}]
  %s1 = inlined_call_operand.vmem [shape: f32[32,128], index: 1, kind: input, shape index: {}]
  %s2 = inlined_call_operand.vmem [shape: bf16[16,128], index: 2, kind: input, shape index: {}]
  %s3 = inlined_call_operand.hbm [shape: f32[1,128], index: 3, kind: input, shape index: {}]
  %s4 = inlined_call_operand.hbm [shape: bf16[2,128,384], index: 4, kind: input, shape index: {}]
  %s5 = inlined_call_operand.hbm [shape: f32[2,1,384], index: 5, kind: input, shape index: {}]
  %s6 = inlined_call_operand.hbm [shape: bf16[2,128,128], index: 6, kind: input, shape index: {}]
  %s7 = inlined_call_operand.vmem [shape: f32[2,1,128], index: 7, kind: input, shape index: {}]
  %s8 = inlined_call_operand.hbm [shape: bf16[2,128,256], index: 8, kind: input, shape index: {}]
  %s9 = inlined_call_operand.vmem [shape: f32[2,1,256], index: 9, kind: input, shape index: {}]
  %s10 = inlined_call_operand.hbm [shape: bf16[2,256,128], index: 10, kind: input, shape index: {}]
  %s11 = inlined_call_operand.vmem [shape: f32[2,1,128], index: 11, kind: input, shape index: {}]
  %s12 = inlined_call_operand.vmem [shape: f32[2,4,128], index: 12, kind: input, shape index: {}]
  %s13 = inlined_call_operand.vmem [shape: f32[2,128], index: 13, kind: input, shape index: {}]
  %s14 = inlined_call_operand.hbm [shape: f32[32,128], index: 14, kind: output, shape index: {}]
  %s15 = sld [smem:[#allocation0]]
  $region125: #{tpu_custom_call.1} parent=0
    _
  %s17 = ssub.s32 1, %s15
  %s18 = scalar_select 0, %s17, %s15
  $region1: #{tpu_custom_call.1} parent=0
    #allocation2 [shape = 'u8[512]{0}', space=vmem, size = 0x400, scoped, tag = 'input window, operand 3, single buffered']
    #allocation3 [shape = 's32[2]{0}', space=sflag, size = 0x8, scoped, tag = 'scoped memory for tpu_custom_call.1']
    #allocation4 [shape = 's32[2]{0}', space=sflag, size = 0x8, scoped, tag = 'scoped memory for tpu_custom_call.1']
    #allocation5 [shape = 'u8[196608]{0}', space=vmem, size = 0x30000, scoped, tag = 'input window, operand 4']
    #allocation6 [shape = 's32[2]{0}', space=sflag, size = 0x8, scoped, tag = 'scoped memory for tpu_custom_call.1']
    #allocation7 [shape = 'u8[3072]{0}', space=vmem, size = 0xc00, scoped, tag = 'input window, operand 5']
    #allocation8 [shape = 'u8[65536]{0}', space=vmem, size = 0x10000, scoped, tag = 'input window, operand 6']
    #allocation9 [shape = 's32[2]{0}', space=sflag, size = 0x8, scoped, tag = 'scoped memory for tpu_custom_call.1']
    #allocation10 [shape = 'u8[131072]{0}', space=vmem, size = 0x20000, scoped, tag = 'input window, operand 8']
    #allocation11 [shape = 'u8[131072]{0}', space=vmem, size = 0x20000, scoped, tag = 'input window, operand 10']
    #allocation12 [shape = 's32[2]{0}', space=sflag, size = 0x8, scoped, tag = 'scoped memory for tpu_custom_call.1']
    #allocation13 [shape = 'u8[16384]{0}', space=vmem, size = 0x4000, scoped, tag = 'output window, operand 0, single buffered']
    %19 = vsyncpa [#allocation3], 0
    %20 = vsyncpa [#allocation6], 0
    %s21 = scalar_lea.sflag [#allocation6], 1
    %22 = vsyncpa %s21, 0
    %23 = vsyncpa [#allocation9], 0
    %s24 = scalar_lea.sflag [#allocation9], 1
    %25 = vsyncpa %s24, 0
    %26 = vsyncpa [#allocation12], 0
    %s27 = scalar_lea.sflag [#allocation12], 1
    %28 = vsyncpa %s27, 0
    %29 = vsyncpa [#allocation4], 0
    loop: start=0, step=1, limit=4
    $region2: #{tpu_custom_call.1} parent=1 // loop_pre_header
      _
    $region3: #{tpu_custom_call.1} parent=1 // loop_header
      %s31 = sphi 0, %s35
      %p32 = scmp.ge.s32.totalorder %s31, 4
      %s38 = sphi 0, %s50
      %s39 = sphi 0, %s46
      %s40 = sphi 0, %s38
      %s41 = sphi 0, %s39
      %s42 = sphi 0, %s40
      %s43 = sphi 0, %s41
      %s53 = sphi 0, %s55
      %s56 = sphi 0, %s53
      %s57 = sphi 0, %s56
      %s73 = sphi 0, %s57
      %s77 = sphi 0, %s77
      %s79 = sphi 0, %s77
      %s80 = sphi 0, %s79
      %s94 = sphi 0, %s80
      %s98 = sphi 0, %s98
      %s100 = sphi 0, %s98
      %s101 = sphi 0, %s100
      %s115 = sphi 0, %s101
      %s119 = sphi 0, %s119
      %s121 = sphi 0, %s119
      %s122 = sphi 0, %s121
      %s136 = sphi 0, %s122
      %s142 = sphi 0, %s144
      %s145 = sphi 0, %s142
      %s146 = sphi 0, %s145
      %s162 = sphi 0, %s146
      %s168 = sphi 0, %s170
      %s171 = sphi 0, %s168
      %s172 = sphi 0, %s171
      %s188 = sphi 0, %s172
      %s194 = sphi 0, %s196
      %s197 = sphi 0, %s194
      %s198 = sphi 0, %s197
      %s214 = sphi 0, %s198
      %s220 = sphi 0, %s222
      %s223 = sphi 0, %s220
      %s224 = sphi 0, %s223
      %s240 = sphi 0, %s224
      %s246 = sphi 0, %s248
      %s249 = sphi 0, %s246
      %s250 = sphi 0, %s249
      %s266 = sphi 0, %s250
      %s272 = sphi 0, %s274
      %s275 = sphi 0, %s272
      %s276 = sphi 0, %s275
      %s292 = sphi 0, %s276
      %s298 = sphi 0, %s300
      %s301 = sphi 0, %s298
      %s302 = sphi 0, %s301
      %s318 = sphi 0, %s302
      %s324 = sphi 0, %s326
      %s327 = sphi 0, %s324
      %s328 = sphi 0, %s327
      %s344 = sphi 0, %s328
      %s350 = sphi 0, %s352
      %s353 = sphi 0, %s350
      %s354 = sphi 0, %s353
      %s370 = sphi 0, %s354
      %s374 = sphi 0, %s374
      %s376 = sphi 0, %s374
      %s377 = sphi 0, %s376
      %s391 = sphi 0, %s377
      %s397 = sphi 0, %s399
      %s400 = sphi 0, %s397
      %s401 = sphi 0, %s400
      %s417 = sphi 0, %s401
    $region4: #{tpu_custom_call.1} parent=1 // loop_header_branch
      %34 = sbr.rel (%p32) target = $region8
    $region5: #{tpu_custom_call.1} parent=1 // loop_body
      %s36 = ssub.s32 %s31, 1
      %s37 = ssub.s32 %s31, 2
      %s44 = sadd.s32 1, %s39
      %p45 = scmp.ge.s32.totalorder %s44, 2
      %s46 = scalar_select %p45, 0, %s44
      %s47 = sadd.s32 1, %s38
      %s48 = scalar_select %p45, %s47, %s38
      %p49 = scmp.ge.s32.totalorder %s48, 1
      %s50 = scalar_select %p49, 0, %s48
      %s51 = ssub.s32 %s38, %s50
      %p52 = scmp.eq.s32.totalorder %s51, 0
      %s54 = sadd.s32 %s53, 1
      %s55 = scalar_select %p52, %s53, %s54
      %p58 = pneg %p52
      %p59 = scmp.eq.s32.totalorder %s31, 1
      %p60 = por %p58, %p59
      %p61 = scmp.ne.s32.totalorder %s53, %s56
      %p62 = scmp.eq.s32.totalorder %s31, 0
      %p63 = por %p61, %p62
      %p64 = scmp.ne.s32.totalorder %s53, %s56
      %p65 = scmp.eq.s32.totalorder %s36, 1
      %p66 = por %p64, %p65
      %p67 = scmp.ne.s32.totalorder %s56, %s57
      %p68 = scmp.eq.s32.totalorder %s36, 0
      %p69 = por %p67, %p68
      %p70 = scmp.ne.s32.totalorder %s56, %s57
      %p71 = scmp.eq.s32.totalorder %s37, 1
      %p72 = por %p70, %p71
      %p74 = scmp.ne.s32.totalorder %s57, %s73
      %p75 = scmp.eq.s32.totalorder %s37, 0
      %p76 = por %p74, %p75
      %s78 = sadd.s32 %s77, 1
      %p81 = scmp.eq.s32.totalorder %s31, 1
      %p82 = scmp.ne.s32.totalorder %s77, %s79
      %p83 = scmp.eq.s32.totalorder %s31, 0
      %p84 = por %p82, %p83
      %p85 = scmp.ne.s32.totalorder %s77, %s79
      %p86 = scmp.eq.s32.totalorder %s36, 1
      %p87 = por %p85, %p86
      %p88 = scmp.ne.s32.totalorder %s79, %s80
      %p89 = scmp.eq.s32.totalorder %s36, 0
      %p90 = por %p88, %p89
      %p91 = scmp.ne.s32.totalorder %s79, %s80
      %p92 = scmp.eq.s32.totalorder %s37, 1
      %p93 = por %p91, %p92
      %p95 = scmp.ne.s32.totalorder %s80, %s94
      %p96 = scmp.eq.s32.totalorder %s37, 0
      %p97 = por %p95, %p96
      %s99 = sadd.s32 %s98, 1
      %p102 = scmp.eq.s32.totalorder %s31, 1
      %p103 = scmp.ne.s32.totalorder %s98, %s100
      %p104 = scmp.eq.s32.totalorder %s31, 0
      %p105 = por %p103, %p104
      %p106 = scmp.ne.s32.totalorder %s98, %s100
      %p107 = scmp.eq.s32.totalorder %s36, 1
      %p108 = por %p106, %p107
      %p109 = scmp.ne.s32.totalorder %s100, %s101
      %p110 = scmp.eq.s32.totalorder %s36, 0
      %p111 = por %p109, %p110
      %p112 = scmp.ne.s32.totalorder %s100, %s101
      %p113 = scmp.eq.s32.totalorder %s37, 1
      %p114 = por %p112, %p113
      %p116 = scmp.ne.s32.totalorder %s101, %s115
      %p117 = scmp.eq.s32.totalorder %s37, 0
      %p118 = por %p116, %p117
      %s120 = sadd.s32 %s119, 1
      %p123 = scmp.eq.s32.totalorder %s31, 1
      %p124 = scmp.ne.s32.totalorder %s119, %s121
      %p125 = scmp.eq.s32.totalorder %s31, 0
      %p126 = por %p124, %p125
      %p127 = scmp.ne.s32.totalorder %s119, %s121
      %p128 = scmp.eq.s32.totalorder %s36, 1
      %p129 = por %p127, %p128
      %p130 = scmp.ne.s32.totalorder %s121, %s122
      %p131 = scmp.eq.s32.totalorder %s36, 0
      %p132 = por %p130, %p131
      %p133 = scmp.ne.s32.totalorder %s121, %s122
      %p134 = scmp.eq.s32.totalorder %s37, 1
      %p135 = por %p133, %p134
      %p137 = scmp.ne.s32.totalorder %s122, %s136
      %p138 = scmp.eq.s32.totalorder %s37, 0
      %p139 = por %p137, %p138
      %s140 = ssub.s32 %s39, %s46
      %p141 = scmp.eq.s32.totalorder %s140, 0
      %s143 = sadd.s32 %s142, 1
      %s144 = scalar_select %p141, %s142, %s143
      %p147 = pneg %p141
      %p148 = scmp.eq.s32.totalorder %s31, 1
      %p149 = por %p147, %p148
      %p150 = scmp.ne.s32.totalorder %s142, %s145
      %p151 = scmp.eq.s32.totalorder %s31, 0
      %p152 = por %p150, %p151
      %p153 = scmp.ne.s32.totalorder %s142, %s145
      %p154 = scmp.eq.s32.totalorder %s36, 1
      %p155 = por %p153, %p154
      %p156 = scmp.ne.s32.totalorder %s145, %s146
      %p157 = scmp.eq.s32.totalorder %s36, 0
      %p158 = por %p156, %p157
      %p159 = scmp.ne.s32.totalorder %s145, %s146
      %p160 = scmp.eq.s32.totalorder %s37, 1
      %p161 = por %p159, %p160
      %p163 = scmp.ne.s32.totalorder %s146, %s162
      %p164 = scmp.eq.s32.totalorder %s37, 0
      %p165 = por %p163, %p164
      %s166 = ssub.s32 %s39, %s46
      %p167 = scmp.eq.s32.totalorder %s166, 0
      %s169 = sadd.s32 %s168, 1
      %s170 = scalar_select %p167, %s168, %s169
      %p173 = pneg %p167
      %p174 = scmp.eq.s32.totalorder %s31, 1
      %p175 = por %p173, %p174
      %p176 = scmp.ne.s32.totalorder %s168, %s171
      %p177 = scmp.eq.s32.totalorder %s31, 0
      %p178 = por %p176, %p177
      %p179 = scmp.ne.s32.totalorder %s168, %s171
      %p180 = scmp.eq.s32.totalorder %s36, 1
      %p181 = por %p179, %p180
      %p182 = scmp.ne.s32.totalorder %s171, %s172
      %p183 = scmp.eq.s32.totalorder %s36, 0
      %p184 = por %p182, %p183
      %p185 = scmp.ne.s32.totalorder %s171, %s172
      %p186 = scmp.eq.s32.totalorder %s37, 1
      %p187 = por %p185, %p186
      %p189 = scmp.ne.s32.totalorder %s172, %s188
      %p190 = scmp.eq.s32.totalorder %s37, 0
      %p191 = por %p189, %p190
      %s192 = ssub.s32 %s39, %s46
      %p193 = scmp.eq.s32.totalorder %s192, 0
      %s195 = sadd.s32 %s194, 1
      %s196 = scalar_select %p193, %s194, %s195
      %p199 = pneg %p193
      %p200 = scmp.eq.s32.totalorder %s31, 1
      %p201 = por %p199, %p200
      %p202 = scmp.ne.s32.totalorder %s194, %s197
      %p203 = scmp.eq.s32.totalorder %s31, 0
      %p204 = por %p202, %p203
      %p205 = scmp.ne.s32.totalorder %s194, %s197
      %p206 = scmp.eq.s32.totalorder %s36, 1
      %p207 = por %p205, %p206
      %p208 = scmp.ne.s32.totalorder %s197, %s198
      %p209 = scmp.eq.s32.totalorder %s36, 0
      %p210 = por %p208, %p209
      %p211 = scmp.ne.s32.totalorder %s197, %s198
      %p212 = scmp.eq.s32.totalorder %s37, 1
      %p213 = por %p211, %p212
      %p215 = scmp.ne.s32.totalorder %s198, %s214
      %p216 = scmp.eq.s32.totalorder %s37, 0
      %p217 = por %p215, %p216
      %s218 = ssub.s32 %s39, %s46
      %p219 = scmp.eq.s32.totalorder %s218, 0
      %s221 = sadd.s32 %s220, 1
      %s222 = scalar_select %p219, %s220, %s221
      %p225 = pneg %p219
      %p226 = scmp.eq.s32.totalorder %s31, 1
      %p227 = por %p225, %p226
      %p228 = scmp.ne.s32.totalorder %s220, %s223
      %p229 = scmp.eq.s32.totalorder %s31, 0
      %p230 = por %p228, %p229
      %p231 = scmp.ne.s32.totalorder %s220, %s223
      %p232 = scmp.eq.s32.totalorder %s36, 1
      %p233 = por %p231, %p232
      %p234 = scmp.ne.s32.totalorder %s223, %s224
      %p235 = scmp.eq.s32.totalorder %s36, 0
      %p236 = por %p234, %p235
      %p237 = scmp.ne.s32.totalorder %s223, %s224
      %p238 = scmp.eq.s32.totalorder %s37, 1
      %p239 = por %p237, %p238
      %p241 = scmp.ne.s32.totalorder %s224, %s240
      %p242 = scmp.eq.s32.totalorder %s37, 0
      %p243 = por %p241, %p242
      %s244 = ssub.s32 %s39, %s46
      %p245 = scmp.eq.s32.totalorder %s244, 0
      %s247 = sadd.s32 %s246, 1
      %s248 = scalar_select %p245, %s246, %s247
      %p251 = pneg %p245
      %p252 = scmp.eq.s32.totalorder %s31, 1
      %p253 = por %p251, %p252
      %p254 = scmp.ne.s32.totalorder %s246, %s249
      %p255 = scmp.eq.s32.totalorder %s31, 0
      %p256 = por %p254, %p255
      %p257 = scmp.ne.s32.totalorder %s246, %s249
      %p258 = scmp.eq.s32.totalorder %s36, 1
      %p259 = por %p257, %p258
      %p260 = scmp.ne.s32.totalorder %s249, %s250
      %p261 = scmp.eq.s32.totalorder %s36, 0
      %p262 = por %p260, %p261
      %p263 = scmp.ne.s32.totalorder %s249, %s250
      %p264 = scmp.eq.s32.totalorder %s37, 1
      %p265 = por %p263, %p264
      %p267 = scmp.ne.s32.totalorder %s250, %s266
      %p268 = scmp.eq.s32.totalorder %s37, 0
      %p269 = por %p267, %p268
      %s270 = ssub.s32 %s39, %s46
      %p271 = scmp.eq.s32.totalorder %s270, 0
      %s273 = sadd.s32 %s272, 1
      %s274 = scalar_select %p271, %s272, %s273
      %p277 = pneg %p271
      %p278 = scmp.eq.s32.totalorder %s31, 1
      %p279 = por %p277, %p278
      %p280 = scmp.ne.s32.totalorder %s272, %s275
      %p281 = scmp.eq.s32.totalorder %s31, 0
      %p282 = por %p280, %p281
      %p283 = scmp.ne.s32.totalorder %s272, %s275
      %p284 = scmp.eq.s32.totalorder %s36, 1
      %p285 = por %p283, %p284
      %p286 = scmp.ne.s32.totalorder %s275, %s276
      %p287 = scmp.eq.s32.totalorder %s36, 0
      %p288 = por %p286, %p287
      %p289 = scmp.ne.s32.totalorder %s275, %s276
      %p290 = scmp.eq.s32.totalorder %s37, 1
      %p291 = por %p289, %p290
      %p293 = scmp.ne.s32.totalorder %s276, %s292
      %p294 = scmp.eq.s32.totalorder %s37, 0
      %p295 = por %p293, %p294
      %s296 = ssub.s32 %s39, %s46
      %p297 = scmp.eq.s32.totalorder %s296, 0
      %s299 = sadd.s32 %s298, 1
      %s300 = scalar_select %p297, %s298, %s299
      %p303 = pneg %p297
      %p304 = scmp.eq.s32.totalorder %s31, 1
      %p305 = por %p303, %p304
      %p306 = scmp.ne.s32.totalorder %s298, %s301
      %p307 = scmp.eq.s32.totalorder %s31, 0
      %p308 = por %p306, %p307
      %p309 = scmp.ne.s32.totalorder %s298, %s301
      %p310 = scmp.eq.s32.totalorder %s36, 1
      %p311 = por %p309, %p310
      %p312 = scmp.ne.s32.totalorder %s301, %s302
      %p313 = scmp.eq.s32.totalorder %s36, 0
      %p314 = por %p312, %p313
      %p315 = scmp.ne.s32.totalorder %s301, %s302
      %p316 = scmp.eq.s32.totalorder %s37, 1
      %p317 = por %p315, %p316
      %p319 = scmp.ne.s32.totalorder %s302, %s318
      %p320 = scmp.eq.s32.totalorder %s37, 0
      %p321 = por %p319, %p320
      %s322 = ssub.s32 %s39, %s46
      %p323 = scmp.eq.s32.totalorder %s322, 0
      %s325 = sadd.s32 %s324, 1
      %s326 = scalar_select %p323, %s324, %s325
      %p329 = pneg %p323
      %p330 = scmp.eq.s32.totalorder %s31, 1
      %p331 = por %p329, %p330
      %p332 = scmp.ne.s32.totalorder %s324, %s327
      %p333 = scmp.eq.s32.totalorder %s31, 0
      %p334 = por %p332, %p333
      %p335 = scmp.ne.s32.totalorder %s324, %s327
      %p336 = scmp.eq.s32.totalorder %s36, 1
      %p337 = por %p335, %p336
      %p338 = scmp.ne.s32.totalorder %s327, %s328
      %p339 = scmp.eq.s32.totalorder %s36, 0
      %p340 = por %p338, %p339
      %p341 = scmp.ne.s32.totalorder %s327, %s328
      %p342 = scmp.eq.s32.totalorder %s37, 1
      %p343 = por %p341, %p342
      %p345 = scmp.ne.s32.totalorder %s328, %s344
      %p346 = scmp.eq.s32.totalorder %s37, 0
      %p347 = por %p345, %p346
      %s348 = ssub.s32 %s39, %s46
      %p349 = scmp.eq.s32.totalorder %s348, 0
      %s351 = sadd.s32 %s350, 1
      %s352 = scalar_select %p349, %s350, %s351
      %p355 = pneg %p349
      %p356 = scmp.eq.s32.totalorder %s31, 1
      %p357 = por %p355, %p356
      %p358 = scmp.ne.s32.totalorder %s350, %s353
      %p359 = scmp.eq.s32.totalorder %s31, 0
      %p360 = por %p358, %p359
      %p361 = scmp.ne.s32.totalorder %s350, %s353
      %p362 = scmp.eq.s32.totalorder %s36, 1
      %p363 = por %p361, %p362
      %p364 = scmp.ne.s32.totalorder %s353, %s354
      %p365 = scmp.eq.s32.totalorder %s36, 0
      %p366 = por %p364, %p365
      %p367 = scmp.ne.s32.totalorder %s353, %s354
      %p368 = scmp.eq.s32.totalorder %s37, 1
      %p369 = por %p367, %p368
      %p371 = scmp.ne.s32.totalorder %s354, %s370
      %p372 = scmp.eq.s32.totalorder %s37, 0
      %p373 = por %p371, %p372
      %s375 = sadd.s32 %s374, 1
      %p378 = scmp.eq.s32.totalorder %s31, 1
      %p379 = scmp.ne.s32.totalorder %s374, %s376
      %p380 = scmp.eq.s32.totalorder %s31, 0
      %p381 = por %p379, %p380
      %p382 = scmp.ne.s32.totalorder %s374, %s376
      %p383 = scmp.eq.s32.totalorder %s36, 1
      %p384 = por %p382, %p383
      %p385 = scmp.ne.s32.totalorder %s376, %s377
      %p386 = scmp.eq.s32.totalorder %s36, 0
      %p387 = por %p385, %p386
      %p388 = scmp.ne.s32.totalorder %s376, %s377
      %p389 = scmp.eq.s32.totalorder %s37, 1
      %p390 = por %p388, %p389
      %p392 = scmp.ne.s32.totalorder %s377, %s391
      %p393 = scmp.eq.s32.totalorder %s37, 0
      %p394 = por %p392, %p393
      %s395 = ssub.s32 %s38, %s50
      %p396 = scmp.eq.s32.totalorder %s395, 0
      %s398 = sadd.s32 %s397, 1
      %s399 = scalar_select %p396, %s397, %s398
      %p402 = pneg %p396
      %p403 = scmp.eq.s32.totalorder %s31, 1
      %p404 = por %p402, %p403
      %p405 = scmp.ne.s32.totalorder %s397, %s400
      %p406 = scmp.eq.s32.totalorder %s31, 0
      %p407 = por %p405, %p406
      %p408 = scmp.ne.s32.totalorder %s397, %s400
      %p409 = scmp.eq.s32.totalorder %s36, 1
      %p410 = por %p408, %p409
      %p411 = scmp.ne.s32.totalorder %s400, %s401
      %p412 = scmp.eq.s32.totalorder %s36, 0
      %p413 = por %p411, %p412
      %p414 = scmp.ne.s32.totalorder %s400, %s401
      %p415 = scmp.eq.s32.totalorder %s37, 1
      %p416 = por %p414, %p415
      %p418 = scmp.ne.s32.totalorder %s401, %s417
      %p419 = scmp.eq.s32.totalorder %s37, 0
      %p420 = por %p418, %p419
      %p421 = scmp.le.s32.totalorder 1, %s31
      %p422 = scmp.lt.s32.totalorder %s31, 3
      %p423 = pnand %p421, %p422
      %p424 = pneg %p423
      // Predicated region
      $region9: #{tpu_custom_call.1} parent=5 // pred_check
        _
      $region10: #{tpu_custom_call.1} parent=5 // pred_check_branch
        %426 = sbr.rel (%p423) target = $region12
      $region11: #{tpu_custom_call.1} parent=5 // pred_region
        %s427 = ssub.s32 %s31, 1
        // Predicated region
        $region13: #{tpu_custom_call.1} parent=11 // pred_check
          %p428 = pneg %p69
        $region14: #{tpu_custom_call.1} parent=11 // pred_check_branch
          %430 = sbr.rel (%p428) target = $region16
        $region15: #{tpu_custom_call.1} parent=11 // pred_region
          %s431 = smul.u32 4, %s40
          %p432 = scmp.lt.s32.totalorder %s431, 3
          %s433 = scalar_select %p432, %s431, 3
          %s434 = smul.addr %s433, 8
          %s435 = scalar_lea.vmem %s0, %s434
          %s436 = smul.u32 4, %s40
        $region16: #{tpu_custom_call.1} parent=11 // pred_fallthru
          _
        // Predicated region
        $region17: #{tpu_custom_call.1} parent=11 // pred_check
          %p437 = pneg %p90
        $region18: #{tpu_custom_call.1} parent=11 // pred_check_branch
          %439 = sbr.rel (%p437) target = $region20
        $region19: #{tpu_custom_call.1} parent=11 // pred_region
          _
        $region20: #{tpu_custom_call.1} parent=11 // pred_fallthru
          _
        // Predicated region
        $region21: #{tpu_custom_call.1} parent=11 // pred_check
          %p440 = pneg %p111
        $region22: #{tpu_custom_call.1} parent=11 // pred_check_branch
          %442 = sbr.rel (%p440) target = $region24
        $region23: #{tpu_custom_call.1} parent=11 // pred_region
          _
        $region24: #{tpu_custom_call.1} parent=11 // pred_fallthru
          _
        // Predicated region
        $region25: #{tpu_custom_call.1} parent=11 // pred_check
          %p443 = pneg %p132
        $region26: #{tpu_custom_call.1} parent=11 // pred_check_branch
          %445 = sbr.rel (%p443) target = $region28
        $region27: #{tpu_custom_call.1} parent=11 // pred_region
          %447 = vsyncadd [#allocation3], 0
          %s449 = sshll.u32 %s3, 4
          %s450 = int_to_ptr.hbm [resolvable:$true] %s449
          %s451 = sshll.u32 [#allocation2], 4
          %s452 = int_to_ptr.vmem [resolvable:$true] %s451
          %454 = dma.hbm_to_vmem [thread:$0]  %s450, 16, %s452, [#allocation3]
        $region28: #{tpu_custom_call.1} parent=11 // pred_fallthru
          _
        // Predicated region
        $region29: #{tpu_custom_call.1} parent=11 // pred_check
          %p455 = pneg %p387
        $region30: #{tpu_custom_call.1} parent=11 // pred_check_branch
          %457 = sbr.rel (%p455) target = $region32
        $region31: #{tpu_custom_call.1} parent=11 // pred_region
          _
        $region32: #{tpu_custom_call.1} parent=11 // pred_fallthru
          _
      $region12: #{tpu_custom_call.1} parent=5 // pred_fallthru
        _
      %p458 = scmp.lt.s32.totalorder %s31, 2
      // Predicated region
      $region33: #{tpu_custom_call.1} parent=5 // pred_check
        %p459 = pneg %p458
      $region34: #{tpu_custom_call.1} parent=5 // pred_check_branch
        %461 = sbr.rel (%p459) target = $region36
      $region35: #{tpu_custom_call.1} parent=5 // pred_region
        // Predicated region
        $region37: #{tpu_custom_call.1} parent=35 // pred_check
          %p462 = pneg %p152
        $region38: #{tpu_custom_call.1} parent=35 // pred_check_branch
          %464 = sbr.rel (%p462) target = $region40
        $region39: #{tpu_custom_call.1} parent=35 // pred_region
          %s465 = sand.u32 %s31, 1
          %s466 = scalar_lea.sflag [#allocation6], %s465
          %s467 = sand.u32 %s142, 1
          %s468 = smul.addr %s467, 192
          %s469 = scalar_lea.vmem [#allocation5], %s468
          %471 = vsyncadd %s466, 0
          %s472 = smul.addr %s39, 48
          %s473 = smul.addr %s472, 4
          %s474 = scalar_lea.hbm %s4, %s473
          %s475 = sshll.u32 %s474, 4
          %s476 = int_to_ptr.hbm [resolvable:$true] %s475
          %s477 = sshll.u32 %s469, 4
          %s478 = int_to_ptr.vmem [resolvable:$true] %s477
          %483 = dma.hbm_to_vmem [thread:$0]  %s476, 3072, %s478, %s466, 192, 192, 12
        $region40: #{tpu_custom_call.1} parent=35 // pred_fallthru
          _
        // Predicated region
        $region41: #{tpu_custom_call.1} parent=35 // pred_check
          %p484 = pneg %p178
        $region42: #{tpu_custom_call.1} parent=35 // pred_check_branch
          %486 = sbr.rel (%p484) target = $region44
        $region43: #{tpu_custom_call.1} parent=35 // pred_region
          %s487 = sand.u32 %s31, 1
          %s488 = scalar_lea.sflag [#allocation6], %s487
          %s489 = sand.u32 %s168, 1
          %s490 = smul.addr %s489, 3
          %s491 = scalar_lea.vmem [#allocation7], %s490
          %493 = vsyncadd %s488, 0
          %s494 = smul.addr %s39, 3
          %s495 = scalar_lea.hbm %s5, %s494
          %s497 = sshll.u32 %s495, 4
          %s498 = int_to_ptr.hbm [resolvable:$true] %s497
          %s499 = sshll.u32 %s491, 4
          %s500 = int_to_ptr.vmem [resolvable:$true] %s499
          %502 = dma.hbm_to_vmem [thread:$0]  %s498, 48, %s500, %s488
        $region44: #{tpu_custom_call.1} parent=35 // pred_fallthru
          _
        // Predicated region
        $region45: #{tpu_custom_call.1} parent=35 // pred_check
          %p503 = pneg %p204
        $region46: #{tpu_custom_call.1} parent=35 // pred_check_branch
          %505 = sbr.rel (%p503) target = $region48
        $region47: #{tpu_custom_call.1} parent=35 // pred_region
          %s506 = sand.u32 %s31, 1
          %s507 = scalar_lea.sflag [#allocation9], %s506
          %s508 = sand.u32 %s194, 1
          %s509 = smul.addr %s508, 64
          %s510 = scalar_lea.vmem [#allocation8], %s509
          %512 = vsyncadd %s507, 0
          %s513 = smul.addr %s39, 16
          %s514 = smul.addr %s513, 4
          %s515 = scalar_lea.hbm %s6, %s514
          %s516 = sshll.u32 %s515, 4
          %s517 = int_to_ptr.hbm [resolvable:$true] %s516
          %s518 = sshll.u32 %s510, 4
          %s519 = int_to_ptr.vmem [resolvable:$true] %s518
          %524 = dma.hbm_to_vmem [thread:$0]  %s517, 1024, %s519, %s507, 64, 64, 4
        $region48: #{tpu_custom_call.1} parent=35 // pred_fallthru
          _
        // Predicated region
        $region49: #{tpu_custom_call.1} parent=35 // pred_check
          %p525 = pneg %p230
        $region50: #{tpu_custom_call.1} parent=35 // pred_check_branch
          %527 = sbr.rel (%p525) target = $region52
        $region51: #{tpu_custom_call.1} parent=35 // pred_region
          %p528 = scmp.lt.s32.totalorder %s39, 1
          %s529 = scalar_select %p528, %s39, 1
          %s530 = scalar_lea.vmem %s7, %s529
        $region52: #{tpu_custom_call.1} parent=35 // pred_fallthru
          _
        // Predicated region
        $region53: #{tpu_custom_call.1} parent=35 // pred_check
          %p531 = pneg %p256
        $region54: #{tpu_custom_call.1} parent=35 // pred_check_branch
          %533 = sbr.rel (%p531) target = $region56
        $region55: #{tpu_custom_call.1} parent=35 // pred_region
          %s534 = sand.u32 %s31, 1
          %s535 = scalar_lea.sflag [#allocation9], %s534
          %s536 = sand.u32 %s246, 1
          %s537 = smul.addr %s536, 128
          %s538 = scalar_lea.vmem [#allocation10], %s537
          %540 = vsyncadd %s535, 0
          %s541 = smul.addr %s39, 32
          %s542 = smul.addr %s541, 4
          %s543 = scalar_lea.hbm %s8, %s542
          %s544 = sshll.u32 %s543, 4
          %s545 = int_to_ptr.hbm [resolvable:$true] %s544
          %s546 = sshll.u32 %s538, 4
          %s547 = int_to_ptr.vmem [resolvable:$true] %s546
          %552 = dma.hbm_to_vmem [thread:$0]  %s545, 2048, %s547, %s535, 128, 128, 8
        $region56: #{tpu_custom_call.1} parent=35 // pred_fallthru
          _
        // Predicated region
        $region57: #{tpu_custom_call.1} parent=35 // pred_check
          %p553 = pneg %p282
        $region58: #{tpu_custom_call.1} parent=35 // pred_check_branch
          %555 = sbr.rel (%p553) target = $region60
        $region59: #{tpu_custom_call.1} parent=35 // pred_region
          %p556 = scmp.lt.s32.totalorder %s39, 1
          %s557 = scalar_select %p556, %s39, 1
          %s558 = smul.addr %s557, 2
          %s559 = scalar_lea.vmem %s9, %s558
        $region60: #{tpu_custom_call.1} parent=35 // pred_fallthru
          _
        // Predicated region
        $region61: #{tpu_custom_call.1} parent=35 // pred_check
          %p560 = pneg %p308
        $region62: #{tpu_custom_call.1} parent=35 // pred_check_branch
          %562 = sbr.rel (%p560) target = $region64
        $region63: #{tpu_custom_call.1} parent=35 // pred_region
          %s563 = sand.u32 %s298, 1
          %s564 = scalar_lea.sflag [#allocation12], %s563
          %s565 = sand.u32 %s298, 1
          %s566 = smul.addr %s565, 128
          %s567 = scalar_lea.vmem [#allocation11], %s566
          %569 = vsyncadd %s564, 0
          %s570 = smul.addr %s39, 32
          %s571 = smul.addr %s570, 4
          %s572 = scalar_lea.hbm %s10, %s571
          %s573 = sshll.u32 %s572, 4
          %s574 = int_to_ptr.hbm [resolvable:$true] %s573
          %s575 = sshll.u32 %s567, 4
          %s576 = int_to_ptr.vmem [resolvable:$true] %s575
          %581 = dma.hbm_to_vmem [thread:$0]  %s574, 2048, %s576, %s564, 64, 64, 4
        $region64: #{tpu_custom_call.1} parent=35 // pred_fallthru
          _
        // Predicated region
        $region65: #{tpu_custom_call.1} parent=35 // pred_check
          %p582 = pneg %p334
        $region66: #{tpu_custom_call.1} parent=35 // pred_check_branch
          %584 = sbr.rel (%p582) target = $region68
        $region67: #{tpu_custom_call.1} parent=35 // pred_region
          %p585 = scmp.lt.s32.totalorder %s39, 1
          %s586 = scalar_select %p585, %s39, 1
          %s587 = scalar_lea.vmem %s11, %s586
        $region68: #{tpu_custom_call.1} parent=35 // pred_fallthru
          _
        // Predicated region
        $region69: #{tpu_custom_call.1} parent=35 // pred_check
          %p588 = pneg %p360
        $region70: #{tpu_custom_call.1} parent=35 // pred_check_branch
          %590 = sbr.rel (%p588) target = $region72
        $region71: #{tpu_custom_call.1} parent=35 // pred_region
          %p591 = scmp.lt.s32.totalorder %s39, 1
          %s592 = scalar_select %p591, %s39, 1
          %s593 = smul.addr %s592, 4
          %s594 = scalar_lea.vmem %s12, %s593
        $region72: #{tpu_custom_call.1} parent=35 // pred_fallthru
          _
      $region36: #{tpu_custom_call.1} parent=5 // pred_fallthru
        _
      %p595 = scmp.le.s32.totalorder 1, %s31
      %p596 = scmp.lt.s32.totalorder %s31, 3
      %p597 = pnand %p595, %p596
      %p598 = pneg %p597
      // Predicated region
      $region73: #{tpu_custom_call.1} parent=5 // pred_check
        _
      $region74: #{tpu_custom_call.1} parent=5 // pred_check_branch
        %600 = sbr.rel (%p597) target = $region76
      $region75: #{tpu_custom_call.1} parent=5 // pred_region
        %s601 = ssub.s32 %s31, 1
        // Predicated region
        $region77: #{tpu_custom_call.1} parent=75 // pred_check
          %p602 = pneg %p132
        $region78: #{tpu_custom_call.1} parent=75 // pred_check_branch
          %604 = sbr.rel (%p602) target = $region80
        $region79: #{tpu_custom_call.1} parent=75 // pred_region
          %606 = dma.done [#allocation3], 16
        $region80: #{tpu_custom_call.1} parent=75 // pred_fallthru
          _
        %s607 = sand.u32 %s36, 1
        %s608 = scalar_lea.sflag [#allocation6], %s607
        %s609 = sand.u32 %s145, 1
        %s610 = smul.addr %s609, 192
        %s611 = scalar_lea.vmem [#allocation5], %s610
        // Predicated region
        $region81: #{tpu_custom_call.1} parent=75 // pred_check
          %p612 = pneg %p158
        $region82: #{tpu_custom_call.1} parent=75 // pred_check_branch
          %614 = sbr.rel (%p612) target = $region84
        $region83: #{tpu_custom_call.1} parent=75 // pred_region
          %616 = dma.done %s608, 3072
        $region84: #{tpu_custom_call.1} parent=75 // pred_fallthru
          _
        %s617 = sand.u32 %s36, 1
        %s618 = scalar_lea.sflag [#allocation6], %s617
        %s619 = sand.u32 %s171, 1
        %s620 = smul.addr %s619, 3
        %s621 = scalar_lea.vmem [#allocation7], %s620
        // Predicated region
        $region85: #{tpu_custom_call.1} parent=75 // pred_check
          %p622 = pneg %p184
        $region86: #{tpu_custom_call.1} parent=75 // pred_check_branch
          %624 = sbr.rel (%p622) target = $region88
        $region87: #{tpu_custom_call.1} parent=75 // pred_region
          %626 = dma.done %s618, 48
        $region88: #{tpu_custom_call.1} parent=75 // pred_fallthru
          _
        %s627 = sand.u32 %s36, 1
        %s628 = scalar_lea.sflag [#allocation9], %s627
        %s629 = sand.u32 %s197, 1
        %s630 = smul.addr %s629, 64
        %s631 = scalar_lea.vmem [#allocation8], %s630
        // Predicated region
        $region89: #{tpu_custom_call.1} parent=75 // pred_check
          %p632 = pneg %p210
        $region90: #{tpu_custom_call.1} parent=75 // pred_check_branch
          %634 = sbr.rel (%p632) target = $region92
        $region91: #{tpu_custom_call.1} parent=75 // pred_region
          %636 = dma.done %s628, 1024
        $region92: #{tpu_custom_call.1} parent=75 // pred_fallthru
          _
        %s637 = sand.u32 %s36, 1
        %s638 = scalar_lea.sflag [#allocation9], %s637
        %s639 = sand.u32 %s249, 1
        %s640 = smul.addr %s639, 128
        %s641 = scalar_lea.vmem [#allocation10], %s640
        // Predicated region
        $region93: #{tpu_custom_call.1} parent=75 // pred_check
          %p642 = pneg %p262
        $region94: #{tpu_custom_call.1} parent=75 // pred_check_branch
          %644 = sbr.rel (%p642) target = $region96
        $region95: #{tpu_custom_call.1} parent=75 // pred_region
          %646 = dma.done %s638, 2048
        $region96: #{tpu_custom_call.1} parent=75 // pred_fallthru
          _
        %s647 = sand.u32 %s301, 1
        %s648 = scalar_lea.sflag [#allocation12], %s647
        %s649 = sand.u32 %s301, 1
        %s650 = smul.addr %s649, 128
        %s651 = scalar_lea.vmem [#allocation11], %s650
        // Predicated region
        $region97: #{tpu_custom_call.1} parent=75 // pred_check
          %p652 = pneg %p314
        $region98: #{tpu_custom_call.1} parent=75 // pred_check_branch
          %654 = sbr.rel (%p652) target = $region100
        $region99: #{tpu_custom_call.1} parent=75 // pred_region
          %656 = dma.done %s648, 2048
        $region100: #{tpu_custom_call.1} parent=75 // pred_fallthru
          _
        %s657 = smul.u32 4, %s40
        %p658 = scmp.lt.s32.totalorder %s657, 3
        %s659 = scalar_select %p658, %s657, 3
        %s660 = smul.addr %s659, 8
        %s661 = scalar_lea.vmem %s0, %s660
        %p662 = pneg %p69
        %p663 = pneg %p66
        %p664 = pneg %p90
        %p665 = pneg %p87
        %p666 = pneg %p111
        %p667 = pneg %p108
        %p668 = pneg %p132
        %p669 = pneg %p129
        %s670 = sand.u32 %s36, 1
        %s671 = scalar_lea.sflag [#allocation6], %s670
        %s672 = sand.u32 %s145, 1
        %s673 = smul.addr %s672, 192
        %s674 = scalar_lea.vmem [#allocation5], %s673
        %p675 = pneg %p158
        %p676 = pneg %p155
        %s677 = sand.u32 %s36, 1
        %s678 = scalar_lea.sflag [#allocation6], %s677
        %s679 = sand.u32 %s171, 1
        %s680 = smul.addr %s679, 3
        %s681 = scalar_lea.vmem [#allocation7], %s680
        %p682 = pneg %p184
        %p683 = pneg %p181
        %s684 = sand.u32 %s36, 1
        %s685 = scalar_lea.sflag [#allocation9], %s684
        %s686 = sand.u32 %s197, 1
        %s687 = smul.addr %s686, 64
        %s688 = scalar_lea.vmem [#allocation8], %s687
        %p689 = pneg %p210
        %p690 = pneg %p207
        %p691 = scmp.lt.s32.totalorder %s41, 1
        %s692 = scalar_select %p691, %s41, 1
        %s693 = scalar_lea.vmem %s7, %s692
        %p694 = pneg %p236
        %p695 = pneg %p233
        %s696 = sand.u32 %s36, 1
        %s697 = scalar_lea.sflag [#allocation9], %s696
        %s698 = sand.u32 %s249, 1
        %s699 = smul.addr %s698, 128
        %s700 = scalar_lea.vmem [#allocation10], %s699
        %p701 = pneg %p262
        %p702 = pneg %p259
        %p703 = scmp.lt.s32.totalorder %s41, 1
        %s704 = scalar_select %p703, %s41, 1
        %s705 = smul.addr %s704, 2
        %s706 = scalar_lea.vmem %s9, %s705
        %p707 = pneg %p288
        %p708 = pneg %p285
        %s709 = sand.u32 %s301, 1
        %s710 = scalar_lea.sflag [#allocation12], %s709
        %s711 = sand.u32 %s301, 1
        %s712 = smul.addr %s711, 128
        %s713 = scalar_lea.vmem [#allocation11], %s712
        %p714 = pneg %p314
        %p715 = pneg %p311
        %p716 = scmp.lt.s32.totalorder %s41, 1
        %s717 = scalar_select %p716, %s41, 1
        %s718 = scalar_lea.vmem %s11, %s717
        %p719 = pneg %p340
        %p720 = pneg %p337
        %p721 = scmp.lt.s32.totalorder %s41, 1
        %s722 = scalar_select %p721, %s41, 1
        %s723 = smul.addr %s722, 4
        %s724 = scalar_lea.vmem %s12, %s723
        %p725 = pneg %p366
        %p726 = pneg %p363
        %p727 = pneg %p387
        %p728 = pneg %p384
        %p729 = pneg %p413
        %p730 = pneg %p410
        %s731 = smul.u32 4, %s40
        %p732 = scmp.lt.s32.totalorder %s731, 3
        %s733 = scalar_select %p732, %s731, 3
        %s734 = smul.addr %s733, 8
        %s735 = scalar_lea.vmem %s0, %s734
        %s736 = smul.u32 4, %s40
        %p737 = scmp.lt.s32.totalorder %s41, 1
        %s738 = scalar_select %p737, %s41, 1
        %s739 = scalar_lea.vmem %s7, %s738
        %p740 = scmp.lt.s32.totalorder %s41, 1
        %s741 = scalar_select %p740, %s41, 1
        %s742 = smul.addr %s741, 2
        %s743 = scalar_lea.vmem %s9, %s742
        %p744 = scmp.lt.s32.totalorder %s41, 1
        %s745 = scalar_select %p744, %s41, 1
        %s746 = scalar_lea.vmem %s11, %s745
        %p747 = scmp.lt.s32.totalorder %s41, 1
        %s748 = scalar_select %p747, %s41, 1
        %s749 = smul.addr %s748, 4
        %s750 = scalar_lea.vmem %s12, %s749
        %s751 = smul.u32 4, %s40
        %p753 = scmp.eq.s32.totalorder %s41, 0
        // Predicated region
        $region101: #{tpu_custom_call.1} parent=75 // pred_check
          %p754 = pneg %p753
        $region102: #{tpu_custom_call.1} parent=75 // pred_check_branch
          %756 = sbr.rel (%p754) target = $region104
        $region103: #{tpu_custom_call.1} parent=75 // pred_region
          %v757 = vld [vmem:[%s735] sm:$0xff]
          %v758 = vld [vmem:[%s735 + $0x8] sm:$0xff]
          %v759 = vld [vmem:[%s735 + $0x10] sm:$0xff]
          %v760 = vld [vmem:[%s735 + $0x18] sm:$0xff]
          %v761 = vld [vmem:[%s2] sm:$0xf]
          %v762 = vld [vmem:[%s2 + $0x4] sm:$0xf]
          %v763 = vld [vmem:[#allocation2] sm:$0x1]
          %v764 = vpack.c.bf16 %v758, %v757
          %v765 = vpack.c.bf16 %v760, %v759
          %v767 = vperm.slane %v763, 0
          %v771 = vunpack.c.l.b16 %v761
          %v772 = vunpack.c.l.b16 %v762
          %v773 = vpack.c.b16 %v772, %v771
          %vm775 = vcmask 130048
          %v777 = vsel %vm775, %v764, 0
          %v780 = vsel %vm775, %v765, 0
          %782 = vmatpush.bf16.msra.mxu0 0
          %783 = vmatpush.bf16.msra.mxu0 0
          %784 = vmatpush.bf16.msra.mxu0 0
          %785 = vmatpush.bf16.msra.mxu0 0
          %786 = vmatpush.bf16.msra.mxu0 0
          %787 = vmatpush.bf16.msra.mxu0 0
          %788 = vmatpush.bf16.msra.mxu0 0
          %789 = vmatpush.bf16.msra.mxu0 %v773
          %790 = vmatmul.bf16.gmra.mxu0 %v777
          %v791 = vpop.f32.mrf.mxu0
          %v792 = vadd.f32 %v767, %v791
          %v793 = vpop.f32.mrf.mxu0
          %v794 = vadd.f32 %v767, %v793
          %795 = vmatmul.bf16.gmra.mxu0 %v780
          %v796 = vpop.f32.mrf.mxu0
          %v797 = vadd.f32 %v767, %v796
          %v798 = vpop.f32.mrf.mxu0
          %v799 = vadd.f32 %v767, %v798
          %800 = vdwg.mxu0
          %v801 = vld [vmem:[%s1] sm:$0xff]
          %v802 = vld [vmem:[%s1 + $0x8] sm:$0xff]
          %v803 = vld [vmem:[%s1 + $0x10] sm:$0xff]
          %v804 = vld [vmem:[%s1 + $0x18] sm:$0xff]
          %v805 = vadd.f32 %v792, %v801
          %v806 = vadd.f32 %v794, %v802
          %v807 = vadd.f32 %v797, %v803
          %v808 = vadd.f32 %v799, %v804
          %809 = vst [vmem:[#allocation13] sm:$0xff] %v805
          %810 = vst [vmem:[#allocation13 + $0x8] sm:$0xff] %v806
          %811 = vst [vmem:[#allocation13 + $0x10] sm:$0xff] %v807
          %812 = vst [vmem:[#allocation13 + $0x18] sm:$0xff] %v808
        $region104: #{tpu_custom_call.1} parent=75 // pred_fallthru
          _
        %v813 = vld [vmem:[#allocation13] sm:$0xff]
        %v814 = vld [vmem:[#allocation13 + $0x8] sm:$0xff]
        %v815 = vld [vmem:[#allocation13 + $0x10] sm:$0xff]
        %v816 = vld [vmem:[#allocation13 + $0x18] sm:$0xff]
        %v817 = vld [vmem:[%s750] sm:$0x1]
        %v818 = vld [vmem:[%s750 + $0x1] sm:$0x1]
        %819 = vadd.xlane.f32.xlu0 %v813
        %v820 = vpop.xlane.xlu0 %819
        %821 = vadd.xlane.f32.xlu0 %v814
        %v822 = vpop.xlane.xlu0 %821
        %823 = vadd.xlane.f32.xlu0 %v815
        %v824 = vpop.xlane.xlu0 %823
        %825 = vadd.xlane.f32.xlu0 %v816
        %v826 = vpop.xlane.xlu0 %825
        %v827 = vrcp.pop 128.0
        %v828 = vmul.f32 128.0, %v827
        %v829 = vsub.f32 1.0, %v828
        %v830 = vmul.f32 %v827, %v829
        %v831 = vadd.f32 %v827, %v830
        %vm832 = vweird.f32 %v827
        %v833 = vsel %vm832, %v827, %v831
        %v834 = vmul.f32 %v820, %v833
        %v835 = vmul.f32 %v822, %v833
        %v836 = vmul.f32 %v824, %v833
        %v837 = vmul.f32 %v826, %v833
        %v838 = vsub.f32 %v813, %v834
        %v839 = vsub.f32 %v814, %v835
        %v840 = vsub.f32 %v815, %v836
        %v841 = vsub.f32 %v816, %v837
        %v842 = vmul.f32 %v838, %v838
        %v843 = vmul.f32 %v839, %v839
        %v844 = vmul.f32 %v840, %v840
        %v845 = vmul.f32 %v841, %v841
        %846 = vadd.xlane.f32.xlu0 %v842
        %v847 = vpop.xlane.xlu0 %846
        %848 = vadd.xlane.f32.xlu0 %v843
        %v849 = vpop.xlane.xlu0 %848
        %850 = vadd.xlane.f32.xlu0 %v844
        %v851 = vpop.xlane.xlu0 %850
        %852 = vadd.xlane.f32.xlu0 %v845
        %v853 = vpop.xlane.xlu0 %852
        %v854 = vmul.f32 %v847, 0.007874016
        %v855 = vmul.f32 %v849, 0.007874016
        %v856 = vmul.f32 %v851, 0.007874016
        %v857 = vmul.f32 %v853, 0.007874016
        %v858 = vrsqrt.pop %v854
        %v859 = vmul.f32 %v858, %v854
        %v860 = vmul.f32 %v859, %v858
        %v861 = vmul.f32 0.5, %v860
        %v862 = vsub.f32 1.5, %v861
        %v863 = vmul.f32 %v858, %v862
        %v864 = vmul.f32 %v854, %v863
        %vm865 = vcmp.eq.f32.partialorder %v854, inf
        %v866 = vsel %vm865, %v854, %v864
        %vm867 = vcmp.eq.f32.partialorder %v854, 0.0
        %v868 = vand.u32 %v854, 2147483648
        %v869 = vsel %vm867, %v868, %v866
        %v870 = vrsqrt.pop %v855
        %v871 = vmul.f32 %v870, %v855
        %v872 = vmul.f32 %v871, %v870
        %v873 = vmul.f32 0.5, %v872
        %v874 = vsub.f32 1.5, %v873
        %v875 = vmul.f32 %v870, %v874
        %v876 = vmul.f32 %v855, %v875
        %vm877 = vcmp.eq.f32.partialorder %v855, inf
        %v878 = vsel %vm877, %v855, %v876
        %vm879 = vcmp.eq.f32.partialorder %v855, 0.0
        %v880 = vand.u32 %v855, 2147483648
        %v881 = vsel %vm879, %v880, %v878
        %v882 = vrsqrt.pop %v856
        %v883 = vmul.f32 %v882, %v856
        %v884 = vmul.f32 %v883, %v882
        %v885 = vmul.f32 0.5, %v884
        %v886 = vsub.f32 1.5, %v885
        %v887 = vmul.f32 %v882, %v886
        %v888 = vmul.f32 %v856, %v887
        %vm889 = vcmp.eq.f32.partialorder %v856, inf
        %v890 = vsel %vm889, %v856, %v888
        %vm891 = vcmp.eq.f32.partialorder %v856, 0.0
        %v892 = vand.u32 %v856, 2147483648
        %v893 = vsel %vm891, %v892, %v890
        %v894 = vrsqrt.pop %v857
        %v895 = vmul.f32 %v894, %v857
        %v896 = vmul.f32 %v895, %v894
        %v897 = vmul.f32 0.5, %v896
        %v898 = vsub.f32 1.5, %v897
        %v899 = vmul.f32 %v894, %v898
        %v900 = vmul.f32 %v857, %v899
        %vm901 = vcmp.eq.f32.partialorder %v857, inf
        %v902 = vsel %vm901, %v857, %v900
        %vm903 = vcmp.eq.f32.partialorder %v857, 0.0
        %v904 = vand.u32 %v857, 2147483648
        %v905 = vsel %vm903, %v904, %v902
        %v906 = vadd.f32 %v869, 1e-06
        %v907 = vadd.f32 %v881, 1e-06
        %v908 = vadd.f32 %v893, 1e-06
        %v909 = vadd.f32 %v905, 1e-06
        %v910 = vrcp.pop %v906
        %v911 = vmul.f32 %v906, %v910
        %v912 = vsub.f32 1.0, %v911
        %v913 = vmul.f32 %v910, %v912
        %v914 = vadd.f32 %v910, %v913
        %vm915 = vweird.f32 %v906
        %vm916 = vweird.f32 %v910
        %vm917 = vmor %vm915, %vm916
        %v918 = vsel %vm917, %v910, %v914
        %v919 = vand.u32 2147483647, %v906
        %vm920 = vcmp.eq.f32.partialorder %v919, 8.507059e+37
        %v921 = vand.u32 %v906, 2147483648
        %v922 = vor.u32 1.1754944e-38, %v921
        %v923 = vsel %vm920, %v922, %v918
        %v924 = vrcp.pop %v907
        %v925 = vmul.f32 %v907, %v924
        %v926 = vsub.f32 1.0, %v925
        %v927 = vmul.f32 %v924, %v926
        %v928 = vadd.f32 %v924, %v927
        %vm929 = vweird.f32 %v907
        %vm930 = vweird.f32 %v924
        %vm931 = vmor %vm929, %vm930
        %v932 = vsel %vm931, %v924, %v928
        %v933 = vand.u32 2147483647, %v907
        %vm934 = vcmp.eq.f32.partialorder %v933, 8.507059e+37
        %v935 = vand.u32 %v907, 2147483648
        %v936 = vor.u32 1.1754944e-38, %v935
        %v937 = vsel %vm934, %v936, %v932
        %v938 = vrcp.pop %v908
        %v939 = vmul.f32 %v908, %v938
        %v940 = vsub.f32 1.0, %v939
        %v941 = vmul.f32 %v938, %v940
        %v942 = vadd.f32 %v938, %v941
        %vm943 = vweird.f32 %v908
        %vm944 = vweird.f32 %v938
        %vm945 = vmor %vm943, %vm944
        %v946 = vsel %vm945, %v938, %v942
        %v947 = vand.u32 2147483647, %v908
        %vm948 = vcmp.eq.f32.partialorder %v947, 8.507059e+37
        %v949 = vand.u32 %v908, 2147483648
        %v950 = vor.u32 1.1754944e-38, %v949
        %v951 = vsel %vm948, %v950, %v946
        %v952 = vrcp.pop %v909
        %v953 = vmul.f32 %v909, %v952
        %v954 = vsub.f32 1.0, %v953
        %v955 = vmul.f32 %v952, %v954
        %v956 = vadd.f32 %v952, %v955
        %vm957 = vweird.f32 %v909
        %vm958 = vweird.f32 %v952
        %vm959 = vmor %vm957, %vm958
        %v960 = vsel %vm959, %v952, %v956
        %v961 = vand.u32 2147483647, %v909
        %vm962 = vcmp.eq.f32.partialorder %v961, 8.507059e+37
        %v963 = vand.u32 %v909, 2147483648
        %v964 = vor.u32 1.1754944e-38, %v963
        %v965 = vsel %vm962, %v964, %v960
        %v966 = vmul.f32 %v838, %v923
        %v967 = vmul.f32 %v839, %v937
        %v968 = vmul.f32 %v840, %v951
        %v969 = vmul.f32 %v841, %v965
        %v970 = vperm.slane %v817, 0
        %v971 = vmul.f32 %v970, %v966
        %v972 = vmul.f32 %v970, %v967
        %v973 = vmul.f32 %v970, %v968
        %v974 = vmul.f32 %v970, %v969
        %v975 = vperm.slane %v818, 0
        %v976 = vadd.f32 %v971, %v975
        %v977 = vadd.f32 %v972, %v975
        %v978 = vadd.f32 %v973, %v975
        %v979 = vadd.f32 %v974, %v975
        %v980 = vld [vmem:[%s611] sm:$0xff]
        %v981 = vld [vmem:[%s611 + $0x8] sm:$0xf]
        %v982 = vld [vmem:[%s611 + $0xc] sm:$0xff]
        %v983 = vld [vmem:[%s611 + $0x14] sm:$0xf]
        %v984 = vld [vmem:[%s611 + $0x18] sm:$0xff]
        %v985 = vld [vmem:[%s611 + $0x20] sm:$0xf]
        %v986 = vld [vmem:[%s611 + $0x24] sm:$0xff]
        %v987 = vld [vmem:[%s611 + $0x2c] sm:$0xf]
        %v988 = vld [vmem:[%s611 + $0x30] sm:$0xff]
        %v989 = vld [vmem:[%s611 + $0x38] sm:$0xf]
        %v990 = vld [vmem:[%s611 + $0x3c] sm:$0xff]
        %v991 = vld [vmem:[%s611 + $0x44] sm:$0xf]
        %v992 = vld [vmem:[%s611 + $0x48] sm:$0xff]
        %v993 = vld [vmem:[%s611 + $0x50] sm:$0xf]
        %v994 = vld [vmem:[%s611 + $0x54] sm:$0xff]
        %v995 = vld [vmem:[%s611 + $0x5c] sm:$0xf]
        %v996 = vld [vmem:[%s611 + $0x60] sm:$0xff]
        %v997 = vld [vmem:[%s611 + $0x68] sm:$0xf]
        %v998 = vld [vmem:[%s611 + $0x6c] sm:$0xff]
        %v999 = vld [vmem:[%s611 + $0x74] sm:$0xf]
        %v1000 = vld [vmem:[%s611 + $0x78] sm:$0xff]
        %v1001 = vld [vmem:[%s611 + $0x80] sm:$0xf]
        %v1002 = vld [vmem:[%s611 + $0x84] sm:$0xff]
        %v1003 = vld [vmem:[%s611 + $0x8c] sm:$0xf]
        %v1004 = vld [vmem:[%s611 + $0x90] sm:$0xff]
        %v1005 = vld [vmem:[%s611 + $0x98] sm:$0xf]
        %v1006 = vld [vmem:[%s611 + $0x9c] sm:$0xff]
        %v1007 = vld [vmem:[%s611 + $0xa4] sm:$0xf]
        %v1008 = vld [vmem:[%s611 + $0xa8] sm:$0xff]
        %v1009 = vld [vmem:[%s611 + $0xb0] sm:$0xf]
        %v1010 = vld [vmem:[%s611 + $0xb4] sm:$0xff]
        %v1011 = vld [vmem:[%s611 + $0xbc] sm:$0xf]
        %v1012 = vld [vmem:[%s621] sm:$0x7]
        %v1013 = vpack.c.bf16 %v977, %v976
        %v1014 = vpack.c.bf16 %v979, %v978
        %v1016 = vperm.slane %v1012, 0
        %v1017 = vperm.slane %v1012, 1
        %v1018 = vperm.slane %v1012, 2
        %v1054 = vunpack.c.l.b16 %v980
        %v1055 = vunpack.c.h.b16 %v980
        %v1056 = vunpack.c.l.b16 %v981
        %v1057 = vunpack.c.l.b16 %v982
        %v1058 = vunpack.c.h.b16 %v982
        %v1059 = vunpack.c.l.b16 %v983
        %v1060 = vunpack.c.l.b16 %v984
        %v1061 = vunpack.c.h.b16 %v984
        %v1062 = vunpack.c.l.b16 %v985
        %v1063 = vunpack.c.l.b16 %v986
        %v1064 = vunpack.c.h.b16 %v986
        %v1065 = vunpack.c.l.b16 %v987
        %v1066 = vunpack.c.l.b16 %v988
        %v1067 = vunpack.c.h.b16 %v988
        %v1068 = vunpack.c.l.b16 %v989
        %v1069 = vunpack.c.l.b16 %v990
        %v1070 = vunpack.c.h.b16 %v990
        %v1071 = vunpack.c.l.b16 %v991
        %v1072 = vunpack.c.l.b16 %v992
        %v1073 = vunpack.c.h.b16 %v992
        %v1074 = vunpack.c.l.b16 %v993
        %v1075 = vunpack.c.l.b16 %v994
        %v1076 = vunpack.c.h.b16 %v994
        %v1077 = vunpack.c.l.b16 %v995
        %v1078 = vunpack.c.l.b16 %v996
        %v1079 = vunpack.c.h.b16 %v996
        %v1080 = vunpack.c.l.b16 %v997
        %v1081 = vunpack.c.l.b16 %v998
        %v1082 = vunpack.c.h.b16 %v998
        %v1083 = vunpack.c.l.b16 %v999
        %v1084 = vunpack.c.l.b16 %v1000
        %v1085 = vunpack.c.h.b16 %v1000
        %v1086 = vunpack.c.l.b16 %v1001
        %v1087 = vunpack.c.l.b16 %v1002
        %v1088 = vunpack.c.h.b16 %v1002
        %v1089 = vunpack.c.l.b16 %v1003
        %v1090 = vunpack.c.l.b16 %v1004
        %v1091 = vunpack.c.h.b16 %v1004
        %v1092 = vunpack.c.l.b16 %v1005
        %v1093 = vunpack.c.l.b16 %v1006
        %v1094 = vunpack.c.h.b16 %v1006
        %v1095 = vunpack.c.l.b16 %v1007
        %v1096 = vunpack.c.l.b16 %v1008
        %v1097 = vunpack.c.h.b16 %v1008
        %v1098 = vunpack.c.l.b16 %v1009
        %v1099 = vunpack.c.l.b16 %v1010
        %v1100 = vunpack.c.h.b16 %v1010
        %v1101 = vunpack.c.l.b16 %v1011
        %v1102 = vpack.c.b16 %v1057, %v1054
        %v1103 = vpack.c.b16 %v1058, %v1055
        %v1104 = vpack.c.b16 %v1059, %v1056
        %v1105 = vpack.c.b16 %v1063, %v1060
        %v1106 = vpack.c.b16 %v1064, %v1061
        %v1107 = vpack.c.b16 %v1065, %v1062
        %v1108 = vpack.c.b16 %v1069, %v1066
        %v1109 = vpack.c.b16 %v1070, %v1067
        %v1110 = vpack.c.b16 %v1071, %v1068
        %v1111 = vpack.c.b16 %v1075, %v1072
        %v1112 = vpack.c.b16 %v1076, %v1073
        %v1113 = vpack.c.b16 %v1077, %v1074
        %v1114 = vpack.c.b16 %v1081, %v1078
        %v1115 = vpack.c.b16 %v1082, %v1079
        %v1116 = vpack.c.b16 %v1083, %v1080
        %v1117 = vpack.c.b16 %v1087, %v1084
        %v1118 = vpack.c.b16 %v1088, %v1085
        %v1119 = vpack.c.b16 %v1089, %v1086
        %v1120 = vpack.c.b16 %v1093, %v1090
        %v1121 = vpack.c.b16 %v1094, %v1091
        %v1122 = vpack.c.b16 %v1095, %v1092
        %v1123 = vpack.c.b16 %v1099, %v1096
        %v1124 = vpack.c.b16 %v1100, %v1097
        %v1125 = vpack.c.b16 %v1101, %v1098
        %1150 = vmatpush.bf16.msra.mxu0 %v1123
        %1151 = vmatpush.bf16.msra.mxu0 %v1120
        %1152 = vmatpush.bf16.msra.mxu0 %v1117
        %1153 = vmatpush.bf16.msra.mxu0 %v1114
        %1154 = vmatpush.bf16.msra.mxu0 %v1111
        %1155 = vmatpush.bf16.msra.mxu0 %v1108
        %1156 = vmatpush.bf16.msra.mxu0 %v1105
        %1157 = vmatpush.bf16.msra.mxu0 %v1102
        %1158 = vmatmul.bf16.gmra.mxu0 %v1013
        %v1159 = vpop.f32.mrf.mxu0
        %v1160 = vadd.f32 %v1016, %v1159
        %v1161 = vpop.f32.mrf.mxu0
        %v1162 = vadd.f32 %v1016, %v1161
        %1163 = vmatmul.bf16.gmra.mxu0 %v1014
        %v1164 = vpop.f32.mrf.mxu0
        %v1165 = vadd.f32 %v1016, %v1164
        %v1166 = vpop.f32.mrf.mxu0
        %v1167 = vadd.f32 %v1016, %v1166
        %1168 = vdwg.mxu0
        %1169 = vmatpush.bf16.msra.mxu0 %v1124
        %1170 = vmatpush.bf16.msra.mxu0 %v1121
        %1171 = vmatpush.bf16.msra.mxu0 %v1118
        %1172 = vmatpush.bf16.msra.mxu0 %v1115
        %1173 = vmatpush.bf16.msra.mxu0 %v1112
        %1174 = vmatpush.bf16.msra.mxu0 %v1109
        %1175 = vmatpush.bf16.msra.mxu0 %v1106
        %1176 = vmatpush.bf16.msra.mxu0 %v1103
        %1177 = vmatmul.bf16.gmra.mxu0 %v1013
        %v1178 = vpop.f32.mrf.mxu0
        %v1179 = vadd.f32 %v1017, %v1178
        %v1180 = vpop.f32.mrf.mxu0
        %v1181 = vadd.f32 %v1017, %v1180
        %1182 = vmatmul.bf16.gmra.mxu0 %v1014
        %v1183 = vpop.f32.mrf.mxu0
        %v1184 = vadd.f32 %v1017, %v1183
        %v1185 = vpop.f32.mrf.mxu0
        %v1186 = vadd.f32 %v1017, %v1185
        %1187 = vdwg.mxu0
        %1188 = vmatpush.bf16.msra.mxu0 %v1125
        %1189 = vmatpush.bf16.msra.mxu0 %v1122
        %1190 = vmatpush.bf16.msra.mxu0 %v1119
        %1191 = vmatpush.bf16.msra.mxu0 %v1116
        %1192 = vmatpush.bf16.msra.mxu0 %v1113
        %1193 = vmatpush.bf16.msra.mxu0 %v1110
        %1194 = vmatpush.bf16.msra.mxu0 %v1107
        %1195 = vmatpush.bf16.msra.mxu0 %v1104
        %1196 = vmatmul.bf16.gmra.mxu0 %v1013
        %v1197 = vpop.f32.mrf.mxu0
        %v1198 = vadd.f32 %v1018, %v1197
        %v1199 = vpop.f32.mrf.mxu0
        %v1200 = vadd.f32 %v1018, %v1199
        %1201 = vmatmul.bf16.gmra.mxu0 %v1014
        %v1202 = vpop.f32.mrf.mxu0
        %v1203 = vadd.f32 %v1018, %v1202
        %v1204 = vpop.f32.mrf.mxu0
        %v1205 = vadd.f32 %v1018, %v1204
        %1206 = vdwg.mxu0
        %v1207 = vld [vmem:[%s631] sm:$0xf]
        %v1208 = vld [vmem:[%s631 + $0x4] sm:$0xf]
        %v1209 = vld [vmem:[%s631 + $0x8] sm:$0xf]
        %v1210 = vld [vmem:[%s631 + $0xc] sm:$0xf]
        %v1211 = vld [vmem:[%s631 + $0x10] sm:$0xf]
        %v1212 = vld [vmem:[%s631 + $0x14] sm:$0xf]
        %v1213 = vld [vmem:[%s631 + $0x18] sm:$0xf]
        %v1214 = vld [vmem:[%s631 + $0x1c] sm:$0xf]
        %v1215 = vld [vmem:[%s631 + $0x20] sm:$0xf]
        %v1216 = vld [vmem:[%s631 + $0x24] sm:$0xf]
        %v1217 = vld [vmem:[%s631 + $0x28] sm:$0xf]
        %v1218 = vld [vmem:[%s631 + $0x2c] sm:$0xf]
        %v1219 = vld [vmem:[%s631 + $0x30] sm:$0xf]
        %v1220 = vld [vmem:[%s631 + $0x34] sm:$0xf]
        %v1221 = vld [vmem:[%s631 + $0x38] sm:$0xf]
        %v1222 = vld [vmem:[%s631 + $0x3c] sm:$0xf]
        %v1223 = vld [vmem:[%s739] sm:$0x1]
        %v1224 = vpack.c.bf16 %v1160, %v1160
        %v1225 = vpack.c.bf16 %v1162, %v1162
        %v1226 = vpack.c.bf16 %v1165, %v1165
        %v1227 = vpack.c.bf16 %v1167, %v1167
        %v1228 = vpack.c.bf16 %v1179, %v1179
        %v1229 = vpack.c.bf16 %v1181, %v1181
        %v1230 = vpack.c.bf16 %v1184, %v1184
        %v1231 = vpack.c.bf16 %v1186, %v1186
        %v1232 = vpack.c.bf16 %v1198, %v1198
        %v1233 = vpack.c.bf16 %v1200, %v1200
        %v1234 = vpack.c.bf16 %v1203, %v1203
        %v1235 = vpack.c.bf16 %v1205, %v1205
        %v1238 = vunpack.c.l.b16 %v1224
        %v1239 = vunpack.c.l.b16 %v1225
        %v1240 = vpack.c.b16 %v1239, %v1238
        %v1243 = vunpack.c.l.b16 %v1228
        %v1244 = vunpack.c.l.b16 %v1229
        %v1245 = vpack.c.b16 %v1244, %v1243
        %vm1246 = vcmask 261120
        %v1248 = vsel %vm1246, %v1240, 0
        %v1251 = vsel %vm1246, %v1245, 0
        %1253 = vmatpush.bf16.xpose.msra.mxu0 0
        %1254 = vmatpush.bf16.xpose.msra.mxu0 0
        %1255 = vmatpush.bf16.xpose.msra.mxu0 0
        %1256 = vmatpush.bf16.xpose.msra.mxu0 0
        %1257 = vmatpush.bf16.xpose.msra.mxu0 0
        %1258 = vmatpush.bf16.xpose.msra.mxu0 0
        %1259 = vmatpush.bf16.xpose.msra.mxu0 0
        %1260 = vmatpush.bf16.xpose.msra.mxu0 %v1251
        %1261 = vmatmul.bf16.gmra.mxu0 %v1248
        %v1262 = vpop.f32.mrf.mxu0
        %v1263 = vadd.f32 0.0, %v1262
        %v1264 = vpop.f32.mrf.mxu0
        %v1265 = vadd.f32 0.0, %v1264
        %1266 = vdwg.mxu0
        %v1269 = vunpack.c.l.b16 %v1226
        %v1270 = vunpack.c.l.b16 %v1227
        %v1271 = vpack.c.b16 %v1270, %v1269
        %v1274 = vunpack.c.l.b16 %v1230
        %v1275 = vunpack.c.l.b16 %v1231
        %v1276 = vpack.c.b16 %v1275, %v1274
        %v1278 = vsel %vm1246, %v1271, 0
        %v1281 = vsel %vm1246, %v1276, 0
        %1283 = vmatpush.bf16.xpose.msra.mxu0 0
        %1284 = vmatpush.bf16.xpose.msra.mxu0 0
        %1285 = vmatpush.bf16.xpose.msra.mxu0 0
        %1286 = vmatpush.bf16.xpose.msra.mxu0 0
        %1287 = vmatpush.bf16.xpose.msra.mxu0 0
        %1288 = vmatpush.bf16.xpose.msra.mxu0 0
        %1289 = vmatpush.bf16.xpose.msra.mxu0 0
        %1290 = vmatpush.bf16.xpose.msra.mxu0 %v1281
        %1291 = vmatmul.bf16.gmra.mxu0 %v1278
        %v1292 = vpop.f32.mrf.mxu0
        %v1293 = vadd.f32 0.0, %v1292
        %v1294 = vpop.f32.mrf.mxu0
        %v1295 = vadd.f32 0.0, %v1294
        %1296 = vdwg.mxu0
        %v1297 = vmul.f32 %v1263, 0.17677669
        %v1298 = vmul.f32 %v1265, 0.17677669
        %v1299 = vmul.f32 %v1293, 0.17677669
        %v1300 = vmul.f32 %v1295, 0.17677669
        %vm1301 = vcmask 130048
        %v1302 = vsel %vm1301, %v1297, -inf
        %1303 = vmax.xlane.f32.xlu0 %v1302
        %v1304 = vpop.xlane.xlu0 %1303
        %v1305 = vsel %vm1301, %v1298, -inf
        %1306 = vmax.xlane.f32.xlu0 %v1305
        %v1307 = vpop.xlane.xlu0 %1306
        %v1308 = vsel %vm1301, %v1299, -inf
        %1309 = vmax.xlane.f32.xlu0 %v1308
        %v1310 = vpop.xlane.xlu0 %1309
        %v1311 = vsel %vm1301, %v1300, -inf
        %1312 = vmax.xlane.f32.xlu0 %v1311
        %v1313 = vpop.xlane.xlu0 %1312
        %v1314 = vsub.f32 %v1297, %v1304
        %v1315 = vsub.f32 %v1298, %v1307
        %v1316 = vsub.f32 %v1299, %v1310
        %v1317 = vsub.f32 %v1300, %v1313
        %v1318 = vmul.f32 %v1314, 1.442695
        %v1319 = vpow.pop %v1318
        %v1320 = vmul.f32 %v1315, 1.442695
        %v1321 = vpow.pop %v1320
        %v1322 = vmul.f32 %v1316, 1.442695
        %v1323 = vpow.pop %v1322
        %v1324 = vmul.f32 %v1317, 1.442695
        %v1325 = vpow.pop %v1324
        %v1326 = vsel %vm1301, %v1319, 0.0
        %1327 = vadd.xlane.f32.xlu0 %v1326
        %v1328 = vpop.xlane.xlu0 %1327
        %v1329 = vsel %vm1301, %v1321, 0.0
        %1330 = vadd.xlane.f32.xlu0 %v1329
        %v1331 = vpop.xlane.xlu0 %1330
        %v1332 = vsel %vm1301, %v1323, 0.0
        %1333 = vadd.xlane.f32.xlu0 %v1332
        %v1334 = vpop.xlane.xlu0 %1333
        %v1335 = vsel %vm1301, %v1325, 0.0
        %1336 = vadd.xlane.f32.xlu0 %v1335
        %v1337 = vpop.xlane.xlu0 %1336
        %v1338 = vrcp.pop %v1328
        %v1339 = vrcp.pop %v1331
        %v1340 = vrcp.pop %v1334
        %v1341 = vrcp.pop %v1337
        %v1342 = vmul.f32 %v1319, %v1338
        %v1343 = vmul.f32 %v1321, %v1339
        %v1344 = vmul.f32 %v1323, %v1340
        %v1345 = vmul.f32 %v1325, %v1341
        %v1346 = vpack.c.bf16 %v1342, %v1342
        %v1347 = vpack.c.bf16 %v1343, %v1343
        %v1348 = vpack.c.bf16 %v1344, %v1344
        %v1349 = vpack.c.bf16 %v1345, %v1345
        %v1352 = vunpack.c.l.b16 %v1346
        %v1353 = vunpack.c.l.b16 %v1347
        %v1354 = vpack.c.b16 %v1353, %v1352
        %v1357 = vunpack.c.l.b16 %v1232
        %v1358 = vunpack.c.l.b16 %v1233
        %v1359 = vpack.c.b16 %v1358, %v1357
        %v1362 = vsel %vm1301, %v1354, 0
        %1364 = vmatpush.bf16.msra.mxu0 0
        %1365 = vmatpush.bf16.msra.mxu0 0
        %1366 = vmatpush.bf16.msra.mxu0 0
        %1367 = vmatpush.bf16.msra.mxu0 0
        %1368 = vmatpush.bf16.msra.mxu0 0
        %1369 = vmatpush.bf16.msra.mxu0 0
        %1370 = vmatpush.bf16.msra.mxu0 0
        %1371 = vmatpush.bf16.msra.mxu0 %v1359
        %1372 = vmatmul.bf16.gmra.mxu0 %v1362
        %v1373 = vpop.f32.mrf.mxu0
        %v1374 = vadd.f32 0.0, %v1373
        %v1375 = vpop.f32.mrf.mxu0
        %v1376 = vadd.f32 0.0, %v1375
        %1377 = vdwg.mxu0
        %v1380 = vunpack.c.l.b16 %v1348
        %v1381 = vunpack.c.l.b16 %v1349
        %v1382 = vpack.c.b16 %v1381, %v1380
        %v1385 = vunpack.c.l.b16 %v1234
        %v1386 = vunpack.c.l.b16 %v1235
        %v1387 = vpack.c.b16 %v1386, %v1385
        %v1390 = vsel %vm1301, %v1382, 0
        %1392 = vmatpush.bf16.msra.mxu0 0
        %1393 = vmatpush.bf16.msra.mxu0 0
        %1394 = vmatpush.bf16.msra.mxu0 0
        %1395 = vmatpush.bf16.msra.mxu0 0
        %1396 = vmatpush.bf16.msra.mxu0 0
        %1397 = vmatpush.bf16.msra.mxu0 0
        %1398 = vmatpush.bf16.msra.mxu0 0
        %1399 = vmatpush.bf16.msra.mxu0 %v1387
        %1400 = vmatmul.bf16.gmra.mxu0 %v1390
        %v1401 = vpop.f32.mrf.mxu0
        %v1402 = vadd.f32 0.0, %v1401
        %v1403 = vpop.f32.mrf.mxu0
        %v1404 = vadd.f32 0.0, %v1403
        %1405 = vdwg.mxu0
        %1406 = vrot.lane.b32.xlu0 %v1240, 96
        %v1407 = vpop.permute.xlu0 %1406
        %1408 = vrot.lane.b32.xlu0 %v1245, 96
        %v1409 = vpop.permute.xlu0 %1408
        %v1411 = vsel %vm1246, %v1407, 0
        %v1414 = vsel %vm1246, %v1409, 0
        %1416 = vmatpush.bf16.xpose.msra.mxu0 0
        %1417 = vmatpush.bf16.xpose.msra.mxu0 0
        %1418 = vmatpush.bf16.xpose.msra.mxu0 0
        %1419 = vmatpush.bf16.xpose.msra.mxu0 0
        %1420 = vmatpush.bf16.xpose.msra.mxu0 0
        %1421 = vmatpush.bf16.xpose.msra.mxu0 0
        %1422 = vmatpush.bf16.xpose.msra.mxu0 0
        %1423 = vmatpush.bf16.xpose.msra.mxu0 %v1414
        %1424 = vmatmul.bf16.gmra.mxu0 %v1411
        %v1425 = vpop.f32.mrf.mxu0
        %v1426 = vadd.f32 0.0, %v1425
        %v1427 = vpop.f32.mrf.mxu0
        %v1428 = vadd.f32 0.0, %v1427
        %1429 = vdwg.mxu0
        %1430 = vrot.lane.b32.xlu0 %v1271, 96
        %v1431 = vpop.permute.xlu0 %1430
        %1432 = vrot.lane.b32.xlu0 %v1276, 96
        %v1433 = vpop.permute.xlu0 %1432
        %v1435 = vsel %vm1246, %v1431, 0
        %v1438 = vsel %vm1246, %v1433, 0
        %1440 = vmatpush.bf16.xpose.msra.mxu0 0
        %1441 = vmatpush.bf16.xpose.msra.mxu0 0
        %1442 = vmatpush.bf16.xpose.msra.mxu0 0
        %1443 = vmatpush.bf16.xpose.msra.mxu0 0
        %1444 = vmatpush.bf16.xpose.msra.mxu0 0
        %1445 = vmatpush.bf16.xpose.msra.mxu0 0
        %1446 = vmatpush.bf16.xpose.msra.mxu0 0
        %1447 = vmatpush.bf16.xpose.msra.mxu0 %v1438
        %1448 = vmatmul.bf16.gmra.mxu0 %v1435
        %v1449 = vpop.f32.mrf.mxu0
        %v1450 = vadd.f32 0.0, %v1449
        %v1451 = vpop.f32.mrf.mxu0
        %v1452 = vadd.f32 0.0, %v1451
        %1453 = vdwg.mxu0
        %v1454 = vmul.f32 %v1426, 0.17677669
        %v1455 = vmul.f32 %v1428, 0.17677669
        %v1456 = vmul.f32 %v1450, 0.17677669
        %v1457 = vmul.f32 %v1452, 0.17677669
        %v1458 = vsel %vm1301, %v1454, -inf
        %1459 = vmax.xlane.f32.xlu0 %v1458
        %v1460 = vpop.xlane.xlu0 %1459
        %v1461 = vsel %vm1301, %v1455, -inf
        %1462 = vmax.xlane.f32.xlu0 %v1461
        %v1463 = vpop.xlane.xlu0 %1462
        %v1464 = vsel %vm1301, %v1456, -inf
        %1465 = vmax.xlane.f32.xlu0 %v1464
        %v1466 = vpop.xlane.xlu0 %1465
        %v1467 = vsel %vm1301, %v1457, -inf
        %1468 = vmax.xlane.f32.xlu0 %v1467
        %v1469 = vpop.xlane.xlu0 %1468
        %v1470 = vsub.f32 %v1454, %v1460
        %v1471 = vsub.f32 %v1455, %v1463
        %v1472 = vsub.f32 %v1456, %v1466
        %v1473 = vsub.f32 %v1457, %v1469
        %v1474 = vmul.f32 %v1470, 1.442695
        %v1475 = vpow.pop %v1474
        %v1476 = vmul.f32 %v1471, 1.442695
        %v1477 = vpow.pop %v1476
        %v1478 = vmul.f32 %v1472, 1.442695
        %v1479 = vpow.pop %v1478
        %v1480 = vmul.f32 %v1473, 1.442695
        %v1481 = vpow.pop %v1480
        %v1482 = vsel %vm1301, %v1475, 0.0
        %1483 = vadd.xlane.f32.xlu0 %v1482
        %v1484 = vpop.xlane.xlu0 %1483
        %v1485 = vsel %vm1301, %v1477, 0.0
        %1486 = vadd.xlane.f32.xlu0 %v1485
        %v1487 = vpop.xlane.xlu0 %1486
        %v1488 = vsel %vm1301, %v1479, 0.0
        %1489 = vadd.xlane.f32.xlu0 %v1488
        %v1490 = vpop.xlane.xlu0 %1489
        %v1491 = vsel %vm1301, %v1481, 0.0
        %1492 = vadd.xlane.f32.xlu0 %v1491
        %v1493 = vpop.xlane.xlu0 %1492
        %v1494 = vrcp.pop %v1484
        %v1495 = vrcp.pop %v1487
        %v1496 = vrcp.pop %v1490
        %v1497 = vrcp.pop %v1493
        %v1498 = vmul.f32 %v1475, %v1494
        %v1499 = vmul.f32 %v1477, %v1495
        %v1500 = vmul.f32 %v1479, %v1496
        %v1501 = vmul.f32 %v1481, %v1497
        %v1502 = vpack.c.bf16 %v1498, %v1498
        %v1503 = vpack.c.bf16 %v1499, %v1499
        %v1504 = vpack.c.bf16 %v1500, %v1500
        %v1505 = vpack.c.bf16 %v1501, %v1501
        %v1508 = vunpack.c.l.b16 %v1502
        %v1509 = vunpack.c.l.b16 %v1503
        %v1510 = vpack.c.b16 %v1509, %v1508
        %1511 = vrot.lane.b32.xlu0 %v1359, 96
        %v1512 = vpop.permute.xlu0 %1511
        %v1515 = vsel %vm1301, %v1510, 0
        %1517 = vmatpush.bf16.msra.mxu0 0
        %1518 = vmatpush.bf16.msra.mxu0 0
        %1519 = vmatpush.bf16.msra.mxu0 0
        %1520 = vmatpush.bf16.msra.mxu0 0
        %1521 = vmatpush.bf16.msra.mxu0 0
        %1522 = vmatpush.bf16.msra.mxu0 0
        %1523 = vmatpush.bf16.msra.mxu0 0
        %1524 = vmatpush.bf16.msra.mxu0 %v1512
        %1525 = vmatmul.bf16.gmra.mxu0 %v1515
        %v1526 = vpop.f32.mrf.mxu0
        %v1527 = vadd.f32 0.0, %v1526
        %v1528 = vpop.f32.mrf.mxu0
        %v1529 = vadd.f32 0.0, %v1528
        %1530 = vdwg.mxu0
        %v1533 = vunpack.c.l.b16 %v1504
        %v1534 = vunpack.c.l.b16 %v1505
        %v1535 = vpack.c.b16 %v1534, %v1533
        %1536 = vrot.lane.b32.xlu0 %v1387, 96
        %v1537 = vpop.permute.xlu0 %1536
        %v1540 = vsel %vm1301, %v1535, 0
        %1542 = vmatpush.bf16.msra.mxu0 0
        %1543 = vmatpush.bf16.msra.mxu0 0
        %1544 = vmatpush.bf16.msra.mxu0 0
        %1545 = vmatpush.bf16.msra.mxu0 0
        %1546 = vmatpush.bf16.msra.mxu0 0
        %1547 = vmatpush.bf16.msra.mxu0 0
        %1548 = vmatpush.bf16.msra.mxu0 0
        %1549 = vmatpush.bf16.msra.mxu0 %v1537
        %1550 = vmatmul.bf16.gmra.mxu0 %v1540
        %v1551 = vpop.f32.mrf.mxu0
        %v1552 = vadd.f32 0.0, %v1551
        %v1553 = vpop.f32.mrf.mxu0
        %v1554 = vadd.f32 0.0, %v1553
        %1555 = vdwg.mxu0
        %1556 = vrot.lane.b32.xlu0 %v1240, 64
        %v1557 = vpop.permute.xlu0 %1556
        %1558 = vrot.lane.b32.xlu0 %v1245, 64
        %v1559 = vpop.permute.xlu0 %1558
        %v1561 = vsel %vm1246, %v1557, 0
        %v1564 = vsel %vm1246, %v1559, 0
        %1566 = vmatpush.bf16.xpose.msra.mxu0 0
        %1567 = vmatpush.bf16.xpose.msra.mxu0 0
        %1568 = vmatpush.bf16.xpose.msra.mxu0 0
        %1569 = vmatpush.bf16.xpose.msra.mxu0 0
        %1570 = vmatpush.bf16.xpose.msra.mxu0 0
        %1571 = vmatpush.bf16.xpose.msra.mxu0 0
        %1572 = vmatpush.bf16.xpose.msra.mxu0 0
        %1573 = vmatpush.bf16.xpose.msra.mxu0 %v1564
        %1574 = vmatmul.bf16.gmra.mxu0 %v1561
        %v1575 = vpop.f32.mrf.mxu0
        %v1576 = vadd.f32 0.0, %v1575
        %v1577 = vpop.f32.mrf.mxu0
        %v1578 = vadd.f32 0.0, %v1577
        %1579 = vdwg.mxu0
        %1580 = vrot.lane.b32.xlu0 %v1271, 64
        %v1581 = vpop.permute.xlu0 %1580
        %1582 = vrot.lane.b32.xlu0 %v1276, 64
        %v1583 = vpop.permute.xlu0 %1582
        %v1585 = vsel %vm1246, %v1581, 0
        %v1588 = vsel %vm1246, %v1583, 0
        %1590 = vmatpush.bf16.xpose.msra.mxu0 0
        %1591 = vmatpush.bf16.xpose.msra.mxu0 0
        %1592 = vmatpush.bf16.xpose.msra.mxu0 0
        %1593 = vmatpush.bf16.xpose.msra.mxu0 0
        %1594 = vmatpush.bf16.xpose.msra.mxu0 0
        %1595 = vmatpush.bf16.xpose.msra.mxu0 0
        %1596 = vmatpush.bf16.xpose.msra.mxu0 0
        %1597 = vmatpush.bf16.xpose.msra.mxu0 %v1588
        %1598 = vmatmul.bf16.gmra.mxu0 %v1585
        %v1599 = vpop.f32.mrf.mxu0
        %v1600 = vadd.f32 0.0, %v1599
        %v1601 = vpop.f32.mrf.mxu0
        %v1602 = vadd.f32 0.0, %v1601
        %1603 = vdwg.mxu0
        %v1604 = vmul.f32 %v1576, 0.17677669
        %v1605 = vmul.f32 %v1578, 0.17677669
        %v1606 = vmul.f32 %v1600, 0.17677669
        %v1607 = vmul.f32 %v1602, 0.17677669
        %v1608 = vsel %vm1301, %v1604, -inf
        %1609 = vmax.xlane.f32.xlu0 %v1608
        %v1610 = vpop.xlane.xlu0 %1609
        %v1611 = vsel %vm1301, %v1605, -inf
        %1612 = vmax.xlane.f32.xlu0 %v1611
        %v1613 = vpop.xlane.xlu0 %1612
        %v1614 = vsel %vm1301, %v1606, -inf
        %1615 = vmax.xlane.f32.xlu0 %v1614
        %v1616 = vpop.xlane.xlu0 %1615
        %v1617 = vsel %vm1301, %v1607, -inf
        %1618 = vmax.xlane.f32.xlu0 %v1617
        %v1619 = vpop.xlane.xlu0 %1618
        %v1620 = vsub.f32 %v1604, %v1610
        %v1621 = vsub.f32 %v1605, %v1613
        %v1622 = vsub.f32 %v1606, %v1616
        %v1623 = vsub.f32 %v1607, %v1619
        %v1624 = vmul.f32 %v1620, 1.442695
        %v1625 = vpow.pop %v1624
        %v1626 = vmul.f32 %v1621, 1.442695
        %v1627 = vpow.pop %v1626
        %v1628 = vmul.f32 %v1622, 1.442695
        %v1629 = vpow.pop %v1628
        %v1630 = vmul.f32 %v1623, 1.442695
        %v1631 = vpow.pop %v1630
        %v1632 = vsel %vm1301, %v1625, 0.0
        %1633 = vadd.xlane.f32.xlu0 %v1632
        %v1634 = vpop.xlane.xlu0 %1633
        %v1635 = vsel %vm1301, %v1627, 0.0
        %1636 = vadd.xlane.f32.xlu0 %v1635
        %v1637 = vpop.xlane.xlu0 %1636
        %v1638 = vsel %vm1301, %v1629, 0.0
        %1639 = vadd.xlane.f32.xlu0 %v1638
        %v1640 = vpop.xlane.xlu0 %1639
        %v1641 = vsel %vm1301, %v1631, 0.0
        %1642 = vadd.xlane.f32.xlu0 %v1641
        %v1643 = vpop.xlane.xlu0 %1642
        %v1644 = vrcp.pop %v1634
        %v1645 = vrcp.pop %v1637
        %v1646 = vrcp.pop %v1640
        %v1647 = vrcp.pop %v1643
        %v1648 = vmul.f32 %v1625, %v1644
        %v1649 = vmul.f32 %v1627, %v1645
        %v1650 = vmul.f32 %v1629, %v1646
        %v1651 = vmul.f32 %v1631, %v1647
        %v1652 = vpack.c.bf16 %v1648, %v1648
        %v1653 = vpack.c.bf16 %v1649, %v1649
        %v1654 = vpack.c.bf16 %v1650, %v1650
        %v1655 = vpack.c.bf16 %v1651, %v1651
        %v1658 = vunpack.c.l.b16 %v1652
        %v1659 = vunpack.c.l.b16 %v1653
        %v1660 = vpack.c.b16 %v1659, %v1658
        %1661 = vrot.lane.b32.xlu0 %v1359, 64
        %v1662 = vpop.permute.xlu0 %1661
        %v1665 = vsel %vm1301, %v1660, 0
        %1667 = vmatpush.bf16.msra.mxu0 0
        %1668 = vmatpush.bf16.msra.mxu0 0
        %1669 = vmatpush.bf16.msra.mxu0 0
        %1670 = vmatpush.bf16.msra.mxu0 0
        %1671 = vmatpush.bf16.msra.mxu0 0
        %1672 = vmatpush.bf16.msra.mxu0 0
        %1673 = vmatpush.bf16.msra.mxu0 0
        %1674 = vmatpush.bf16.msra.mxu0 %v1662
        %1675 = vmatmul.bf16.gmra.mxu0 %v1665
        %v1676 = vpop.f32.mrf.mxu0
        %v1677 = vadd.f32 0.0, %v1676
        %v1678 = vpop.f32.mrf.mxu0
        %v1679 = vadd.f32 0.0, %v1678
        %1680 = vdwg.mxu0
        %v1683 = vunpack.c.l.b16 %v1654
        %v1684 = vunpack.c.l.b16 %v1655
        %v1685 = vpack.c.b16 %v1684, %v1683
        %1686 = vrot.lane.b32.xlu0 %v1387, 64
        %v1687 = vpop.permute.xlu0 %1686
        %v1690 = vsel %vm1301, %v1685, 0
        %1692 = vmatpush.bf16.msra.mxu0 0
        %1693 = vmatpush.bf16.msra.mxu0 0
        %1694 = vmatpush.bf16.msra.mxu0 0
        %1695 = vmatpush.bf16.msra.mxu0 0
        %1696 = vmatpush.bf16.msra.mxu0 0
        %1697 = vmatpush.bf16.msra.mxu0 0
        %1698 = vmatpush.bf16.msra.mxu0 0
        %1699 = vmatpush.bf16.msra.mxu0 %v1687
        %1700 = vmatmul.bf16.gmra.mxu0 %v1690
        %v1701 = vpop.f32.mrf.mxu0
        %v1702 = vadd.f32 0.0, %v1701
        %v1703 = vpop.f32.mrf.mxu0
        %v1704 = vadd.f32 0.0, %v1703
        %1705 = vdwg.mxu0
        %1706 = vrot.lane.b32.xlu0 %v1240, 32
        %v1707 = vpop.permute.xlu0 %1706
        %1708 = vrot.lane.b32.xlu0 %v1245, 32
        %v1709 = vpop.permute.xlu0 %1708
        %v1711 = vsel %vm1246, %v1707, 0
        %v1714 = vsel %vm1246, %v1709, 0
        %1716 = vmatpush.bf16.xpose.msra.mxu0 0
        %1717 = vmatpush.bf16.xpose.msra.mxu0 0
        %1718 = vmatpush.bf16.xpose.msra.mxu0 0
        %1719 = vmatpush.bf16.xpose.msra.mxu0 0
        %1720 = vmatpush.bf16.xpose.msra.mxu0 0
        %1721 = vmatpush.bf16.xpose.msra.mxu0 0
        %1722 = vmatpush.bf16.xpose.msra.mxu0 0
        %1723 = vmatpush.bf16.xpose.msra.mxu0 %v1714
        %1724 = vmatmul.bf16.gmra.mxu0 %v1711
        %v1725 = vpop.f32.mrf.mxu0
        %v1726 = vadd.f32 0.0, %v1725
        %v1727 = vpop.f32.mrf.mxu0
        %v1728 = vadd.f32 0.0, %v1727
        %1729 = vdwg.mxu0
        %1730 = vrot.lane.b32.xlu0 %v1271, 32
        %v1731 = vpop.permute.xlu0 %1730
        %1732 = vrot.lane.b32.xlu0 %v1276, 32
        %v1733 = vpop.permute.xlu0 %1732
        %v1735 = vsel %vm1246, %v1731, 0
        %v1738 = vsel %vm1246, %v1733, 0
        %1740 = vmatpush.bf16.xpose.msra.mxu0 0
        %1741 = vmatpush.bf16.xpose.msra.mxu0 0
        %1742 = vmatpush.bf16.xpose.msra.mxu0 0
        %1743 = vmatpush.bf16.xpose.msra.mxu0 0
        %1744 = vmatpush.bf16.xpose.msra.mxu0 0
        %1745 = vmatpush.bf16.xpose.msra.mxu0 0
        %1746 = vmatpush.bf16.xpose.msra.mxu0 0
        %1747 = vmatpush.bf16.xpose.msra.mxu0 %v1738
        %1748 = vmatmul.bf16.gmra.mxu0 %v1735
        %v1749 = vpop.f32.mrf.mxu0
        %v1750 = vadd.f32 0.0, %v1749
        %v1751 = vpop.f32.mrf.mxu0
        %v1752 = vadd.f32 0.0, %v1751
        %1753 = vdwg.mxu0
        %v1754 = vmul.f32 %v1726, 0.17677669
        %v1755 = vmul.f32 %v1728, 0.17677669
        %v1756 = vmul.f32 %v1750, 0.17677669
        %v1757 = vmul.f32 %v1752, 0.17677669
        %v1758 = vsel %vm1301, %v1754, -inf
        %1759 = vmax.xlane.f32.xlu0 %v1758
        %v1760 = vpop.xlane.xlu0 %1759
        %v1761 = vsel %vm1301, %v1755, -inf
        %1762 = vmax.xlane.f32.xlu0 %v1761
        %v1763 = vpop.xlane.xlu0 %1762
        %v1764 = vsel %vm1301, %v1756, -inf
        %1765 = vmax.xlane.f32.xlu0 %v1764
        %v1766 = vpop.xlane.xlu0 %1765
        %v1767 = vsel %vm1301, %v1757, -inf
        %1768 = vmax.xlane.f32.xlu0 %v1767
        %v1769 = vpop.xlane.xlu0 %1768
        %v1770 = vsub.f32 %v1754, %v1760
        %v1771 = vsub.f32 %v1755, %v1763
        %v1772 = vsub.f32 %v1756, %v1766
        %v1773 = vsub.f32 %v1757, %v1769
        %v1774 = vmul.f32 %v1770, 1.442695
        %v1775 = vpow.pop %v1774
        %v1776 = vmul.f32 %v1771, 1.442695
        %v1777 = vpow.pop %v1776
        %v1778 = vmul.f32 %v1772, 1.442695
        %v1779 = vpow.pop %v1778
        %v1780 = vmul.f32 %v1773, 1.442695
        %v1781 = vpow.pop %v1780
        %v1782 = vsel %vm1301, %v1775, 0.0
        %1783 = vadd.xlane.f32.xlu0 %v1782
        %v1784 = vpop.xlane.xlu0 %1783
        %v1785 = vsel %vm1301, %v1777, 0.0
        %1786 = vadd.xlane.f32.xlu0 %v1785
        %v1787 = vpop.xlane.xlu0 %1786
        %v1788 = vsel %vm1301, %v1779, 0.0
        %1789 = vadd.xlane.f32.xlu0 %v1788
        %v1790 = vpop.xlane.xlu0 %1789
        %v1791 = vsel %vm1301, %v1781, 0.0
        %1792 = vadd.xlane.f32.xlu0 %v1791
        %v1793 = vpop.xlane.xlu0 %1792
        %v1794 = vrcp.pop %v1784
        %v1795 = vrcp.pop %v1787
        %v1796 = vrcp.pop %v1790
        %v1797 = vrcp.pop %v1793
        %v1798 = vmul.f32 %v1775, %v1794
        %v1799 = vmul.f32 %v1777, %v1795
        %v1800 = vmul.f32 %v1779, %v1796
        %v1801 = vmul.f32 %v1781, %v1797
        %v1802 = vpack.c.bf16 %v1798, %v1798
        %v1803 = vpack.c.bf16 %v1799, %v1799
        %v1804 = vpack.c.bf16 %v1800, %v1800
        %v1805 = vpack.c.bf16 %v1801, %v1801
        %v1808 = vunpack.c.l.b16 %v1802
        %v1809 = vunpack.c.l.b16 %v1803
        %v1810 = vpack.c.b16 %v1809, %v1808
        %1811 = vrot.lane.b32.xlu0 %v1359, 32
        %v1812 = vpop.permute.xlu0 %1811
        %v1815 = vsel %vm1301, %v1810, 0
        %1817 = vmatpush.bf16.msra.mxu0 0
        %1818 = vmatpush.bf16.msra.mxu0 0
        %1819 = vmatpush.bf16.msra.mxu0 0
        %1820 = vmatpush.bf16.msra.mxu0 0
        %1821 = vmatpush.bf16.msra.mxu0 0
        %1822 = vmatpush.bf16.msra.mxu0 0
        %1823 = vmatpush.bf16.msra.mxu0 0
        %1824 = vmatpush.bf16.msra.mxu0 %v1812
        %1825 = vmatmul.bf16.gmra.mxu0 %v1815
        %v1826 = vpop.f32.mrf.mxu0
        %v1827 = vadd.f32 0.0, %v1826
        %v1828 = vpop.f32.mrf.mxu0
        %v1829 = vadd.f32 0.0, %v1828
        %1830 = vdwg.mxu0
        %v1833 = vunpack.c.l.b16 %v1804
        %v1834 = vunpack.c.l.b16 %v1805
        %v1835 = vpack.c.b16 %v1834, %v1833
        %1836 = vrot.lane.b32.xlu0 %v1387, 32
        %v1837 = vpop.permute.xlu0 %1836
        %v1840 = vsel %vm1301, %v1835, 0
        %1842 = vmatpush.bf16.msra.mxu0 0
        %1843 = vmatpush.bf16.msra.mxu0 0
        %1844 = vmatpush.bf16.msra.mxu0 0
        %1845 = vmatpush.bf16.msra.mxu0 0
        %1846 = vmatpush.bf16.msra.mxu0 0
        %1847 = vmatpush.bf16.msra.mxu0 0
        %1848 = vmatpush.bf16.msra.mxu0 0
        %1849 = vmatpush.bf16.msra.mxu0 %v1837
        %1850 = vmatmul.bf16.gmra.mxu0 %v1840
        %v1851 = vpop.f32.mrf.mxu0
        %v1852 = vadd.f32 0.0, %v1851
        %v1853 = vpop.f32.mrf.mxu0
        %v1854 = vadd.f32 0.0, %v1853
        %1855 = vdwg.mxu0
        %1860 = vrot.lane.b32.xlu0 %v1527, 32
        %v1861 = vpop.permute.xlu0 %1860
        %1862 = vrot.lane.b32.xlu0 %v1529, 32
        %v1863 = vpop.permute.xlu0 %1862
        %1864 = vrot.lane.b32.xlu0 %v1552, 32
        %v1865 = vpop.permute.xlu0 %1864
        %1866 = vrot.lane.b32.xlu0 %v1554, 32
        %v1867 = vpop.permute.xlu0 %1866
        %1876 = vrot.lane.b32.xlu0 %v1677, 64
        %v1877 = vpop.permute.xlu0 %1876
        %1878 = vrot.lane.b32.xlu0 %v1679, 64
        %v1879 = vpop.permute.xlu0 %1878
        %1880 = vrot.lane.b32.xlu0 %v1702, 64
        %v1881 = vpop.permute.xlu0 %1880
        %1882 = vrot.lane.b32.xlu0 %v1704, 64
        %v1883 = vpop.permute.xlu0 %1882
        %1892 = vrot.lane.b32.xlu0 %v1827, 96
        %v1893 = vpop.permute.xlu0 %1892
        %1894 = vrot.lane.b32.xlu0 %v1829, 96
        %v1895 = vpop.permute.xlu0 %1894
        %1896 = vrot.lane.b32.xlu0 %v1852, 96
        %v1897 = vpop.permute.xlu0 %1896
        %1898 = vrot.lane.b32.xlu0 %v1854, 96
        %v1899 = vpop.permute.xlu0 %1898
        %v1904 = vsel %vm1246, %v1374, %v1861
        %v1905 = vsel %vm1246, %v1376, %v1863
        %v1906 = vsel %vm1246, %v1402, %v1865
        %v1907 = vsel %vm1246, %v1404, %v1867
        %vm1908 = vcmask 523264
        %v1909 = vsel %vm1908, %v1904, %v1877
        %v1910 = vsel %vm1908, %v1905, %v1879
        %v1911 = vsel %vm1908, %v1906, %v1881
        %v1912 = vsel %vm1908, %v1907, %v1883
        %vm1913 = vcmask 785408
        %v1914 = vsel %vm1913, %v1909, %v1893
        %v1915 = vsel %vm1913, %v1910, %v1895
        %v1916 = vsel %vm1913, %v1911, %v1897
        %v1917 = vsel %vm1913, %v1912, %v1899
        %v1918 = vpack.c.bf16 %v1915, %v1914
        %v1919 = vpack.c.bf16 %v1917, %v1916
        %v1921 = vperm.slane %v1223, 0
        %v1939 = vunpack.c.l.b16 %v1207
        %v1940 = vunpack.c.l.b16 %v1208
        %v1941 = vunpack.c.l.b16 %v1209
        %v1942 = vunpack.c.l.b16 %v1210
        %v1943 = vunpack.c.l.b16 %v1211
        %v1944 = vunpack.c.l.b16 %v1212
        %v1945 = vunpack.c.l.b16 %v1213
        %v1946 = vunpack.c.l.b16 %v1214
        %v1947 = vunpack.c.l.b16 %v1215
        %v1948 = vunpack.c.l.b16 %v1216
        %v1949 = vunpack.c.l.b16 %v1217
        %v1950 = vunpack.c.l.b16 %v1218
        %v1951 = vunpack.c.l.b16 %v1219
        %v1952 = vunpack.c.l.b16 %v1220
        %v1953 = vunpack.c.l.b16 %v1221
        %v1954 = vunpack.c.l.b16 %v1222
        %v1955 = vpack.c.b16 %v1940, %v1939
        %v1956 = vpack.c.b16 %v1942, %v1941
        %v1957 = vpack.c.b16 %v1944, %v1943
        %v1958 = vpack.c.b16 %v1946, %v1945
        %v1959 = vpack.c.b16 %v1948, %v1947
        %v1960 = vpack.c.b16 %v1950, %v1949
        %v1961 = vpack.c.b16 %v1952, %v1951
        %v1962 = vpack.c.b16 %v1954, %v1953
        %1971 = vmatpush.bf16.msra.mxu0 %v1962
        %1972 = vmatpush.bf16.msra.mxu0 %v1961
        %1973 = vmatpush.bf16.msra.mxu0 %v1960
        %1974 = vmatpush.bf16.msra.mxu0 %v1959
        %1975 = vmatpush.bf16.msra.mxu0 %v1958
        %1976 = vmatpush.bf16.msra.mxu0 %v1957
        %1977 = vmatpush.bf16.msra.mxu0 %v1956
        %1978 = vmatpush.bf16.msra.mxu0 %v1955
        %1979 = vmatmul.bf16.gmra.mxu0 %v1918
        %v1980 = vpop.f32.mrf.mxu0
        %v1981 = vadd.f32 %v1921, %v1980
        %v1982 = vpop.f32.mrf.mxu0
        %v1983 = vadd.f32 %v1921, %v1982
        %1984 = vmatmul.bf16.gmra.mxu0 %v1919
        %v1985 = vpop.f32.mrf.mxu0
        %v1986 = vadd.f32 %v1921, %v1985
        %v1987 = vpop.f32.mrf.mxu0
        %v1988 = vadd.f32 %v1921, %v1987
        %1989 = vdwg.mxu0
        %v1990 = vadd.f32 %v813, %v1981
        %v1991 = vadd.f32 %v814, %v1983
        %v1992 = vadd.f32 %v815, %v1986
        %v1993 = vadd.f32 %v816, %v1988
        %v1994 = vld [vmem:[%s750 + $0x2] sm:$0x1]
        %v1995 = vld [vmem:[%s750 + $0x3] sm:$0x1]
        %1996 = vadd.xlane.f32.xlu0 %v1990
        %v1997 = vpop.xlane.xlu0 %1996
        %1998 = vadd.xlane.f32.xlu0 %v1991
        %v1999 = vpop.xlane.xlu0 %1998
        %2000 = vadd.xlane.f32.xlu0 %v1992
        %v2001 = vpop.xlane.xlu0 %2000
        %2002 = vadd.xlane.f32.xlu0 %v1993
        %v2003 = vpop.xlane.xlu0 %2002
        %v2004 = vmul.f32 %v1997, %v833
        %v2005 = vmul.f32 %v1999, %v833
        %v2006 = vmul.f32 %v2001, %v833
        %v2007 = vmul.f32 %v2003, %v833
        %v2008 = vsub.f32 %v1990, %v2004
        %v2009 = vsub.f32 %v1991, %v2005
        %v2010 = vsub.f32 %v1992, %v2006
        %v2011 = vsub.f32 %v1993, %v2007
        %v2012 = vmul.f32 %v2008, %v2008
        %v2013 = vmul.f32 %v2009, %v2009
        %v2014 = vmul.f32 %v2010, %v2010
        %v2015 = vmul.f32 %v2011, %v2011
        %2016 = vadd.xlane.f32.xlu0 %v2012
        %v2017 = vpop.xlane.xlu0 %2016
        %2018 = vadd.xlane.f32.xlu0 %v2013
        %v2019 = vpop.xlane.xlu0 %2018
        %2020 = vadd.xlane.f32.xlu0 %v2014
        %v2021 = vpop.xlane.xlu0 %2020
        %2022 = vadd.xlane.f32.xlu0 %v2015
        %v2023 = vpop.xlane.xlu0 %2022
        %v2024 = vmul.f32 %v2017, 0.007874016
        %v2025 = vmul.f32 %v2019, 0.007874016
        %v2026 = vmul.f32 %v2021, 0.007874016
        %v2027 = vmul.f32 %v2023, 0.007874016
        %v2028 = vrsqrt.pop %v2024
        %v2029 = vmul.f32 %v2028, %v2024
        %v2030 = vmul.f32 %v2029, %v2028
        %v2031 = vmul.f32 0.5, %v2030
        %v2032 = vsub.f32 1.5, %v2031
        %v2033 = vmul.f32 %v2028, %v2032
        %v2034 = vmul.f32 %v2024, %v2033
        %vm2035 = vcmp.eq.f32.partialorder %v2024, inf
        %v2036 = vsel %vm2035, %v2024, %v2034
        %vm2037 = vcmp.eq.f32.partialorder %v2024, 0.0
        %v2038 = vand.u32 %v2024, 2147483648
        %v2039 = vsel %vm2037, %v2038, %v2036
        %v2040 = vrsqrt.pop %v2025
        %v2041 = vmul.f32 %v2040, %v2025
        %v2042 = vmul.f32 %v2041, %v2040
        %v2043 = vmul.f32 0.5, %v2042
        %v2044 = vsub.f32 1.5, %v2043
        %v2045 = vmul.f32 %v2040, %v2044
        %v2046 = vmul.f32 %v2025, %v2045
        %vm2047 = vcmp.eq.f32.partialorder %v2025, inf
        %v2048 = vsel %vm2047, %v2025, %v2046
        %vm2049 = vcmp.eq.f32.partialorder %v2025, 0.0
        %v2050 = vand.u32 %v2025, 2147483648
        %v2051 = vsel %vm2049, %v2050, %v2048
        %v2052 = vrsqrt.pop %v2026
        %v2053 = vmul.f32 %v2052, %v2026
        %v2054 = vmul.f32 %v2053, %v2052
        %v2055 = vmul.f32 0.5, %v2054
        %v2056 = vsub.f32 1.5, %v2055
        %v2057 = vmul.f32 %v2052, %v2056
        %v2058 = vmul.f32 %v2026, %v2057
        %vm2059 = vcmp.eq.f32.partialorder %v2026, inf
        %v2060 = vsel %vm2059, %v2026, %v2058
        %vm2061 = vcmp.eq.f32.partialorder %v2026, 0.0
        %v2062 = vand.u32 %v2026, 2147483648
        %v2063 = vsel %vm2061, %v2062, %v2060
        %v2064 = vrsqrt.pop %v2027
        %v2065 = vmul.f32 %v2064, %v2027
        %v2066 = vmul.f32 %v2065, %v2064
        %v2067 = vmul.f32 0.5, %v2066
        %v2068 = vsub.f32 1.5, %v2067
        %v2069 = vmul.f32 %v2064, %v2068
        %v2070 = vmul.f32 %v2027, %v2069
        %vm2071 = vcmp.eq.f32.partialorder %v2027, inf
        %v2072 = vsel %vm2071, %v2027, %v2070
        %vm2073 = vcmp.eq.f32.partialorder %v2027, 0.0
        %v2074 = vand.u32 %v2027, 2147483648
        %v2075 = vsel %vm2073, %v2074, %v2072
        %v2076 = vadd.f32 %v2039, 1e-06
        %v2077 = vadd.f32 %v2051, 1e-06
        %v2078 = vadd.f32 %v2063, 1e-06
        %v2079 = vadd.f32 %v2075, 1e-06
        %v2080 = vrcp.pop %v2076
        %v2081 = vmul.f32 %v2076, %v2080
        %v2082 = vsub.f32 1.0, %v2081
        %v2083 = vmul.f32 %v2080, %v2082
        %v2084 = vadd.f32 %v2080, %v2083
        %vm2085 = vweird.f32 %v2076
        %vm2086 = vweird.f32 %v2080
        %vm2087 = vmor %vm2085, %vm2086
        %v2088 = vsel %vm2087, %v2080, %v2084
        %v2089 = vand.u32 2147483647, %v2076
        %vm2090 = vcmp.eq.f32.partialorder %v2089, 8.507059e+37
        %v2091 = vand.u32 %v2076, 2147483648
        %v2092 = vor.u32 1.1754944e-38, %v2091
        %v2093 = vsel %vm2090, %v2092, %v2088
        %v2094 = vrcp.pop %v2077
        %v2095 = vmul.f32 %v2077, %v2094
        %v2096 = vsub.f32 1.0, %v2095
        %v2097 = vmul.f32 %v2094, %v2096
        %v2098 = vadd.f32 %v2094, %v2097
        %vm2099 = vweird.f32 %v2077
        %vm2100 = vweird.f32 %v2094
        %vm2101 = vmor %vm2099, %vm2100
        %v2102 = vsel %vm2101, %v2094, %v2098
        %v2103 = vand.u32 2147483647, %v2077
        %vm2104 = vcmp.eq.f32.partialorder %v2103, 8.507059e+37
        %v2105 = vand.u32 %v2077, 2147483648
        %v2106 = vor.u32 1.1754944e-38, %v2105
        %v2107 = vsel %vm2104, %v2106, %v2102
        %v2108 = vrcp.pop %v2078
        %v2109 = vmul.f32 %v2078, %v2108
        %v2110 = vsub.f32 1.0, %v2109
        %v2111 = vmul.f32 %v2108, %v2110
        %v2112 = vadd.f32 %v2108, %v2111
        %vm2113 = vweird.f32 %v2078
        %vm2114 = vweird.f32 %v2108
        %vm2115 = vmor %vm2113, %vm2114
        %v2116 = vsel %vm2115, %v2108, %v2112
        %v2117 = vand.u32 2147483647, %v2078
        %vm2118 = vcmp.eq.f32.partialorder %v2117, 8.507059e+37
        %v2119 = vand.u32 %v2078, 2147483648
        %v2120 = vor.u32 1.1754944e-38, %v2119
        %v2121 = vsel %vm2118, %v2120, %v2116
        %v2122 = vrcp.pop %v2079
        %v2123 = vmul.f32 %v2079, %v2122
        %v2124 = vsub.f32 1.0, %v2123
        %v2125 = vmul.f32 %v2122, %v2124
        %v2126 = vadd.f32 %v2122, %v2125
        %vm2127 = vweird.f32 %v2079
        %vm2128 = vweird.f32 %v2122
        %vm2129 = vmor %vm2127, %vm2128
        %v2130 = vsel %vm2129, %v2122, %v2126
        %v2131 = vand.u32 2147483647, %v2079
        %vm2132 = vcmp.eq.f32.partialorder %v2131, 8.507059e+37
        %v2133 = vand.u32 %v2079, 2147483648
        %v2134 = vor.u32 1.1754944e-38, %v2133
        %v2135 = vsel %vm2132, %v2134, %v2130
        %v2136 = vmul.f32 %v2008, %v2093
        %v2137 = vmul.f32 %v2009, %v2107
        %v2138 = vmul.f32 %v2010, %v2121
        %v2139 = vmul.f32 %v2011, %v2135
        %v2140 = vperm.slane %v1994, 0
        %v2141 = vmul.f32 %v2140, %v2136
        %v2142 = vmul.f32 %v2140, %v2137
        %v2143 = vmul.f32 %v2140, %v2138
        %v2144 = vmul.f32 %v2140, %v2139
        %v2145 = vperm.slane %v1995, 0
        %v2146 = vadd.f32 %v2141, %v2145
        %v2147 = vadd.f32 %v2142, %v2145
        %v2148 = vadd.f32 %v2143, %v2145
        %v2149 = vadd.f32 %v2144, %v2145
        %v2150 = vld [vmem:[%s641] sm:$0xff]
        %v2151 = vld [vmem:[%s641 + $0x8] sm:$0xff]
        %v2152 = vld [vmem:[%s641 + $0x10] sm:$0xff]
        %v2153 = vld [vmem:[%s641 + $0x18] sm:$0xff]
        %v2154 = vld [vmem:[%s641 + $0x20] sm:$0xff]
        %v2155 = vld [vmem:[%s641 + $0x28] sm:$0xff]
        %v2156 = vld [vmem:[%s641 + $0x30] sm:$0xff]
        %v2157 = vld [vmem:[%s641 + $0x38] sm:$0xff]
        %v2158 = vld [vmem:[%s641 + $0x40] sm:$0xff]
        %v2159 = vld [vmem:[%s641 + $0x48] sm:$0xff]
        %v2160 = vld [vmem:[%s641 + $0x50] sm:$0xff]
        %v2161 = vld [vmem:[%s641 + $0x58] sm:$0xff]
        %v2162 = vld [vmem:[%s641 + $0x60] sm:$0xff]
        %v2163 = vld [vmem:[%s641 + $0x68] sm:$0xff]
        %v2164 = vld [vmem:[%s641 + $0x70] sm:$0xff]
        %v2165 = vld [vmem:[%s641 + $0x78] sm:$0xff]
        %v2166 = vld [vmem:[%s743] sm:$0x3]
        %v2167 = vpack.c.bf16 %v2147, %v2146
        %v2168 = vpack.c.bf16 %v2149, %v2148
        %v2170 = vperm.slane %v2166, 0
        %v2171 = vperm.slane %v2166, 1
        %v2190 = vunpack.c.l.b16 %v2150
        %v2191 = vunpack.c.h.b16 %v2150
        %v2192 = vunpack.c.l.b16 %v2151
        %v2193 = vunpack.c.h.b16 %v2151
        %v2194 = vunpack.c.l.b16 %v2152
        %v2195 = vunpack.c.h.b16 %v2152
        %v2196 = vunpack.c.l.b16 %v2153
        %v2197 = vunpack.c.h.b16 %v2153
        %v2198 = vunpack.c.l.b16 %v2154
        %v2199 = vunpack.c.h.b16 %v2154
        %v2200 = vunpack.c.l.b16 %v2155
        %v2201 = vunpack.c.h.b16 %v2155
        %v2202 = vunpack.c.l.b16 %v2156
        %v2203 = vunpack.c.h.b16 %v2156
        %v2204 = vunpack.c.l.b16 %v2157
        %v2205 = vunpack.c.h.b16 %v2157
        %v2206 = vunpack.c.l.b16 %v2158
        %v2207 = vunpack.c.h.b16 %v2158
        %v2208 = vunpack.c.l.b16 %v2159
        %v2209 = vunpack.c.h.b16 %v2159
        %v2210 = vunpack.c.l.b16 %v2160
        %v2211 = vunpack.c.h.b16 %v2160
        %v2212 = vunpack.c.l.b16 %v2161
        %v2213 = vunpack.c.h.b16 %v2161
        %v2214 = vunpack.c.l.b16 %v2162
        %v2215 = vunpack.c.h.b16 %v2162
        %v2216 = vunpack.c.l.b16 %v2163
        %v2217 = vunpack.c.h.b16 %v2163
        %v2218 = vunpack.c.l.b16 %v2164
        %v2219 = vunpack.c.h.b16 %v2164
        %v2220 = vunpack.c.l.b16 %v2165
        %v2221 = vunpack.c.h.b16 %v2165
        %v2222 = vpack.c.b16 %v2192, %v2190
        %v2223 = vpack.c.b16 %v2193, %v2191
        %v2224 = vpack.c.b16 %v2196, %v2194
        %v2225 = vpack.c.b16 %v2197, %v2195
        %v2226 = vpack.c.b16 %v2200, %v2198
        %v2227 = vpack.c.b16 %v2201, %v2199
        %v2228 = vpack.c.b16 %v2204, %v2202
        %v2229 = vpack.c.b16 %v2205, %v2203
        %v2230 = vpack.c.b16 %v2208, %v2206
        %v2231 = vpack.c.b16 %v2209, %v2207
        %v2232 = vpack.c.b16 %v2212, %v2210
        %v2233 = vpack.c.b16 %v2213, %v2211
        %v2234 = vpack.c.b16 %v2216, %v2214
        %v2235 = vpack.c.b16 %v2217, %v2215
        %v2236 = vpack.c.b16 %v2220, %v2218
        %v2237 = vpack.c.b16 %v2221, %v2219
        %2254 = vmatpush.bf16.msra.mxu0 %v2236
        %2255 = vmatpush.bf16.msra.mxu0 %v2234
        %2256 = vmatpush.bf16.msra.mxu0 %v2232
        %2257 = vmatpush.bf16.msra.mxu0 %v2230
        %2258 = vmatpush.bf16.msra.mxu0 %v2228
        %2259 = vmatpush.bf16.msra.mxu0 %v2226
        %2260 = vmatpush.bf16.msra.mxu0 %v2224
        %2261 = vmatpush.bf16.msra.mxu0 %v2222
        %2262 = vmatmul.bf16.gmra.mxu0 %v2167
        %v2263 = vpop.f32.mrf.mxu0
        %v2264 = vadd.f32 %v2170, %v2263
        %v2265 = vpop.f32.mrf.mxu0
        %v2266 = vadd.f32 %v2170, %v2265
        %2267 = vmatmul.bf16.gmra.mxu0 %v2168
        %v2268 = vpop.f32.mrf.mxu0
        %v2269 = vadd.f32 %v2170, %v2268
        %v2270 = vpop.f32.mrf.mxu0
        %v2271 = vadd.f32 %v2170, %v2270
        %2272 = vdwg.mxu0
        %2273 = vmatpush.bf16.msra.mxu0 %v2237
        %2274 = vmatpush.bf16.msra.mxu0 %v2235
        %2275 = vmatpush.bf16.msra.mxu0 %v2233
        %2276 = vmatpush.bf16.msra.mxu0 %v2231
        %2277 = vmatpush.bf16.msra.mxu0 %v2229
        %2278 = vmatpush.bf16.msra.mxu0 %v2227
        %2279 = vmatpush.bf16.msra.mxu0 %v2225
        %2280 = vmatpush.bf16.msra.mxu0 %v2223
        %2281 = vmatmul.bf16.gmra.mxu0 %v2167
        %v2282 = vpop.f32.mrf.mxu0
        %v2283 = vadd.f32 %v2171, %v2282
        %v2284 = vpop.f32.mrf.mxu0
        %v2285 = vadd.f32 %v2171, %v2284
        %2286 = vmatmul.bf16.gmra.mxu0 %v2168
        %v2287 = vpop.f32.mrf.mxu0
        %v2288 = vadd.f32 %v2171, %v2287
        %v2289 = vpop.f32.mrf.mxu0
        %v2290 = vadd.f32 %v2171, %v2289
        %2291 = vdwg.mxu0
        %v2292 = vmax.f32 %v2264, 0.0
        %v2293 = vmax.f32 %v2283, 0.0
        %v2294 = vmax.f32 %v2266, 0.0
        %v2295 = vmax.f32 %v2285, 0.0
        %v2296 = vmax.f32 %v2269, 0.0
        %v2297 = vmax.f32 %v2288, 0.0
        %v2298 = vmax.f32 %v2271, 0.0
        %v2299 = vmax.f32 %v2290, 0.0
        %v2300 = vld [vmem:[%s651] sm:$0xf]
        %v2301 = vld [vmem:[%s651 + $0x4] sm:$0xf]
        %v2302 = vld [vmem:[%s651 + $0x8] sm:$0xf]
        %v2303 = vld [vmem:[%s651 + $0xc] sm:$0xf]
        %v2304 = vld [vmem:[%s651 + $0x10] sm:$0xf]
        %v2305 = vld [vmem:[%s651 + $0x14] sm:$0xf]
        %v2306 = vld [vmem:[%s651 + $0x18] sm:$0xf]
        %v2307 = vld [vmem:[%s651 + $0x1c] sm:$0xf]
        %v2308 = vld [vmem:[%s651 + $0x20] sm:$0xf]
        %v2309 = vld [vmem:[%s651 + $0x24] sm:$0xf]
        %v2310 = vld [vmem:[%s651 + $0x28] sm:$0xf]
        %v2311 = vld [vmem:[%s651 + $0x2c] sm:$0xf]
        %v2312 = vld [vmem:[%s651 + $0x30] sm:$0xf]
        %v2313 = vld [vmem:[%s651 + $0x34] sm:$0xf]
        %v2314 = vld [vmem:[%s651 + $0x38] sm:$0xf]
        %v2315 = vld [vmem:[%s651 + $0x3c] sm:$0xf]
        %v2316 = vld [vmem:[%s651 + $0x40] sm:$0xf]
        %v2317 = vld [vmem:[%s651 + $0x44] sm:$0xf]
        %v2318 = vld [vmem:[%s651 + $0x48] sm:$0xf]
        %v2319 = vld [vmem:[%s651 + $0x4c] sm:$0xf]
        %v2320 = vld [vmem:[%s651 + $0x50] sm:$0xf]
        %v2321 = vld [vmem:[%s651 + $0x54] sm:$0xf]
        %v2322 = vld [vmem:[%s651 + $0x58] sm:$0xf]
        %v2323 = vld [vmem:[%s651 + $0x5c] sm:$0xf]
        %v2324 = vld [vmem:[%s651 + $0x60] sm:$0xf]
        %v2325 = vld [vmem:[%s651 + $0x64] sm:$0xf]
        %v2326 = vld [vmem:[%s651 + $0x68] sm:$0xf]
        %v2327 = vld [vmem:[%s651 + $0x6c] sm:$0xf]
        %v2328 = vld [vmem:[%s651 + $0x70] sm:$0xf]
        %v2329 = vld [vmem:[%s651 + $0x74] sm:$0xf]
        %v2330 = vld [vmem:[%s651 + $0x78] sm:$0xf]
        %v2331 = vld [vmem:[%s651 + $0x7c] sm:$0xf]
        %v2332 = vld [vmem:[%s746] sm:$0x1]
        %v2333 = vpack.c.bf16 %v2294, %v2292
        %v2334 = vpack.c.bf16 %v2295, %v2293
        %v2335 = vpack.c.bf16 %v2298, %v2296
        %v2336 = vpack.c.bf16 %v2299, %v2297
        %v2338 = vperm.slane %v2332, 0
        %v2372 = vunpack.c.l.b16 %v2300
        %v2373 = vunpack.c.l.b16 %v2301
        %v2374 = vunpack.c.l.b16 %v2302
        %v2375 = vunpack.c.l.b16 %v2303
        %v2376 = vunpack.c.l.b16 %v2304
        %v2377 = vunpack.c.l.b16 %v2305
        %v2378 = vunpack.c.l.b16 %v2306
        %v2379 = vunpack.c.l.b16 %v2307
        %v2380 = vunpack.c.l.b16 %v2308
        %v2381 = vunpack.c.l.b16 %v2309
        %v2382 = vunpack.c.l.b16 %v2310
        %v2383 = vunpack.c.l.b16 %v2311
        %v2384 = vunpack.c.l.b16 %v2312
        %v2385 = vunpack.c.l.b16 %v2313
        %v2386 = vunpack.c.l.b16 %v2314
        %v2387 = vunpack.c.l.b16 %v2315
        %v2388 = vunpack.c.l.b16 %v2316
        %v2389 = vunpack.c.l.b16 %v2317
        %v2390 = vunpack.c.l.b16 %v2318
        %v2391 = vunpack.c.l.b16 %v2319
        %v2392 = vunpack.c.l.b16 %v2320
        %v2393 = vunpack.c.l.b16 %v2321
        %v2394 = vunpack.c.l.b16 %v2322
        %v2395 = vunpack.c.l.b16 %v2323
        %v2396 = vunpack.c.l.b16 %v2324
        %v2397 = vunpack.c.l.b16 %v2325
        %v2398 = vunpack.c.l.b16 %v2326
        %v2399 = vunpack.c.l.b16 %v2327
        %v2400 = vunpack.c.l.b16 %v2328
        %v2401 = vunpack.c.l.b16 %v2329
        %v2402 = vunpack.c.l.b16 %v2330
        %v2403 = vunpack.c.l.b16 %v2331
        %v2404 = vpack.c.b16 %v2373, %v2372
        %v2405 = vpack.c.b16 %v2375, %v2374
        %v2406 = vpack.c.b16 %v2377, %v2376
        %v2407 = vpack.c.b16 %v2379, %v2378
        %v2408 = vpack.c.b16 %v2381, %v2380
        %v2409 = vpack.c.b16 %v2383, %v2382
        %v2410 = vpack.c.b16 %v2385, %v2384
        %v2411 = vpack.c.b16 %v2387, %v2386
        %v2412 = vpack.c.b16 %v2389, %v2388
        %v2413 = vpack.c.b16 %v2391, %v2390
        %v2414 = vpack.c.b16 %v2393, %v2392
        %v2415 = vpack.c.b16 %v2395, %v2394
        %v2416 = vpack.c.b16 %v2397, %v2396
        %v2417 = vpack.c.b16 %v2399, %v2398
        %v2418 = vpack.c.b16 %v2401, %v2400
        %v2419 = vpack.c.b16 %v2403, %v2402
        %2436 = vmatpush.bf16.msra.mxu0 %v2411
        %2437 = vmatpush.bf16.msra.mxu0 %v2410
        %2438 = vmatpush.bf16.msra.mxu0 %v2409
        %2439 = vmatpush.bf16.msra.mxu0 %v2408
        %2440 = vmatpush.bf16.msra.mxu0 %v2407
        %2441 = vmatpush.bf16.msra.mxu0 %v2406
        %2442 = vmatpush.bf16.msra.mxu0 %v2405
        %2443 = vmatpush.bf16.msra.mxu0 %v2404
        %2444 = vmatmul.bf16.gmra.mxu0 %v2333
        %v2445 = vpop.f32.mrf.mxu0
        %v2446 = vadd.f32 %v2338, %v2445
        %v2447 = vpop.f32.mrf.mxu0
        %v2448 = vadd.f32 %v2338, %v2447
        %2449 = vmatmul.bf16.gmra.mxu0 %v2335
        %v2450 = vpop.f32.mrf.mxu0
        %v2451 = vadd.f32 %v2338, %v2450
        %v2452 = vpop.f32.mrf.mxu0
        %v2453 = vadd.f32 %v2338, %v2452
        %2454 = vdwg.mxu0
        %2455 = vmatpush.bf16.msra.mxu0 %v2419
        %2456 = vmatpush.bf16.msra.mxu0 %v2418
        %2457 = vmatpush.bf16.msra.mxu0 %v2417
        %2458 = vmatpush.bf16.msra.mxu0 %v2416
        %2459 = vmatpush.bf16.msra.mxu0 %v2415
        %2460 = vmatpush.bf16.msra.mxu0 %v2414
        %2461 = vmatpush.bf16.msra.mxu0 %v2413
        %2462 = vmatpush.bf16.msra.mxu0 %v2412
        %2463 = vmatmul.bf16.gmra.mxu0 %v2334
        %v2464 = vpop.f32.mrf.mxu0
        %v2465 = vadd.f32 %v2446, %v2464
        %v2466 = vpop.f32.mrf.mxu0
        %v2467 = vadd.f32 %v2448, %v2466
        %2468 = vmatmul.bf16.gmra.mxu0 %v2336
        %v2469 = vpop.f32.mrf.mxu0
        %v2470 = vadd.f32 %v2451, %v2469
        %v2471 = vpop.f32.mrf.mxu0
        %v2472 = vadd.f32 %v2453, %v2471
        %2473 = vdwg.mxu0
        %v2474 = vadd.f32 %v1990, %v2465
        %v2475 = vadd.f32 %v1991, %v2467
        %v2476 = vadd.f32 %v1992, %v2470
        %v2477 = vadd.f32 %v1993, %v2472
        %p2478 = scmp.ne.s32.totalorder %s41, 1
        // Predicated region
        $region105: #{tpu_custom_call.1} parent=75 // pred_check
          %p2479 = pneg %p2478
        $region106: #{tpu_custom_call.1} parent=75 // pred_check_branch
          %2481 = sbr.rel (%p2479) target = $region108
        $region107: #{tpu_custom_call.1} parent=75 // pred_region
          %2482 = vst [vmem:[#allocation13] sm:$0xff] %v2474
          %2483 = vst [vmem:[#allocation13 + $0x8] sm:$0xff] %v2475
          %2484 = vst [vmem:[#allocation13 + $0x10] sm:$0xff] %v2476
          %2485 = vst [vmem:[#allocation13 + $0x18] sm:$0xff] %v2477
        $region108: #{tpu_custom_call.1} parent=75 // pred_fallthru
          _
        %p2486 = scmp.eq.s32.totalorder %s41, 1
        // Predicated region
        $region109: #{tpu_custom_call.1} parent=75 // pred_check
          %p2487 = pneg %p2486
        $region110: #{tpu_custom_call.1} parent=75 // pred_check_branch
          %2489 = sbr.rel (%p2487) target = $region112
        $region111: #{tpu_custom_call.1} parent=75 // pred_region
          %v2490 = vld [vmem:[%s13] sm:$0x1]
          %v2491 = vld [vmem:[%s13 + $0x1] sm:$0x1]
          %2492 = vadd.xlane.f32.xlu0 %v2474
          %v2493 = vpop.xlane.xlu0 %2492
          %2494 = vadd.xlane.f32.xlu0 %v2475
          %v2495 = vpop.xlane.xlu0 %2494
          %2496 = vadd.xlane.f32.xlu0 %v2476
          %v2497 = vpop.xlane.xlu0 %2496
          %2498 = vadd.xlane.f32.xlu0 %v2477
          %v2499 = vpop.xlane.xlu0 %2498
          %v2500 = vmul.f32 %v2493, %v833
          %v2501 = vmul.f32 %v2495, %v833
          %v2502 = vmul.f32 %v2497, %v833
          %v2503 = vmul.f32 %v2499, %v833
          %v2504 = vsub.f32 %v2474, %v2500
          %v2505 = vsub.f32 %v2475, %v2501
          %v2506 = vsub.f32 %v2476, %v2502
          %v2507 = vsub.f32 %v2477, %v2503
          %v2508 = vmul.f32 %v2504, %v2504
          %v2509 = vmul.f32 %v2505, %v2505
          %v2510 = vmul.f32 %v2506, %v2506
          %v2511 = vmul.f32 %v2507, %v2507
          %2512 = vadd.xlane.f32.xlu0 %v2508
          %v2513 = vpop.xlane.xlu0 %2512
          %2514 = vadd.xlane.f32.xlu0 %v2509
          %v2515 = vpop.xlane.xlu0 %2514
          %2516 = vadd.xlane.f32.xlu0 %v2510
          %v2517 = vpop.xlane.xlu0 %2516
          %2518 = vadd.xlane.f32.xlu0 %v2511
          %v2519 = vpop.xlane.xlu0 %2518
          %v2520 = vmul.f32 %v2513, 0.007874016
          %v2521 = vmul.f32 %v2515, 0.007874016
          %v2522 = vmul.f32 %v2517, 0.007874016
          %v2523 = vmul.f32 %v2519, 0.007874016
          %v2524 = vrsqrt.pop %v2520
          %v2525 = vmul.f32 %v2524, %v2520
          %v2526 = vmul.f32 %v2525, %v2524
          %v2527 = vmul.f32 0.5, %v2526
          %v2528 = vsub.f32 1.5, %v2527
          %v2529 = vmul.f32 %v2524, %v2528
          %v2530 = vmul.f32 %v2520, %v2529
          %vm2531 = vcmp.eq.f32.partialorder %v2520, inf
          %v2532 = vsel %vm2531, %v2520, %v2530
          %vm2533 = vcmp.eq.f32.partialorder %v2520, 0.0
          %v2534 = vand.u32 %v2520, 2147483648
          %v2535 = vsel %vm2533, %v2534, %v2532
          %v2536 = vrsqrt.pop %v2521
          %v2537 = vmul.f32 %v2536, %v2521
          %v2538 = vmul.f32 %v2537, %v2536
          %v2539 = vmul.f32 0.5, %v2538
          %v2540 = vsub.f32 1.5, %v2539
          %v2541 = vmul.f32 %v2536, %v2540
          %v2542 = vmul.f32 %v2521, %v2541
          %vm2543 = vcmp.eq.f32.partialorder %v2521, inf
          %v2544 = vsel %vm2543, %v2521, %v2542
          %vm2545 = vcmp.eq.f32.partialorder %v2521, 0.0
          %v2546 = vand.u32 %v2521, 2147483648
          %v2547 = vsel %vm2545, %v2546, %v2544
          %v2548 = vrsqrt.pop %v2522
          %v2549 = vmul.f32 %v2548, %v2522
          %v2550 = vmul.f32 %v2549, %v2548
          %v2551 = vmul.f32 0.5, %v2550
          %v2552 = vsub.f32 1.5, %v2551
          %v2553 = vmul.f32 %v2548, %v2552
          %v2554 = vmul.f32 %v2522, %v2553
          %vm2555 = vcmp.eq.f32.partialorder %v2522, inf
          %v2556 = vsel %vm2555, %v2522, %v2554
          %vm2557 = vcmp.eq.f32.partialorder %v2522, 0.0
          %v2558 = vand.u32 %v2522, 2147483648
          %v2559 = vsel %vm2557, %v2558, %v2556
          %v2560 = vrsqrt.pop %v2523
          %v2561 = vmul.f32 %v2560, %v2523
          %v2562 = vmul.f32 %v2561, %v2560
          %v2563 = vmul.f32 0.5, %v2562
          %v2564 = vsub.f32 1.5, %v2563
          %v2565 = vmul.f32 %v2560, %v2564
          %v2566 = vmul.f32 %v2523, %v2565
          %vm2567 = vcmp.eq.f32.partialorder %v2523, inf
          %v2568 = vsel %vm2567, %v2523, %v2566
          %vm2569 = vcmp.eq.f32.partialorder %v2523, 0.0
          %v2570 = vand.u32 %v2523, 2147483648
          %v2571 = vsel %vm2569, %v2570, %v2568
          %v2572 = vadd.f32 %v2535, 1e-06
          %v2573 = vadd.f32 %v2547, 1e-06
          %v2574 = vadd.f32 %v2559, 1e-06
          %v2575 = vadd.f32 %v2571, 1e-06
          %v2576 = vrcp.pop %v2572
          %v2577 = vmul.f32 %v2572, %v2576
          %v2578 = vsub.f32 1.0, %v2577
          %v2579 = vmul.f32 %v2576, %v2578
          %v2580 = vadd.f32 %v2576, %v2579
          %vm2581 = vweird.f32 %v2572
          %vm2582 = vweird.f32 %v2576
          %vm2583 = vmor %vm2581, %vm2582
          %v2584 = vsel %vm2583, %v2576, %v2580
          %v2585 = vand.u32 2147483647, %v2572
          %vm2586 = vcmp.eq.f32.partialorder %v2585, 8.507059e+37
          %v2587 = vand.u32 %v2572, 2147483648
          %v2588 = vor.u32 1.1754944e-38, %v2587
          %v2589 = vsel %vm2586, %v2588, %v2584
          %v2590 = vrcp.pop %v2573
          %v2591 = vmul.f32 %v2573, %v2590
          %v2592 = vsub.f32 1.0, %v2591
          %v2593 = vmul.f32 %v2590, %v2592
          %v2594 = vadd.f32 %v2590, %v2593
          %vm2595 = vweird.f32 %v2573
          %vm2596 = vweird.f32 %v2590
          %vm2597 = vmor %vm2595, %vm2596
          %v2598 = vsel %vm2597, %v2590, %v2594
          %v2599 = vand.u32 2147483647, %v2573
          %vm2600 = vcmp.eq.f32.partialorder %v2599, 8.507059e+37
          %v2601 = vand.u32 %v2573, 2147483648
          %v2602 = vor.u32 1.1754944e-38, %v2601
          %v2603 = vsel %vm2600, %v2602, %v2598
          %v2604 = vrcp.pop %v2574
          %v2605 = vmul.f32 %v2574, %v2604
          %v2606 = vsub.f32 1.0, %v2605
          %v2607 = vmul.f32 %v2604, %v2606
          %v2608 = vadd.f32 %v2604, %v2607
          %vm2609 = vweird.f32 %v2574
          %vm2610 = vweird.f32 %v2604
          %vm2611 = vmor %vm2609, %vm2610
          %v2612 = vsel %vm2611, %v2604, %v2608
          %v2613 = vand.u32 2147483647, %v2574
          %vm2614 = vcmp.eq.f32.partialorder %v2613, 8.507059e+37
          %v2615 = vand.u32 %v2574, 2147483648
          %v2616 = vor.u32 1.1754944e-38, %v2615
          %v2617 = vsel %vm2614, %v2616, %v2612
          %v2618 = vrcp.pop %v2575
          %v2619 = vmul.f32 %v2575, %v2618
          %v2620 = vsub.f32 1.0, %v2619
          %v2621 = vmul.f32 %v2618, %v2620
          %v2622 = vadd.f32 %v2618, %v2621
          %vm2623 = vweird.f32 %v2575
          %vm2624 = vweird.f32 %v2618
          %vm2625 = vmor %vm2623, %vm2624
          %v2626 = vsel %vm2625, %v2618, %v2622
          %v2627 = vand.u32 2147483647, %v2575
          %vm2628 = vcmp.eq.f32.partialorder %v2627, 8.507059e+37
          %v2629 = vand.u32 %v2575, 2147483648
          %v2630 = vor.u32 1.1754944e-38, %v2629
          %v2631 = vsel %vm2628, %v2630, %v2626
          %v2632 = vmul.f32 %v2504, %v2589
          %v2633 = vmul.f32 %v2505, %v2603
          %v2634 = vmul.f32 %v2506, %v2617
          %v2635 = vmul.f32 %v2507, %v2631
          %v2636 = vperm.slane %v2490, 0
          %v2637 = vmul.f32 %v2636, %v2632
          %v2638 = vmul.f32 %v2636, %v2633
          %v2639 = vmul.f32 %v2636, %v2634
          %v2640 = vmul.f32 %v2636, %v2635
          %v2641 = vperm.slane %v2491, 0
          %v2642 = vadd.f32 %v2637, %v2641
          %v2643 = vadd.f32 %v2638, %v2641
          %v2644 = vadd.f32 %v2639, %v2641
          %v2645 = vadd.f32 %v2640, %v2641
          %2646 = vst [vmem:[#allocation13] sm:$0xff] %v2642
          %2647 = vst [vmem:[#allocation13 + $0x8] sm:$0xff] %v2643
          %2648 = vst [vmem:[#allocation13 + $0x10] sm:$0xff] %v2644
          %2649 = vst [vmem:[#allocation13 + $0x18] sm:$0xff] %v2645
        $region112: #{tpu_custom_call.1} parent=75 // pred_fallthru
          _
        // Predicated region
        $region113: #{tpu_custom_call.1} parent=75 // pred_check
          %p2650 = pneg %p410
        $region114: #{tpu_custom_call.1} parent=75 // pred_check_branch
          %2652 = sbr.rel (%p2650) target = $region116
        $region115: #{tpu_custom_call.1} parent=75 // pred_region
          %s2653 = smul.u32 4, %s40
          %2655 = vsyncadd [#allocation4], 0
          %s2656 = smul.addr %s2653, 8
          %s2657 = scalar_lea.hbm %s14, %s2656
          %s2658 = sshll.u32 [#allocation13], 4
          %s2659 = int_to_ptr.vmem [resolvable:$true] %s2658
          %s2660 = sshll.u32 %s2657, 4
          %s2661 = int_to_ptr.hbm [resolvable:$true] %s2660
          %2666 = dma.vmem_to_hbm [thread:$0]  %s2659, 512, %s2661, [#allocation4], 128, 128, 8
        $region116: #{tpu_custom_call.1} parent=75 // pred_fallthru
          _
        // Predicated region
        $region117: #{tpu_custom_call.1} parent=75 // pred_check
          %p2667 = pneg %p410
        $region118: #{tpu_custom_call.1} parent=75 // pred_check_branch
          %2669 = sbr.rel (%p2667) target = $region120
        $region119: #{tpu_custom_call.1} parent=75 // pred_region
          %2671 = dma.done [#allocation4], 512
        $region120: #{tpu_custom_call.1} parent=75 // pred_fallthru
          _
      $region76: #{tpu_custom_call.1} parent=5 // pred_fallthru
        _
      %p2672 = scmp.le.s32.totalorder 2, %s31
      // Predicated region
      $region121: #{tpu_custom_call.1} parent=5 // pred_check
        %p2673 = pneg %p2672
      $region122: #{tpu_custom_call.1} parent=5 // pred_check_branch
        %2675 = sbr.rel (%p2673) target = $region124
      $region123: #{tpu_custom_call.1} parent=5 // pred_region
        %s2676 = ssub.s32 %s31, 2
      $region124: #{tpu_custom_call.1} parent=5 // pred_fallthru
        _
    $region6: #{tpu_custom_call.1} parent=1 // loop_footer
      %s35 = sadd.s32 1, %s31
    $region7: #{tpu_custom_call.1} parent=1 // loop_footer_branch
      %30 = sbr.rel target = $region3
    $region8: #{tpu_custom_call.1} parent=1 // loop_exit
      _
    %2677 = vsyncpa [#allocation3], 1
    %s2678 = scalar_lea.sflag [#allocation3], 1
    %2679 = vsyncpa %s2678, 1
    %2680 = vsyncpa [#allocation6], 1
    %s2681 = scalar_lea.sflag [#allocation6], 1
    %2682 = vsyncpa %s2681, 1
    %2683 = vsyncpa [#allocation9], 1
    %s2684 = scalar_lea.sflag [#allocation9], 1
    %2685 = vsyncpa %s2684, 1
    %2686 = vsyncpa [#allocation12], 1
    %s2687 = scalar_lea.sflag [#allocation12], 1
    %2688 = vsyncpa %s2687, 1
    %2689 = vsyncpa [#allocation4], 1
    %s2690 = scalar_lea.sflag [#allocation4], 1
    %2691 = vsyncpa %s2690, 1

</llo_original>
